<compile_context>
chip_gen: v5e
topology: v5e:2x2
jax: 0.10.0
libtpu: 0.0.40
codegen_flags: <defaults>
</compile_context>

<pallas_src>
from functools import partial

import numpy as np
import jax
import jax.numpy as jnp
from jax.experimental import pallas as pl
from jax.experimental.pallas import tpu as pltpu


K_PAD = 128  # conv1 tap-stack contraction depth: 27*Cb = 108 real rows, zero-padded to 128


# ---------------------------------------------------------------------------
# Fully fused Bottleneck kernel (single invocation, batch folded into lanes)
# ---------------------------------------------------------------------------
def _bottleneck_kernel(x_ref, mask_ref, w0_ref, b0_ref, w1_ref, b1_ref,
                       w23_ref, b23_ref, o_ref, taps_ref, *, D, H, W):
    """Layout: channels on sublanes, flat N*D*H*W spatial axis on lanes (lane-dense)."""
    NDHW = x_ref.shape[1]
    Cb = w0_ref.shape[0]

    x = x_ref[...]                                            # (Cin, NDHW)

    # conv0 (1x1x1) + bn0 + relu   (BN scale folded into w0; bias = folded BN shift)
    h0 = jnp.maximum(
        jnp.dot(w0_ref[...], x, preferred_element_type=jnp.float32) + b0_ref[...], 0.0)

    # Zero only the K-padding rows of the tap-stack scratch (rows 27*Cb .. K_PAD);
    # the matching weight columns are already zero, but VMEM scratch is uninitialized.
    taps_ref[27 * Cb:, :] = jnp.zeros((K_PAD - 27 * Cb, NDHW), jnp.float32)

    # conv1 (3x3x3, pad=1, stride=1) + bn1 + relu:
    # stream the 27 shifted+masked taps of h0 into the VMEM scratch, then ONE K=128
    # matmul does the whole channel+tap contraction on the MXU.  Masks are host-side
    # precomputed {0,1} planes (one VMEM row load per tap), so nothing mask-related
    # stays live in vregs across the unrolled loop, and taps are mutually independent.
    for tap in range(27):
        sd, sh, sw = tap // 9 - 1, (tap // 3) % 3 - 1, tap % 3 - 1
        off = sd * H * W + sh * W + sw
        src = h0 if off == 0 else pltpu.roll(h0, shift=(-off) % NDHW, axis=1)
        taps_ref[tap * Cb:(tap + 1) * Cb, :] = src * mask_ref[tap:tap + 1, :]

    h1 = jnp.maximum(
        jnp.dot(w1_ref[...], taps_ref[...], preferred_element_type=jnp.float32)
        + b1_ref[...], 0.0)                                   # (Cb, NDHW)

    # conv2 + bn2 fused with the conv3 + bn3 shortcut: one K=(Cb+Cin) matmul on [h1; x]
    # with pre-summed bias (b2+b3); residual add comes out of the matmul; final relu.
    hx = jnp.concatenate([h1, x], axis=0)                     # (Cb+Cin, NDHW)
    out = jnp.dot(w23_ref[...], hx, preferred_element_type=jnp.float32) + b23_ref[...]
    o_ref[...] = jnp.maximum(out, 0.0).astype(o_ref.dtype)


def _make_tap_masks(N, D, H, W):
    """(27, N*DHW) {0,1} f32 validity planes for the pad=1 3x3x3 conv.

    Computed from the per-batch-element position (r = m % DHW), so a rolled tap that
    would cross the batch seam of the lane-folded layout is always masked to zero.
    Pure numpy on static shapes -> zero runtime cost to build."""
    DHW = D * H * W
    r = np.arange(DHW)
    d, h, w = r // (H * W), (r // W) % H, r % W
    masks = np.empty((27, N * DHW), np.float32)
    for tap in range(27):
        sd, sh, sw = tap // 9 - 1, (tap // 3) % 3 - 1, tap % 3 - 1
        ok = ((d + sd >= 0) & (d + sd < D) & (h + sh >= 0) & (h + sh < H)
              & (w + sw >= 0) & (w + sw < W))
        masks[tap] = np.tile(ok.astype(np.float32), N)
    return masks


def bottleneck_forward(x_ncdhw, p, stride):
    """x_ncdhw: (N, C, D, H, W) float32. Returns (N, num_filters, D, H, W)."""
    assert tuple(stride) == (1, 1, 1)
    N, C, D, H, W = x_ncdhw.shape
    DHW = D * H * W
    NDHW = N * DHW
    Cout = p["w23"].shape[0]

    # Channel-planes layout with the batch folded into the lane axis: (C, N*DHW).
    # Single pallas_call invocation (no grid): everything resident in VMEM
    # (~1.6 MiB incl. the 128-row tap scratch), all loads/stores lane-dense.
    x_flat = jnp.transpose(x_ncdhw, (1, 0, 2, 3, 4)).reshape(C, NDHW)
    masks = jnp.asarray(_make_tap_masks(N, D, H, W))

    out_flat = pl.pallas_call(
        partial(_bottleneck_kernel, D=D, H=H, W=W),
        out_shape=jax.ShapeDtypeStruct((Cout, NDHW), jnp.float32),
        scratch_shapes=[pltpu.VMEM((K_PAD, NDHW), jnp.float32)],
    )(x_flat, masks, p["w0"], p["b0"], p["w1"], p["b1"], p["w23"], p["b23"])

    return jnp.transpose(out_flat.reshape(Cout, N, D, H, W), (1, 0, 2, 3, 4))


# ---------------------------------------------------------------------------
# BN folding + weight packing for the fused kernel
# ---------------------------------------------------------------------------
def fold_bn(gamma, beta, mean, var, eps=1e-3):
    scale = gamma / jnp.sqrt(var + eps)
    shift = beta - mean * scale
    return scale, shift


def pack_params(raw):
    """Fold eval-mode BN into conv weights; pack weights for the fused kernel."""
    s0, b0 = fold_bn(*raw["bn0"])
    s1, b1 = fold_bn(*raw["bn1"])
    s2, b2 = fold_bn(*raw["bn2"])
    s3, b3 = fold_bn(*raw["bn3"])

    # conv0 (1x1x1): (Cb, Cin)
    w0 = raw["conv0"][:, :, 0, 0, 0] * s0[:, None]

    # conv1 (3x3x3): (Cout, Cin, 3,3,3) -> (Cout, 27*Cin) with column tap*Cin + cin
    # matching the kernel's scratch-row layout, zero-padded to K_PAD columns.
    w1 = raw["conv1"] * s1[:, None, None, None, None]
    c1o, c1i = w1.shape[0], w1.shape[1]
    w1 = jnp.transpose(w1, (0, 2, 3, 4, 1)).reshape(c1o, 27 * c1i)
    w1 = jnp.pad(w1, ((0, 0), (0, K_PAD - 27 * c1i)))

    # conv2 and shortcut conv3 merged: [w2 | w3] over the concatenated [h1; x] input,
    # biases pre-summed.
    w2 = raw["conv2"][:, :, 0, 0, 0] * s2[:, None]
    w3 = raw["conv3"][:, :, 0, 0, 0] * s3[:, None]
    w23 = jnp.concatenate([w2, w3], axis=1)

    f32 = jnp.float32
    return {
        "w0": w0.astype(f32),  "b0": b0.reshape(-1, 1).astype(f32),
        "w1": w1.astype(f32),  "b1": b1.reshape(-1, 1).astype(f32),
        "w23": w23.astype(f32), "b23": (b2 + b3).reshape(-1, 1).astype(f32),
    }


# ---------------------------------------------------------------------------
# Pure-JAX reference (lax conv) for validation
# ---------------------------------------------------------------------------
def bottleneck_reference(x, raw, stride, eps=1e-3):
    def conv(x, w, strd, pad):
        return jax.lax.conv_general_dilated(
            x, w, window_strides=strd, padding=[(q, q) for q in pad],
            dimension_numbers=("NCDHW", "OIDHW", "NCDHW"))

    def bn(x, g, b, m, v):
        sh = (1, -1, 1, 1, 1)
        return (x - m.reshape(sh)) / jnp.sqrt(v.reshape(sh) + eps) * g.reshape(sh) + b.reshape(sh)

    relu = lambda t: jnp.maximum(t, 0.0)
    out = relu(bn(conv(x, raw["conv0"], (1, 1, 1), (0, 0, 0)), *raw["bn0"]))
    out = relu(bn(conv(out, raw["conv1"], stride, (1, 1, 1)), *raw["bn1"]))
    out = bn(conv(out, raw["conv2"], (1, 1, 1), (0, 0, 0)), *raw["bn2"])
    identity = bn(conv(x, raw["conv3"], stride, (0, 0, 0)), *raw["bn3"])
    return relu(out + identity)


# ---------------------------------------------------------------------------
# Deterministic parameter construction + run
# ---------------------------------------------------------------------------
def make_params(key, input_filters, base_filters, num_filters):
    ks = jax.random.split(key, 20)
    it = iter(range(20))

    def nxt():
        return ks[next(it)]

    def conv_w(cout, cin, kd, kh, kw):
        return jax.random.normal(nxt(), (cout, cin, kd, kh, kw), jnp.float32) * 0.1

    def bn_p(c):
        gamma = 1.0 + 0.1 * jax.random.normal(nxt(), (c,), jnp.float32)
        beta = 0.1 * jax.random.normal(nxt(), (c,), jnp.float32)
        mean = 0.1 * jax.random.normal(nxt(), (c,), jnp.float32)
        var = jnp.abs(jax.random.normal(nxt(), (c,), jnp.float32)) + 0.5
        return gamma, beta, mean, var

    raw = {
        "conv0": conv_w(base_filters, input_filters, 1, 1, 1), "bn0": bn_p(base_filters),
        "conv1": conv_w(base_filters, base_filters, 3, 3, 3),  "bn1": bn_p(base_filters),
        "conv2": conv_w(num_filters, base_filters, 1, 1, 1),   "bn2": bn_p(num_filters),
        "conv3": conv_w(num_filters, input_filters, 1, 1, 1),  "bn3": bn_p(num_filters),
    }
    return pack_params(raw), raw


if __name__ == "__main__":
    key = jax.random.PRNGKey(0)
    kx, kp = jax.random.split(key)

    # Bottleneck(input_filters=4, num_filters=8, base_filters=4, down_sampling=False)
    input_filters, base_filters, num_filters = 4, 4, 8
    down_sampling_stride = (1, 1, 1)   # down_sampling=False

    N, D, H, W = 2, 4, 16, 16
    x = jax.random.normal(kx, (N, input_filters, D, H, W), jnp.float32)  # NCDHW, like PyTorch

    params, raw = make_params(kp, input_filters, base_filters, num_filters)

    out = jax.block_until_ready(bottleneck_forward(x, params, down_sampling_stride))
    ref = jax.block_until_ready(bottleneck_reference(x, raw, down_sampling_stride))
    np.testing.assert_allclose(np.asarray(out), np.asarray(ref), rtol=1e-4, atol=1e-4)

    print("KERNEL_OK")
</pallas_src>

<mosaic_0001>
module attributes {stable_mosaic.version = 11 : i64} {
  func.func @_bottleneck_kernel(%arg0: memref<4x2048xf32, #tpu.memory_space<vmem>>, %arg1: memref<27x2048xf32, #tpu.memory_space<vmem>>, %arg2: memref<4x4xf32, #tpu.memory_space<vmem>>, %arg3: memref<4x1xf32, #tpu.memory_space<vmem>>, %arg4: memref<4x128xf32, #tpu.memory_space<vmem>>, %arg5: memref<4x1xf32, #tpu.memory_space<vmem>>, %arg6: memref<8x8xf32, #tpu.memory_space<vmem>>, %arg7: memref<8x1xf32, #tpu.memory_space<vmem>>, %arg8: memref<8x2048xf32, #tpu.memory_space<vmem>>, %arg9: memref<128x2048xf32, #tpu.memory_space<vmem>>) attributes {dimension_semantics = [], scalar_prefetch = 0 : i64, scratch_operands = 1 : i64, tpu.core_type = #tpu.core_type<tc>} {
    %c0 = arith.constant 0 : index
    %c0_0 = arith.constant 0 : index
    %0 = vector.load %arg0[%c0, %c0_0] : memref<4x2048xf32, #tpu.memory_space<vmem>>, vector<4x2048xf32>
    %c0_1 = arith.constant 0 : index
    %c0_2 = arith.constant 0 : index
    %1 = vector.load %arg2[%c0_1, %c0_2] : memref<4x4xf32, #tpu.memory_space<vmem>>, vector<4x4xf32>
    %cst = arith.constant dense<0.000000e+00> : vector<4x2048xf32>
    %2 = tpu.matmul %1, %0, %cst {dimension_numbers = #tpu.dot_dimension_numbers<[1], [0], [0], [1], [0, 0, 1, 1], [], []>} : vector<4x4xf32>, vector<4x2048xf32>, vector<4x2048xf32> -> vector<4x2048xf32>
    %c0_3 = arith.constant 0 : index
    %c0_4 = arith.constant 0 : index
    %3 = vector.load %arg3[%c0_3, %c0_4] : memref<4x1xf32, #tpu.memory_space<vmem>>, vector<4x1xf32>
    %4 = vector.broadcast %3 : vector<4x1xf32> to vector<4x2048xf32>
    %5 = arith.addf %2, %4 : vector<4x2048xf32>
    %cst_5 = arith.constant 0.000000e+00 : f32
    %6 = vector.broadcast %cst_5 : f32 to vector<4x2048xf32>
    %7 = arith.maximumf %5, %6 : vector<4x2048xf32>
    %cst_6 = arith.constant 0.000000e+00 : f32
    %8 = vector.broadcast %cst_6 : f32 to vector<20x2048xf32>
    %c108 = arith.constant 108 : index
    %c0_7 = arith.constant 0 : index
    %9 = vector.load %arg9[%c108, %c0_7] : memref<128x2048xf32, #tpu.memory_space<vmem>>, vector<20x2048xf32>
    tpu.vector_store %arg9[%c108, %c0_7], %8 {strides = array<i32>} : memref<128x2048xf32, #tpu.memory_space<vmem>>, vector<20x2048xf32>,
    %c273_i32 = arith.constant 273 : i32
    %10 = tpu.dynamic_rotate %7 by %c273_i32 dim 1 : vector<4x2048xf32>, i32 -> vector<4x2048xf32>
    %c0_8 = arith.constant 0 : index
    %c0_9 = arith.constant 0 : index
    %11 = vector.load %arg1[%c0_8, %c0_9] : memref<27x2048xf32, #tpu.memory_space<vmem>>, vector<1x2048xf32>
    %12 = vector.broadcast %11 : vector<1x2048xf32> to vector<4x2048xf32>
    %13 = arith.mulf %10, %12 : vector<4x2048xf32>
    %c0_10 = arith.constant 0 : index
    %c0_11 = arith.constant 0 : index
    %14 = vector.load %arg9[%c0_10, %c0_11] : memref<128x2048xf32, #tpu.memory_space<vmem>>, vector<4x2048xf32>
    tpu.vector_store %arg9[%c0_10, %c0_11], %13 {strides = array<i32>} : memref<128x2048xf32, #tpu.memory_space<vmem>>, vector<4x2048xf32>,
    %c272_i32 = arith.constant 272 : i32
    %15 = tpu.dynamic_rotate %7 by %c272_i32 dim 1 : vector<4x2048xf32>, i32 -> vector<4x2048xf32>
    %c1 = arith.constant 1 : index
    %c0_12 = arith.constant 0 : index
    %16 = vector.load %arg1[%c1, %c0_12] : memref<27x2048xf32, #tpu.memory_space<vmem>>, vector<1x2048xf32>
    %17 = vector.broadcast %16 : vector<1x2048xf32> to vector<4x2048xf32>
    %18 = arith.mulf %15, %17 : vector<4x2048xf32>
    %c4 = arith.constant 4 : index
    %c0_13 = arith.constant 0 : index
    %19 = vector.load %arg9[%c4, %c0_13] : memref<128x2048xf32, #tpu.memory_space<vmem>>, vector<4x2048xf32>
    tpu.vector_store %arg9[%c4, %c0_13], %18 {strides = array<i32>} : memref<128x2048xf32, #tpu.memory_space<vmem>>, vector<4x2048xf32>,
    %c271_i32 = arith.constant 271 : i32
    %20 = tpu.dynamic_rotate %7 by %c271_i32 dim 1 : vector<4x2048xf32>, i32 -> vector<4x2048xf32>
    %c2 = arith.constant 2 : index
    %c0_14 = arith.constant 0 : index
    %21 = vector.load %arg1[%c2, %c0_14] : memref<27x2048xf32, #tpu.memory_space<vmem>>, vector<1x2048xf32>
    %22 = vector.broadcast %21 : vector<1x2048xf32> to vector<4x2048xf32>
    %23 = arith.mulf %20, %22 : vector<4x2048xf32>
    %c8 = arith.constant 8 : index
    %c0_15 = arith.constant 0 : index
    %24 = vector.load %arg9[%c8, %c0_15] : memref<128x2048xf32, #tpu.memory_space<vmem>>, vector<4x2048xf32>
    tpu.vector_store %arg9[%c8, %c0_15], %23 {strides = array<i32>} : memref<128x2048xf32, #tpu.memory_space<vmem>>, vector<4x2048xf32>,
    %c257_i32 = arith.constant 257 : i32
    %25 = tpu.dynamic_rotate %7 by %c257_i32 dim 1 : vector<4x2048xf32>, i32 -> vector<4x2048xf32>
    %c3 = arith.constant 3 : index
    %c0_16 = arith.constant 0 : index
    %26 = vector.load %arg1[%c3, %c0_16] : memref<27x2048xf32, #tpu.memory_space<vmem>>, vector<1x2048xf32>
    %27 = vector.broadcast %26 : vector<1x2048xf32> to vector<4x2048xf32>
    %28 = arith.mulf %25, %27 : vector<4x2048xf32>
    %c12 = arith.constant 12 : index
    %c0_17 = arith.constant 0 : index
    %29 = vector.load %arg9[%c12, %c0_17] : memref<128x2048xf32, #tpu.memory_space<vmem>>, vector<4x2048xf32>
    tpu.vector_store %arg9[%c12, %c0_17], %28 {strides = array<i32>} : memref<128x2048xf32, #tpu.memory_space<vmem>>, vector<4x2048xf32>,
    %c256_i32 = arith.constant 256 : i32
    %30 = tpu.dynamic_rotate %7 by %c256_i32 dim 1 : vector<4x2048xf32>, i32 -> vector<4x2048xf32>
    %c4_18 = arith.constant 4 : index
    %c0_19 = arith.constant 0 : index
    %31 = vector.load %arg1[%c4_18, %c0_19] : memref<27x2048xf32, #tpu.memory_space<vmem>>, vector<1x2048xf32>
    %32 = vector.broadcast %31 : vector<1x2048xf32> to vector<4x2048xf32>
    %33 = arith.mulf %30, %32 : vector<4x2048xf32>
    %c16 = arith.constant 16 : index
    %c0_20 = arith.constant 0 : index
    %34 = vector.load %arg9[%c16, %c0_20] : memref<128x2048xf32, #tpu.memory_space<vmem>>, vector<4x2048xf32>
    tpu.vector_store %arg9[%c16, %c0_20], %33 {strides = array<i32>} : memref<128x2048xf32, #tpu.memory_space<vmem>>, vector<4x2048xf32>,
    %c255_i32 = arith.constant 255 : i32
    %35 = tpu.dynamic_rotate %7 by %c255_i32 dim 1 : vector<4x2048xf32>, i32 -> vector<4x2048xf32>
    %c5 = arith.constant 5 : index
    %c0_21 = arith.constant 0 : index
    %36 = vector.load %arg1[%c5, %c0_21] : memref<27x2048xf32, #tpu.memory_space<vmem>>, vector<1x2048xf32>
    %37 = vector.broadcast %36 : vector<1x2048xf32> to vector<4x2048xf32>
    %38 = arith.mulf %35, %37 : vector<4x2048xf32>
    %c20 = arith.constant 20 : index
    %c0_22 = arith.constant 0 : index
    %39 = vector.load %arg9[%c20, %c0_22] : memref<128x2048xf32, #tpu.memory_space<vmem>>, vector<4x2048xf32>
    tpu.vector_store %arg9[%c20, %c0_22], %38 {strides = array<i32>} : memref<128x2048xf32, #tpu.memory_space<vmem>>, vector<4x2048xf32>,
    %c241_i32 = arith.constant 241 : i32
    %40 = tpu.dynamic_rotate %7 by %c241_i32 dim 1 : vector<4x2048xf32>, i32 -> vector<4x2048xf32>
    %c6 = arith.constant 6 : index
    %c0_23 = arith.constant 0 : index
    %41 = vector.load %arg1[%c6, %c0_23] : memref<27x2048xf32, #tpu.memory_space<vmem>>, vector<1x2048xf32>
    %42 = vector.broadcast %41 : vector<1x2048xf32> to vector<4x2048xf32>
    %43 = arith.mulf %40, %42 : vector<4x2048xf32>
    %c24 = arith.constant 24 : index
    %c0_24 = arith.constant 0 : index
    %44 = vector.load %arg9[%c24, %c0_24] : memref<128x2048xf32, #tpu.memory_space<vmem>>, vector<4x2048xf32>
    tpu.vector_store %arg9[%c24, %c0_24], %43 {strides = array<i32>} : memref<128x2048xf32, #tpu.memory_space<vmem>>, vector<4x2048xf32>,
    %c240_i32 = arith.constant 240 : i32
    %45 = tpu.dynamic_rotate %7 by %c240_i32 dim 1 : vector<4x2048xf32>, i32 -> vector<4x2048xf32>
    %c7 = arith.constant 7 : index
    %c0_25 = arith.constant 0 : index
    %46 = vector.load %arg1[%c7, %c0_25] : memref<27x2048xf32, #tpu.memory_space<vmem>>, vector<1x2048xf32>
    %47 = vector.broadcast %46 : vector<1x2048xf32> to vector<4x2048xf32>
    %48 = arith.mulf %45, %47 : vector<4x2048xf32>
    %c28 = arith.constant 28 : index
    %c0_26 = arith.constant 0 : index
    %49 = vector.load %arg9[%c28, %c0_26] : memref<128x2048xf32, #tpu.memory_space<vmem>>, vector<4x2048xf32>
    tpu.vector_store %arg9[%c28, %c0_26], %48 {strides = array<i32>} : memref<128x2048xf32, #tpu.memory_space<vmem>>, vector<4x2048xf32>,
    %c239_i32 = arith.constant 239 : i32
    %50 = tpu.dynamic_rotate %7 by %c239_i32 dim 1 : vector<4x2048xf32>, i32 -> vector<4x2048xf32>
    %c8_27 = arith.constant 8 : index
    %c0_28 = arith.constant 0 : index
    %51 = vector.load %arg1[%c8_27, %c0_28] : memref<27x2048xf32, #tpu.memory_space<vmem>>, vector<1x2048xf32>
    %52 = vector.broadcast %51 : vector<1x2048xf32> to vector<4x2048xf32>
    %53 = arith.mulf %50, %52 : vector<4x2048xf32>
    %c32 = arith.constant 32 : index
    %c0_29 = arith.constant 0 : index
    %54 = vector.load %arg9[%c32, %c0_29] : memref<128x2048xf32, #tpu.memory_space<vmem>>, vector<4x2048xf32>
    tpu.vector_store %arg9[%c32, %c0_29], %53 {strides = array<i32>} : memref<128x2048xf32, #tpu.memory_space<vmem>>, vector<4x2048xf32>,
    %c17_i32 = arith.constant 17 : i32
    %55 = tpu.dynamic_rotate %7 by %c17_i32 dim 1 : vector<4x2048xf32>, i32 -> vector<4x2048xf32>
    %c9 = arith.constant 9 : index
    %c0_30 = arith.constant 0 : index
    %56 = vector.load %arg1[%c9, %c0_30] : memref<27x2048xf32, #tpu.memory_space<vmem>>, vector<1x2048xf32>
    %57 = vector.broadcast %56 : vector<1x2048xf32> to vector<4x2048xf32>
    %58 = arith.mulf %55, %57 : vector<4x2048xf32>
    %c36 = arith.constant 36 : index
    %c0_31 = arith.constant 0 : index
    %59 = vector.load %arg9[%c36, %c0_31] : memref<128x2048xf32, #tpu.memory_space<vmem>>, vector<4x2048xf32>
    tpu.vector_store %arg9[%c36, %c0_31], %58 {strides = array<i32>} : memref<128x2048xf32, #tpu.memory_space<vmem>>, vector<4x2048xf32>,
    %c16_i32 = arith.constant 16 : i32
    %60 = tpu.dynamic_rotate %7 by %c16_i32 dim 1 : vector<4x2048xf32>, i32 -> vector<4x2048xf32>
    %c10 = arith.constant 10 : index
    %c0_32 = arith.constant 0 : index
    %61 = vector.load %arg1[%c10, %c0_32] : memref<27x2048xf32, #tpu.memory_space<vmem>>, vector<1x2048xf32>
    %62 = vector.broadcast %61 : vector<1x2048xf32> to vector<4x2048xf32>
    %63 = arith.mulf %60, %62 : vector<4x2048xf32>
    %c40 = arith.constant 40 : index
    %c0_33 = arith.constant 0 : index
    %64 = vector.load %arg9[%c40, %c0_33] : memref<128x2048xf32, #tpu.memory_space<vmem>>, vector<4x2048xf32>
    tpu.vector_store %arg9[%c40, %c0_33], %63 {strides = array<i32>} : memref<128x2048xf32, #tpu.memory_space<vmem>>, vector<4x2048xf32>,
    %c15_i32 = arith.constant 15 : i32
    %65 = tpu.dynamic_rotate %7 by %c15_i32 dim 1 : vector<4x2048xf32>, i32 -> vector<4x2048xf32>
    %c11 = arith.constant 11 : index
    %c0_34 = arith.constant 0 : index
    %66 = vector.load %arg1[%c11, %c0_34] : memref<27x2048xf32, #tpu.memory_space<vmem>>, vector<1x2048xf32>
    %67 = vector.broadcast %66 : vector<1x2048xf32> to vector<4x2048xf32>
    %68 = arith.mulf %65, %67 : vector<4x2048xf32>
    %c44 = arith.constant 44 : index
    %c0_35 = arith.constant 0 : index
    %69 = vector.load %arg9[%c44, %c0_35] : memref<128x2048xf32, #tpu.memory_space<vmem>>, vector<4x2048xf32>
    tpu.vector_store %arg9[%c44, %c0_35], %68 {strides = array<i32>} : memref<128x2048xf32, #tpu.memory_space<vmem>>, vector<4x2048xf32>,
    %c1_i32 = arith.constant 1 : i32
    %70 = tpu.dynamic_rotate %7 by %c1_i32 dim 1 : vector<4x2048xf32>, i32 -> vector<4x2048xf32>
    %c12_36 = arith.constant 12 : index
    %c0_37 = arith.constant 0 : index
    %71 = vector.load %arg1[%c12_36, %c0_37] : memref<27x2048xf32, #tpu.memory_space<vmem>>, vector<1x2048xf32>
    %72 = vector.broadcast %71 : vector<1x2048xf32> to vector<4x2048xf32>
    %73 = arith.mulf %70, %72 : vector<4x2048xf32>
    %c48 = arith.constant 48 : index
    %c0_38 = arith.constant 0 : index
    %74 = vector.load %arg9[%c48, %c0_38] : memref<128x2048xf32, #tpu.memory_space<vmem>>, vector<4x2048xf32>
    tpu.vector_store %arg9[%c48, %c0_38], %73 {strides = array<i32>} : memref<128x2048xf32, #tpu.memory_space<vmem>>, vector<4x2048xf32>,
    %c13 = arith.constant 13 : index
    %c0_39 = arith.constant 0 : index
    %75 = vector.load %arg1[%c13, %c0_39] : memref<27x2048xf32, #tpu.memory_space<vmem>>, vector<1x2048xf32>
    %76 = vector.broadcast %75 : vector<1x2048xf32> to vector<4x2048xf32>
    %77 = arith.mulf %7, %76 : vector<4x2048xf32>
    %c52 = arith.constant 52 : index
    %c0_40 = arith.constant 0 : index
    %78 = vector.load %arg9[%c52, %c0_40] : memref<128x2048xf32, #tpu.memory_space<vmem>>, vector<4x2048xf32>
    tpu.vector_store %arg9[%c52, %c0_40], %77 {strides = array<i32>} : memref<128x2048xf32, #tpu.memory_space<vmem>>, vector<4x2048xf32>,
    %c2047_i32 = arith.constant 2047 : i32
    %79 = tpu.dynamic_rotate %7 by %c2047_i32 dim 1 : vector<4x2048xf32>, i32 -> vector<4x2048xf32>
    %c14 = arith.constant 14 : index
    %c0_41 = arith.constant 0 : index
    %80 = vector.load %arg1[%c14, %c0_41] : memref<27x2048xf32, #tpu.memory_space<vmem>>, vector<1x2048xf32>
    %81 = vector.broadcast %80 : vector<1x2048xf32> to vector<4x2048xf32>
    %82 = arith.mulf %79, %81 : vector<4x2048xf32>
    %c56 = arith.constant 56 : index
    %c0_42 = arith.constant 0 : index
    %83 = vector.load %arg9[%c56, %c0_42] : memref<128x2048xf32, #tpu.memory_space<vmem>>, vector<4x2048xf32>
    tpu.vector_store %arg9[%c56, %c0_42], %82 {strides = array<i32>} : memref<128x2048xf32, #tpu.memory_space<vmem>>, vector<4x2048xf32>,
    %c2033_i32 = arith.constant 2033 : i32
    %84 = tpu.dynamic_rotate %7 by %c2033_i32 dim 1 : vector<4x2048xf32>, i32 -> vector<4x2048xf32>
    %c15 = arith.constant 15 : index
    %c0_43 = arith.constant 0 : index
    %85 = vector.load %arg1[%c15, %c0_43] : memref<27x2048xf32, #tpu.memory_space<vmem>>, vector<1x2048xf32>
    %86 = vector.broadcast %85 : vector<1x2048xf32> to vector<4x2048xf32>
    %87 = arith.mulf %84, %86 : vector<4x2048xf32>
    %c60 = arith.constant 60 : index
    %c0_44 = arith.constant 0 : index
    %88 = vector.load %arg9[%c60, %c0_44] : memref<128x2048xf32, #tpu.memory_space<vmem>>, vector<4x2048xf32>
    tpu.vector_store %arg9[%c60, %c0_44], %87 {strides = array<i32>} : memref<128x2048xf32, #tpu.memory_space<vmem>>, vector<4x2048xf32>,
    %c2032_i32 = arith.constant 2032 : i32
    %89 = tpu.dynamic_rotate %7 by %c2032_i32 dim 1 : vector<4x2048xf32>, i32 -> vector<4x2048xf32>
    %c16_45 = arith.constant 16 : index
    %c0_46 = arith.constant 0 : index
    %90 = vector.load %arg1[%c16_45, %c0_46] : memref<27x2048xf32, #tpu.memory_space<vmem>>, vector<1x2048xf32>
    %91 = vector.broadcast %90 : vector<1x2048xf32> to vector<4x2048xf32>
    %92 = arith.mulf %89, %91 : vector<4x2048xf32>
    %c64 = arith.constant 64 : index
    %c0_47 = arith.constant 0 : index
    %93 = vector.load %arg9[%c64, %c0_47] : memref<128x2048xf32, #tpu.memory_space<vmem>>, vector<4x2048xf32>
    tpu.vector_store %arg9[%c64, %c0_47], %92 {strides = array<i32>} : memref<128x2048xf32, #tpu.memory_space<vmem>>, vector<4x2048xf32>,
    %c2031_i32 = arith.constant 2031 : i32
    %94 = tpu.dynamic_rotate %7 by %c2031_i32 dim 1 : vector<4x2048xf32>, i32 -> vector<4x2048xf32>
    %c17 = arith.constant 17 : index
    %c0_48 = arith.constant 0 : index
    %95 = vector.load %arg1[%c17, %c0_48] : memref<27x2048xf32, #tpu.memory_space<vmem>>, vector<1x2048xf32>
    %96 = vector.broadcast %95 : vector<1x2048xf32> to vector<4x2048xf32>
    %97 = arith.mulf %94, %96 : vector<4x2048xf32>
    %c68 = arith.constant 68 : index
    %c0_49 = arith.constant 0 : index
    %98 = vector.load %arg9[%c68, %c0_49] : memref<128x2048xf32, #tpu.memory_space<vmem>>, vector<4x2048xf32>
    tpu.vector_store %arg9[%c68, %c0_49], %97 {strides = array<i32>} : memref<128x2048xf32, #tpu.memory_space<vmem>>, vector<4x2048xf32>,
    %c1809_i32 = arith.constant 1809 : i32
    %99 = tpu.dynamic_rotate %7 by %c1809_i32 dim 1 : vector<4x2048xf32>, i32 -> vector<4x2048xf32>
    %c18 = arith.constant 18 : index
    %c0_50 = arith.constant 0 : index
    %100 = vector.load %arg1[%c18, %c0_50] : memref<27x2048xf32, #tpu.memory_space<vmem>>, vector<1x2048xf32>
    %101 = vector.broadcast %100 : vector<1x2048xf32> to vector<4x2048xf32>
    %102 = arith.mulf %99, %101 : vector<4x2048xf32>
    %c72 = arith.constant 72 : index
    %c0_51 = arith.constant 0 : index
    %103 = vector.load %arg9[%c72, %c0_51] : memref<128x2048xf32, #tpu.memory_space<vmem>>, vector<4x2048xf32>
    tpu.vector_store %arg9[%c72, %c0_51], %102 {strides = array<i32>} : memref<128x2048xf32, #tpu.memory_space<vmem>>, vector<4x2048xf32>,
    %c1808_i32 = arith.constant 1808 : i32
    %104 = tpu.dynamic_rotate %7 by %c1808_i32 dim 1 : vector<4x2048xf32>, i32 -> vector<4x2048xf32>
    %c19 = arith.constant 19 : index
    %c0_52 = arith.constant 0 : index
    %105 = vector.load %arg1[%c19, %c0_52] : memref<27x2048xf32, #tpu.memory_space<vmem>>, vector<1x2048xf32>
    %106 = vector.broadcast %105 : vector<1x2048xf32> to vector<4x2048xf32>
    %107 = arith.mulf %104, %106 : vector<4x2048xf32>
    %c76 = arith.constant 76 : index
    %c0_53 = arith.constant 0 : index
    %108 = vector.load %arg9[%c76, %c0_53] : memref<128x2048xf32, #tpu.memory_space<vmem>>, vector<4x2048xf32>
    tpu.vector_store %arg9[%c76, %c0_53], %107 {strides = array<i32>} : memref<128x2048xf32, #tpu.memory_space<vmem>>, vector<4x2048xf32>,
    %c1807_i32 = arith.constant 1807 : i32
    %109 = tpu.dynamic_rotate %7 by %c1807_i32 dim 1 : vector<4x2048xf32>, i32 -> vector<4x2048xf32>
    %c20_54 = arith.constant 20 : index
    %c0_55 = arith.constant 0 : index
    %110 = vector.load %arg1[%c20_54, %c0_55] : memref<27x2048xf32, #tpu.memory_space<vmem>>, vector<1x2048xf32>
    %111 = vector.broadcast %110 : vector<1x2048xf32> to vector<4x2048xf32>
    %112 = arith.mulf %109, %111 : vector<4x2048xf32>
    %c80 = arith.constant 80 : index
    %c0_56 = arith.constant 0 : index
    %113 = vector.load %arg9[%c80, %c0_56] : memref<128x2048xf32, #tpu.memory_space<vmem>>, vector<4x2048xf32>
    tpu.vector_store %arg9[%c80, %c0_56], %112 {strides = array<i32>} : memref<128x2048xf32, #tpu.memory_space<vmem>>, vector<4x2048xf32>,
    %c1793_i32 = arith.constant 1793 : i32
    %114 = tpu.dynamic_rotate %7 by %c1793_i32 dim 1 : vector<4x2048xf32>, i32 -> vector<4x2048xf32>
    %c21 = arith.constant 21 : index
    %c0_57 = arith.constant 0 : index
    %115 = vector.load %arg1[%c21, %c0_57] : memref<27x2048xf32, #tpu.memory_space<vmem>>, vector<1x2048xf32>
    %116 = vector.broadcast %115 : vector<1x2048xf32> to vector<4x2048xf32>
    %117 = arith.mulf %114, %116 : vector<4x2048xf32>
    %c84 = arith.constant 84 : index
    %c0_58 = arith.constant 0 : index
    %118 = vector.load %arg9[%c84, %c0_58] : memref<128x2048xf32, #tpu.memory_space<vmem>>, vector<4x2048xf32>
    tpu.vector_store %arg9[%c84, %c0_58], %117 {strides = array<i32>} : memref<128x2048xf32, #tpu.memory_space<vmem>>, vector<4x2048xf32>,
    %c1792_i32 = arith.constant 1792 : i32
    %119 = tpu.dynamic_rotate %7 by %c1792_i32 dim 1 : vector<4x2048xf32>, i32 -> vector<4x2048xf32>
    %c22 = arith.constant 22 : index
    %c0_59 = arith.constant 0 : index
    %120 = vector.load %arg1[%c22, %c0_59] : memref<27x2048xf32, #tpu.memory_space<vmem>>, vector<1x2048xf32>
    %121 = vector.broadcast %120 : vector<1x2048xf32> to vector<4x2048xf32>
    %122 = arith.mulf %119, %121 : vector<4x2048xf32>
    %c88 = arith.constant 88 : index
    %c0_60 = arith.constant 0 : index
    %123 = vector.load %arg9[%c88, %c0_60] : memref<128x2048xf32, #tpu.memory_space<vmem>>, vector<4x2048xf32>
    tpu.vector_store %arg9[%c88, %c0_60], %122 {strides = array<i32>} : memref<128x2048xf32, #tpu.memory_space<vmem>>, vector<4x2048xf32>,
    %c1791_i32 = arith.constant 1791 : i32
    %124 = tpu.dynamic_rotate %7 by %c1791_i32 dim 1 : vector<4x2048xf32>, i32 -> vector<4x2048xf32>
    %c23 = arith.constant 23 : index
    %c0_61 = arith.constant 0 : index
    %125 = vector.load %arg1[%c23, %c0_61] : memref<27x2048xf32, #tpu.memory_space<vmem>>, vector<1x2048xf32>
    %126 = vector.broadcast %125 : vector<1x2048xf32> to vector<4x2048xf32>
    %127 = arith.mulf %124, %126 : vector<4x2048xf32>
    %c92 = arith.constant 92 : index
    %c0_62 = arith.constant 0 : index
    %128 = vector.load %arg9[%c92, %c0_62] : memref<128x2048xf32, #tpu.memory_space<vmem>>, vector<4x2048xf32>
    tpu.vector_store %arg9[%c92, %c0_62], %127 {strides = array<i32>} : memref<128x2048xf32, #tpu.memory_space<vmem>>, vector<4x2048xf32>,
    %c1777_i32 = arith.constant 1777 : i32
    %129 = tpu.dynamic_rotate %7 by %c1777_i32 dim 1 : vector<4x2048xf32>, i32 -> vector<4x2048xf32>
    %c24_63 = arith.constant 24 : index
    %c0_64 = arith.constant 0 : index
    %130 = vector.load %arg1[%c24_63, %c0_64] : memref<27x2048xf32, #tpu.memory_space<vmem>>, vector<1x2048xf32>
    %131 = vector.broadcast %130 : vector<1x2048xf32> to vector<4x2048xf32>
    %132 = arith.mulf %129, %131 : vector<4x2048xf32>
    %c96 = arith.constant 96 : index
    %c0_65 = arith.constant 0 : index
    %133 = vector.load %arg9[%c96, %c0_65] : memref<128x2048xf32, #tpu.memory_space<vmem>>, vector<4x2048xf32>
    tpu.vector_store %arg9[%c96, %c0_65], %132 {strides = array<i32>} : memref<128x2048xf32, #tpu.memory_space<vmem>>, vector<4x2048xf32>,
    %c1776_i32 = arith.constant 1776 : i32
    %134 = tpu.dynamic_rotate %7 by %c1776_i32 dim 1 : vector<4x2048xf32>, i32 -> vector<4x2048xf32>
    %c25 = arith.constant 25 : index
    %c0_66 = arith.constant 0 : index
    %135 = vector.load %arg1[%c25, %c0_66] : memref<27x2048xf32, #tpu.memory_space<vmem>>, vector<1x2048xf32>
    %136 = vector.broadcast %135 : vector<1x2048xf32> to vector<4x2048xf32>
    %137 = arith.mulf %134, %136 : vector<4x2048xf32>
    %c100 = arith.constant 100 : index
    %c0_67 = arith.constant 0 : index
    %138 = vector.load %arg9[%c100, %c0_67] : memref<128x2048xf32, #tpu.memory_space<vmem>>, vector<4x2048xf32>
    tpu.vector_store %arg9[%c100, %c0_67], %137 {strides = array<i32>} : memref<128x2048xf32, #tpu.memory_space<vmem>>, vector<4x2048xf32>,
    %c1775_i32 = arith.constant 1775 : i32
    %139 = tpu.dynamic_rotate %7 by %c1775_i32 dim 1 : vector<4x2048xf32>, i32 -> vector<4x2048xf32>
    %c26 = arith.constant 26 : index
    %c0_68 = arith.constant 0 : index
    %140 = vector.load %arg1[%c26, %c0_68] : memref<27x2048xf32, #tpu.memory_space<vmem>>, vector<1x2048xf32>
    %141 = vector.broadcast %140 : vector<1x2048xf32> to vector<4x2048xf32>
    %142 = arith.mulf %139, %141 : vector<4x2048xf32>
    %c104 = arith.constant 104 : index
    %c0_69 = arith.constant 0 : index
    %143 = vector.load %arg9[%c104, %c0_69] : memref<128x2048xf32, #tpu.memory_space<vmem>>, vector<4x2048xf32>
    tpu.vector_store %arg9[%c104, %c0_69], %142 {strides = array<i32>} : memref<128x2048xf32, #tpu.memory_space<vmem>>, vector<4x2048xf32>,
    %c0_70 = arith.constant 0 : index
    %c0_71 = arith.constant 0 : index
    %144 = vector.load %arg4[%c0_70, %c0_71] : memref<4x128xf32, #tpu.memory_space<vmem>>, vector<4x128xf32>
    %c0_72 = arith.constant 0 : index
    %c0_73 = arith.constant 0 : index
    %145 = vector.load %arg9[%c0_72, %c0_73] : memref<128x2048xf32, #tpu.memory_space<vmem>>, vector<128x2048xf32>
    %cst_74 = arith.constant dense<0.000000e+00> : vector<4x2048xf32>
    %146 = tpu.matmul %144, %145, %cst_74 {dimension_numbers = #tpu.dot_dimension_numbers<[1], [0], [0], [1], [0, 0, 1, 1], [], []>} : vector<4x128xf32>, vector<128x2048xf32>, vector<4x2048xf32> -> vector<4x2048xf32>
    %c0_75 = arith.constant 0 : index
    %c0_76 = arith.constant 0 : index
    %147 = vector.load %arg5[%c0_75, %c0_76] : memref<4x1xf32, #tpu.memory_space<vmem>>, vector<4x1xf32>
    %148 = vector.broadcast %147 : vector<4x1xf32> to vector<4x2048xf32>
    %149 = arith.addf %146, %148 : vector<4x2048xf32>
    %cst_77 = arith.constant 0.000000e+00 : f32
    %150 = vector.broadcast %cst_77 : f32 to vector<4x2048xf32>
    %151 = arith.maximumf %149, %150 : vector<4x2048xf32>
    %152 = tpu.concatenate %151, %0 in 0 : vector<4x2048xf32>, vector<4x2048xf32> -> vector<8x2048xf32>
    %c0_78 = arith.constant 0 : index
    %c0_79 = arith.constant 0 : index
    %153 = vector.load %arg6[%c0_78, %c0_79] : memref<8x8xf32, #tpu.memory_space<vmem>>, vector<8x8xf32>
    %cst_80 = arith.constant dense<0.000000e+00> : vector<8x2048xf32>
    %154 = tpu.matmul %153, %152, %cst_80 {dimension_numbers = #tpu.dot_dimension_numbers<[1], [0], [0], [1], [0, 0, 1, 1], [], []>} : vector<8x8xf32>, vector<8x2048xf32>, vector<8x2048xf32> -> vector<8x2048xf32>
    %c0_81 = arith.constant 0 : index
    %c0_82 = arith.constant 0 : index
    %155 = vector.load %arg7[%c0_81, %c0_82] : memref<8x1xf32, #tpu.memory_space<vmem>>, vector<8x1xf32>
    %156 = vector.broadcast %155 : vector<8x1xf32> to vector<8x2048xf32>
    %157 = arith.addf %154, %156 : vector<8x2048xf32>
    %cst_83 = arith.constant 0.000000e+00 : f32
    %158 = vector.broadcast %cst_83 : f32 to vector<8x2048xf32>
    %159 = arith.maximumf %157, %158 : vector<8x2048xf32>
    %c0_84 = arith.constant 0 : index
    %c0_85 = arith.constant 0 : index
    %160 = vector.load %arg8[%c0_84, %c0_85] : memref<8x2048xf32, #tpu.memory_space<vmem>>, vector<8x2048xf32>
    tpu.vector_store %arg8[%c0_84, %c0_85], %159 {strides = array<i32>} : memref<8x2048xf32, #tpu.memory_space<vmem>>, vector<8x2048xf32>,
    return
  }
}

</mosaic_0001>

<llo_original>
// kernel: tpu_custom_call.1
$region0: #{tpu_custom_call.1}
  #allocation0 [shape = 'u32[]', space=smem, size = 0x4, offset = 0x4, fixed_abs, tag = 'smem constant byte address 0x4 - core index']
  #allocation1 [shape = 'u32[72,128]{1,0:T(1,128)}', space=vmem, size = 0x9000, scoped, tag = 'internal scratch']
  #allocation2 [shape = 'f32[128,2048]{1,0:T(8,128)}', space=vmem, size = 0x100000, scoped, tag = 'scratch operand']
  %s0 = inlined_call_operand.hbm [shape: f32[4,2048], index: 0, kind: input, shape index: {}]
  %s1 = inlined_call_operand.hbm [shape: f32[27,2048], index: 1, kind: input, shape index: {}]
  %s2 = inlined_call_operand.vmem [shape: f32[4,4], index: 2, kind: input, shape index: {}]
  %s3 = inlined_call_operand.vmem [shape: f32[4,1], index: 3, kind: input, shape index: {}]
  %s4 = inlined_call_operand.vmem [shape: f32[4,128], index: 4, kind: input, shape index: {}]
  %s5 = inlined_call_operand.vmem [shape: f32[4,1], index: 5, kind: input, shape index: {}]
  %s6 = inlined_call_operand.vmem [shape: f32[8,8], index: 6, kind: input, shape index: {}]
  %s7 = inlined_call_operand.vmem [shape: f32[8,1], index: 7, kind: input, shape index: {}]
  %s8 = inlined_call_operand.hbm [shape: f32[8,2048], index: 8, kind: output, shape index: {}]
  %s9 = sld [smem:[#allocation0]]
  $region50: #{tpu_custom_call.1} parent=0
    _
  %s11 = ssub.s32 1, %s9
  %s12 = scalar_select 0, %s11, %s9
  $region1: #{tpu_custom_call.1} parent=0
    #allocation3 [shape = 'u8[32768]{0}', space=vmem, size = 0x8000, scoped, tag = 'input window, operand 0, single buffered']
    #allocation4 [shape = 's32[1]{0}', space=sflag, size = 0x4, scoped, tag = 'scoped memory for tpu_custom_call.1']
    #allocation5 [shape = 's32[1]{0}', space=sflag, size = 0x4, scoped, tag = 'scoped memory for tpu_custom_call.1']
    #allocation6 [shape = 'u8[262144]{0}', space=vmem, size = 0x40000, scoped, tag = 'input window, operand 1, single buffered']
    #allocation7 [shape = 's32[1]{0}', space=sflag, size = 0x4, scoped, tag = 'scoped memory for tpu_custom_call.1']
    #allocation8 [shape = 'u8[65536]{0}', space=vmem, size = 0x10000, scoped, tag = 'output window, operand 0, single buffered']
    %13 = vsyncpa [#allocation4], 0
    %14 = vsyncpa [#allocation7], 0
    %15 = vsyncpa [#allocation5], 0
    // Predicated region
    $region2: #{tpu_custom_call.1} parent=1 // pred_check
      _
    $region3: #{tpu_custom_call.1} parent=1 // pred_check_branch
      %17 = sbr.rel (0) target = $region5
    $region4: #{tpu_custom_call.1} parent=1 // pred_region
      %19 = vsyncadd [#allocation4], 0
      %s21 = sshll.u32 %s0, 4
      %s22 = int_to_ptr.hbm [resolvable:$true] %s21
      %s23 = sshll.u32 [#allocation3], 4
      %s24 = int_to_ptr.vmem [resolvable:$true] %s23
      %26 = dma.hbm_to_vmem [thread:$0]  %s22, 1024, %s24, [#allocation4]
    $region5: #{tpu_custom_call.1} parent=1 // pred_fallthru
      _
    // Predicated region
    $region6: #{tpu_custom_call.1} parent=1 // pred_check
      _
    $region7: #{tpu_custom_call.1} parent=1 // pred_check_branch
      %28 = sbr.rel (0) target = $region9
    $region8: #{tpu_custom_call.1} parent=1 // pred_region
      %30 = vsyncadd [#allocation7], 0
      %s31 = sshll.u32 %s1, 4
      %s32 = int_to_ptr.hbm [resolvable:$true] %s31
      %s33 = sshll.u32 [#allocation6], 4
      %s34 = int_to_ptr.vmem [resolvable:$true] %s33
      %39 = dma.hbm_to_vmem [thread:$0]  %s32, 8192, %s34, [#allocation7], 2048, 2048, 128
    $region9: #{tpu_custom_call.1} parent=1 // pred_fallthru
      _
    // Predicated region
    $region10: #{tpu_custom_call.1} parent=1 // pred_check
      _
    $region11: #{tpu_custom_call.1} parent=1 // pred_check_branch
      %41 = sbr.rel (0) target = $region13
    $region12: #{tpu_custom_call.1} parent=1 // pred_region
      _
    $region13: #{tpu_custom_call.1} parent=1 // pred_fallthru
      _
    // Predicated region
    $region14: #{tpu_custom_call.1} parent=1 // pred_check
      _
    $region15: #{tpu_custom_call.1} parent=1 // pred_check_branch
      %43 = sbr.rel (0) target = $region17
    $region16: #{tpu_custom_call.1} parent=1 // pred_region
      _
    $region17: #{tpu_custom_call.1} parent=1 // pred_fallthru
      _
    // Predicated region
    $region18: #{tpu_custom_call.1} parent=1 // pred_check
      _
    $region19: #{tpu_custom_call.1} parent=1 // pred_check_branch
      %45 = sbr.rel (0) target = $region21
    $region20: #{tpu_custom_call.1} parent=1 // pred_region
      _
    $region21: #{tpu_custom_call.1} parent=1 // pred_fallthru
      _
    // Predicated region
    $region22: #{tpu_custom_call.1} parent=1 // pred_check
      _
    $region23: #{tpu_custom_call.1} parent=1 // pred_check_branch
      %47 = sbr.rel (0) target = $region25
    $region24: #{tpu_custom_call.1} parent=1 // pred_region
      _
    $region25: #{tpu_custom_call.1} parent=1 // pred_fallthru
      _
    // Predicated region
    $region26: #{tpu_custom_call.1} parent=1 // pred_check
      _
    $region27: #{tpu_custom_call.1} parent=1 // pred_check_branch
      %49 = sbr.rel (0) target = $region29
    $region28: #{tpu_custom_call.1} parent=1 // pred_region
      _
    $region29: #{tpu_custom_call.1} parent=1 // pred_fallthru
      _
    // Predicated region
    $region30: #{tpu_custom_call.1} parent=1 // pred_check
      _
    $region31: #{tpu_custom_call.1} parent=1 // pred_check_branch
      %51 = sbr.rel (0) target = $region33
    $region32: #{tpu_custom_call.1} parent=1 // pred_region
      _
    $region33: #{tpu_custom_call.1} parent=1 // pred_fallthru
      _
    // Predicated region
    $region34: #{tpu_custom_call.1} parent=1 // pred_check
      _
    $region35: #{tpu_custom_call.1} parent=1 // pred_check_branch
      %53 = sbr.rel (0) target = $region37
    $region36: #{tpu_custom_call.1} parent=1 // pred_region
      %55 = dma.done [#allocation4], 1024
    $region37: #{tpu_custom_call.1} parent=1 // pred_fallthru
      _
    // Predicated region
    $region38: #{tpu_custom_call.1} parent=1 // pred_check
      _
    $region39: #{tpu_custom_call.1} parent=1 // pred_check_branch
      %57 = sbr.rel (0) target = $region41
    $region40: #{tpu_custom_call.1} parent=1 // pred_region
      %59 = dma.done [#allocation7], 8192
    $region41: #{tpu_custom_call.1} parent=1 // pred_fallthru
      _
    %v60 = vld [vmem:[#allocation3] sm:$0xff]
    %v61 = vld [vmem:[#allocation3 + $0x8] sm:$0xff]
    %v62 = vld [vmem:[#allocation3 + $0x10] sm:$0xff]
    %v63 = vld [vmem:[#allocation3 + $0x18] sm:$0xff]
    %v64 = vld [vmem:[#allocation3 + $0x20] sm:$0xff]
    %v65 = vld [vmem:[#allocation3 + $0x28] sm:$0xff]
    %v66 = vld [vmem:[#allocation3 + $0x30] sm:$0xff]
    %v67 = vld [vmem:[#allocation3 + $0x38] sm:$0xff]
    %v68 = vld [vmem:[%s2] sm:$0xf]
    %v69 = vld [vmem:[%s3] sm:$0xf]
    %71 = vset.pattern.permute.xlu0 0
    %72 = vperm.xlu0 %71, %v69
    %v73 = vpop.permute.xlu0 %72
    %83 = vst [vmem:[#allocation1] ss:$2 sm:$0xff] %v60
    %s84 = scalar_lea.vmem [#allocation1], 16
    %85 = vst [vmem:[%s84] ss:$2 sm:$0xff] %v61
    %s86 = scalar_lea.vmem [#allocation1], 32
    %87 = vst [vmem:[%s86] ss:$2 sm:$0xff] %v62
    %s88 = scalar_lea.vmem [#allocation1], 48
    %89 = vst [vmem:[%s88] ss:$2 sm:$0xff] %v63
    %v90 = vld.sshfl [vmem:[#allocation1] sm:$0xff pattern:$0x75316420]
    %v91 = vld.sshfl [vmem:[#allocation1 + $0x8] sm:$0xff pattern:$0x75316420]
    %v92 = vld.sshfl [vmem:[#allocation1 + $0x10] sm:$0xff pattern:$0x75316420]
    %v93 = vld.sshfl [vmem:[#allocation1 + $0x18] sm:$0xff pattern:$0x75316420]
    %v94 = vld.sshfl [vmem:[#allocation1 + $0x20] sm:$0xff pattern:$0x75316420]
    %v95 = vld.sshfl [vmem:[#allocation1 + $0x28] sm:$0xff pattern:$0x75316420]
    %v96 = vld.sshfl [vmem:[#allocation1 + $0x30] sm:$0xff pattern:$0x75316420]
    %v97 = vld.sshfl [vmem:[#allocation1 + $0x38] sm:$0xff pattern:$0x75316420]
    %98 = vst [vmem:[#allocation1] ss:$2 sm:$0xff] %v64
    %99 = vst [vmem:[%s84] ss:$2 sm:$0xff] %v65
    %100 = vst [vmem:[%s86] ss:$2 sm:$0xff] %v66
    %101 = vst [vmem:[%s88] ss:$2 sm:$0xff] %v67
    %v102 = vld.sshfl [vmem:[#allocation1] sm:$0xff pattern:$0x75316420]
    %v103 = vld.sshfl [vmem:[#allocation1 + $0x8] sm:$0xff pattern:$0x75316420]
    %v104 = vld.sshfl [vmem:[#allocation1 + $0x10] sm:$0xff pattern:$0x75316420]
    %v105 = vld.sshfl [vmem:[#allocation1 + $0x18] sm:$0xff pattern:$0x75316420]
    %v106 = vld.sshfl [vmem:[#allocation1 + $0x20] sm:$0xff pattern:$0x75316420]
    %v107 = vld.sshfl [vmem:[#allocation1 + $0x28] sm:$0xff pattern:$0x75316420]
    %v108 = vld.sshfl [vmem:[#allocation1 + $0x30] sm:$0xff pattern:$0x75316420]
    %v109 = vld.sshfl [vmem:[#allocation1 + $0x38] sm:$0xff pattern:$0x75316420]
    %vm110 = vcmask 31744
    %v112 = vsel %vm110, %v68, 0
    %vm114 = vcmask 1043456
    %v115 = vsel %vm114, %v90, 0
    %v117 = vsel %vm114, %v91, 0
    %v119 = vsel %vm114, %v92, 0
    %v121 = vsel %vm114, %v93, 0
    %v123 = vsel %vm114, %v94, 0
    %v125 = vsel %vm114, %v95, 0
    %v127 = vsel %vm114, %v96, 0
    %v129 = vsel %vm114, %v97, 0
    %v131 = vsel %vm114, %v102, 0
    %v133 = vsel %vm114, %v103, 0
    %v135 = vsel %vm114, %v104, 0
    %v137 = vsel %vm114, %v105, 0
    %v139 = vsel %vm114, %v106, 0
    %v141 = vsel %vm114, %v107, 0
    %v143 = vsel %vm114, %v108, 0
    %v145 = vsel %vm114, %v109, 0
    %147 = vmatpush.msra.mxu0 0.0
    %148 = vmatpush.msra.mxu0 0.0
    %149 = vmatpush.msra.mxu0 0.0
    %150 = vmatpush.msra.mxu0 0.0
    %151 = vmatpush.msra.mxu0 0.0
    %152 = vmatpush.msra.mxu0 0.0
    %153 = vmatpush.msra.mxu0 0.0
    %154 = vmatpush.msra.mxu0 0.0
    %155 = vmatpush.msra.mxu0 0.0
    %156 = vmatpush.msra.mxu0 0.0
    %157 = vmatpush.msra.mxu0 0.0
    %158 = vmatpush.msra.mxu0 0.0
    %159 = vmatpush.msra.mxu0 0.0
    %160 = vmatpush.msra.mxu0 0.0
    %161 = vmatpush.msra.mxu0 0.0
    %162 = vmatpush.msra.mxu0 %v115
    %163 = vmatmul.f32.gmra.mxu0 %v112
    %v164 = vpop.f32.mrf.mxu0
    %v165 = vadd.f32 %v73, %v164
    %166 = vdwg.mxu0
    %167 = vmatpush.msra.mxu0 0.0
    %168 = vmatpush.msra.mxu0 0.0
    %169 = vmatpush.msra.mxu0 0.0
    %170 = vmatpush.msra.mxu0 0.0
    %171 = vmatpush.msra.mxu0 0.0
    %172 = vmatpush.msra.mxu0 0.0
    %173 = vmatpush.msra.mxu0 0.0
    %174 = vmatpush.msra.mxu0 0.0
    %175 = vmatpush.msra.mxu0 0.0
    %176 = vmatpush.msra.mxu0 0.0
    %177 = vmatpush.msra.mxu0 0.0
    %178 = vmatpush.msra.mxu0 0.0
    %179 = vmatpush.msra.mxu0 0.0
    %180 = vmatpush.msra.mxu0 0.0
    %181 = vmatpush.msra.mxu0 0.0
    %182 = vmatpush.msra.mxu0 %v117
    %183 = vmatmul.f32.gmra.mxu0 %v112
    %v184 = vpop.f32.mrf.mxu0
    %v185 = vadd.f32 %v73, %v184
    %186 = vdwg.mxu0
    %187 = vmatpush.msra.mxu0 0.0
    %188 = vmatpush.msra.mxu0 0.0
    %189 = vmatpush.msra.mxu0 0.0
    %190 = vmatpush.msra.mxu0 0.0
    %191 = vmatpush.msra.mxu0 0.0
    %192 = vmatpush.msra.mxu0 0.0
    %193 = vmatpush.msra.mxu0 0.0
    %194 = vmatpush.msra.mxu0 0.0
    %195 = vmatpush.msra.mxu0 0.0
    %196 = vmatpush.msra.mxu0 0.0
    %197 = vmatpush.msra.mxu0 0.0
    %198 = vmatpush.msra.mxu0 0.0
    %199 = vmatpush.msra.mxu0 0.0
    %200 = vmatpush.msra.mxu0 0.0
    %201 = vmatpush.msra.mxu0 0.0
    %202 = vmatpush.msra.mxu0 %v119
    %203 = vmatmul.f32.gmra.mxu0 %v112
    %v204 = vpop.f32.mrf.mxu0
    %v205 = vadd.f32 %v73, %v204
    %206 = vdwg.mxu0
    %207 = vmatpush.msra.mxu0 0.0
    %208 = vmatpush.msra.mxu0 0.0
    %209 = vmatpush.msra.mxu0 0.0
    %210 = vmatpush.msra.mxu0 0.0
    %211 = vmatpush.msra.mxu0 0.0
    %212 = vmatpush.msra.mxu0 0.0
    %213 = vmatpush.msra.mxu0 0.0
    %214 = vmatpush.msra.mxu0 0.0
    %215 = vmatpush.msra.mxu0 0.0
    %216 = vmatpush.msra.mxu0 0.0
    %217 = vmatpush.msra.mxu0 0.0
    %218 = vmatpush.msra.mxu0 0.0
    %219 = vmatpush.msra.mxu0 0.0
    %220 = vmatpush.msra.mxu0 0.0
    %221 = vmatpush.msra.mxu0 0.0
    %222 = vmatpush.msra.mxu0 %v121
    %223 = vmatmul.f32.gmra.mxu0 %v112
    %v224 = vpop.f32.mrf.mxu0
    %v225 = vadd.f32 %v73, %v224
    %226 = vdwg.mxu0
    %227 = vmatpush.msra.mxu0 0.0
    %228 = vmatpush.msra.mxu0 0.0
    %229 = vmatpush.msra.mxu0 0.0
    %230 = vmatpush.msra.mxu0 0.0
    %231 = vmatpush.msra.mxu0 0.0
    %232 = vmatpush.msra.mxu0 0.0
    %233 = vmatpush.msra.mxu0 0.0
    %234 = vmatpush.msra.mxu0 0.0
    %235 = vmatpush.msra.mxu0 0.0
    %236 = vmatpush.msra.mxu0 0.0
    %237 = vmatpush.msra.mxu0 0.0
    %238 = vmatpush.msra.mxu0 0.0
    %239 = vmatpush.msra.mxu0 0.0
    %240 = vmatpush.msra.mxu0 0.0
    %241 = vmatpush.msra.mxu0 0.0
    %242 = vmatpush.msra.mxu0 %v123
    %243 = vmatmul.f32.gmra.mxu0 %v112
    %v244 = vpop.f32.mrf.mxu0
    %v245 = vadd.f32 %v73, %v244
    %246 = vdwg.mxu0
    %247 = vmatpush.msra.mxu0 0.0
    %248 = vmatpush.msra.mxu0 0.0
    %249 = vmatpush.msra.mxu0 0.0
    %250 = vmatpush.msra.mxu0 0.0
    %251 = vmatpush.msra.mxu0 0.0
    %252 = vmatpush.msra.mxu0 0.0
    %253 = vmatpush.msra.mxu0 0.0
    %254 = vmatpush.msra.mxu0 0.0
    %255 = vmatpush.msra.mxu0 0.0
    %256 = vmatpush.msra.mxu0 0.0
    %257 = vmatpush.msra.mxu0 0.0
    %258 = vmatpush.msra.mxu0 0.0
    %259 = vmatpush.msra.mxu0 0.0
    %260 = vmatpush.msra.mxu0 0.0
    %261 = vmatpush.msra.mxu0 0.0
    %262 = vmatpush.msra.mxu0 %v125
    %263 = vmatmul.f32.gmra.mxu0 %v112
    %v264 = vpop.f32.mrf.mxu0
    %v265 = vadd.f32 %v73, %v264
    %266 = vdwg.mxu0
    %267 = vmatpush.msra.mxu0 0.0
    %268 = vmatpush.msra.mxu0 0.0
    %269 = vmatpush.msra.mxu0 0.0
    %270 = vmatpush.msra.mxu0 0.0
    %271 = vmatpush.msra.mxu0 0.0
    %272 = vmatpush.msra.mxu0 0.0
    %273 = vmatpush.msra.mxu0 0.0
    %274 = vmatpush.msra.mxu0 0.0
    %275 = vmatpush.msra.mxu0 0.0
    %276 = vmatpush.msra.mxu0 0.0
    %277 = vmatpush.msra.mxu0 0.0
    %278 = vmatpush.msra.mxu0 0.0
    %279 = vmatpush.msra.mxu0 0.0
    %280 = vmatpush.msra.mxu0 0.0
    %281 = vmatpush.msra.mxu0 0.0
    %282 = vmatpush.msra.mxu0 %v127
    %283 = vmatmul.f32.gmra.mxu0 %v112
    %v284 = vpop.f32.mrf.mxu0
    %v285 = vadd.f32 %v73, %v284
    %286 = vdwg.mxu0
    %287 = vmatpush.msra.mxu0 0.0
    %288 = vmatpush.msra.mxu0 0.0
    %289 = vmatpush.msra.mxu0 0.0
    %290 = vmatpush.msra.mxu0 0.0
    %291 = vmatpush.msra.mxu0 0.0
    %292 = vmatpush.msra.mxu0 0.0
    %293 = vmatpush.msra.mxu0 0.0
    %294 = vmatpush.msra.mxu0 0.0
    %295 = vmatpush.msra.mxu0 0.0
    %296 = vmatpush.msra.mxu0 0.0
    %297 = vmatpush.msra.mxu0 0.0
    %298 = vmatpush.msra.mxu0 0.0
    %299 = vmatpush.msra.mxu0 0.0
    %300 = vmatpush.msra.mxu0 0.0
    %301 = vmatpush.msra.mxu0 0.0
    %302 = vmatpush.msra.mxu0 %v129
    %303 = vmatmul.f32.gmra.mxu0 %v112
    %v304 = vpop.f32.mrf.mxu0
    %v305 = vadd.f32 %v73, %v304
    %306 = vdwg.mxu0
    %307 = vmatpush.msra.mxu0 0.0
    %308 = vmatpush.msra.mxu0 0.0
    %309 = vmatpush.msra.mxu0 0.0
    %310 = vmatpush.msra.mxu0 0.0
    %311 = vmatpush.msra.mxu0 0.0
    %312 = vmatpush.msra.mxu0 0.0
    %313 = vmatpush.msra.mxu0 0.0
    %314 = vmatpush.msra.mxu0 0.0
    %315 = vmatpush.msra.mxu0 0.0
    %316 = vmatpush.msra.mxu0 0.0
    %317 = vmatpush.msra.mxu0 0.0
    %318 = vmatpush.msra.mxu0 0.0
    %319 = vmatpush.msra.mxu0 0.0
    %320 = vmatpush.msra.mxu0 0.0
    %321 = vmatpush.msra.mxu0 0.0
    %322 = vmatpush.msra.mxu0 %v131
    %323 = vmatmul.f32.gmra.mxu0 %v112
    %v324 = vpop.f32.mrf.mxu0
    %v325 = vadd.f32 %v73, %v324
    %326 = vdwg.mxu0
    %327 = vmatpush.msra.mxu0 0.0
    %328 = vmatpush.msra.mxu0 0.0
    %329 = vmatpush.msra.mxu0 0.0
    %330 = vmatpush.msra.mxu0 0.0
    %331 = vmatpush.msra.mxu0 0.0
    %332 = vmatpush.msra.mxu0 0.0
    %333 = vmatpush.msra.mxu0 0.0
    %334 = vmatpush.msra.mxu0 0.0
    %335 = vmatpush.msra.mxu0 0.0
    %336 = vmatpush.msra.mxu0 0.0
    %337 = vmatpush.msra.mxu0 0.0
    %338 = vmatpush.msra.mxu0 0.0
    %339 = vmatpush.msra.mxu0 0.0
    %340 = vmatpush.msra.mxu0 0.0
    %341 = vmatpush.msra.mxu0 0.0
    %342 = vmatpush.msra.mxu0 %v133
    %343 = vmatmul.f32.gmra.mxu0 %v112
    %v344 = vpop.f32.mrf.mxu0
    %v345 = vadd.f32 %v73, %v344
    %346 = vdwg.mxu0
    %347 = vmatpush.msra.mxu0 0.0
    %348 = vmatpush.msra.mxu0 0.0
    %349 = vmatpush.msra.mxu0 0.0
    %350 = vmatpush.msra.mxu0 0.0
    %351 = vmatpush.msra.mxu0 0.0
    %352 = vmatpush.msra.mxu0 0.0
    %353 = vmatpush.msra.mxu0 0.0
    %354 = vmatpush.msra.mxu0 0.0
    %355 = vmatpush.msra.mxu0 0.0
    %356 = vmatpush.msra.mxu0 0.0
    %357 = vmatpush.msra.mxu0 0.0
    %358 = vmatpush.msra.mxu0 0.0
    %359 = vmatpush.msra.mxu0 0.0
    %360 = vmatpush.msra.mxu0 0.0
    %361 = vmatpush.msra.mxu0 0.0
    %362 = vmatpush.msra.mxu0 %v135
    %363 = vmatmul.f32.gmra.mxu0 %v112
    %v364 = vpop.f32.mrf.mxu0
    %v365 = vadd.f32 %v73, %v364
    %366 = vdwg.mxu0
    %367 = vmatpush.msra.mxu0 0.0
    %368 = vmatpush.msra.mxu0 0.0
    %369 = vmatpush.msra.mxu0 0.0
    %370 = vmatpush.msra.mxu0 0.0
    %371 = vmatpush.msra.mxu0 0.0
    %372 = vmatpush.msra.mxu0 0.0
    %373 = vmatpush.msra.mxu0 0.0
    %374 = vmatpush.msra.mxu0 0.0
    %375 = vmatpush.msra.mxu0 0.0
    %376 = vmatpush.msra.mxu0 0.0
    %377 = vmatpush.msra.mxu0 0.0
    %378 = vmatpush.msra.mxu0 0.0
    %379 = vmatpush.msra.mxu0 0.0
    %380 = vmatpush.msra.mxu0 0.0
    %381 = vmatpush.msra.mxu0 0.0
    %382 = vmatpush.msra.mxu0 %v137
    %383 = vmatmul.f32.gmra.mxu0 %v112
    %v384 = vpop.f32.mrf.mxu0
    %v385 = vadd.f32 %v73, %v384
    %386 = vdwg.mxu0
    %387 = vmatpush.msra.mxu0 0.0
    %388 = vmatpush.msra.mxu0 0.0
    %389 = vmatpush.msra.mxu0 0.0
    %390 = vmatpush.msra.mxu0 0.0
    %391 = vmatpush.msra.mxu0 0.0
    %392 = vmatpush.msra.mxu0 0.0
    %393 = vmatpush.msra.mxu0 0.0
    %394 = vmatpush.msra.mxu0 0.0
    %395 = vmatpush.msra.mxu0 0.0
    %396 = vmatpush.msra.mxu0 0.0
    %397 = vmatpush.msra.mxu0 0.0
    %398 = vmatpush.msra.mxu0 0.0
    %399 = vmatpush.msra.mxu0 0.0
    %400 = vmatpush.msra.mxu0 0.0
    %401 = vmatpush.msra.mxu0 0.0
    %402 = vmatpush.msra.mxu0 %v139
    %403 = vmatmul.f32.gmra.mxu0 %v112
    %v404 = vpop.f32.mrf.mxu0
    %v405 = vadd.f32 %v73, %v404
    %406 = vdwg.mxu0
    %407 = vmatpush.msra.mxu0 0.0
    %408 = vmatpush.msra.mxu0 0.0
    %409 = vmatpush.msra.mxu0 0.0
    %410 = vmatpush.msra.mxu0 0.0
    %411 = vmatpush.msra.mxu0 0.0
    %412 = vmatpush.msra.mxu0 0.0
    %413 = vmatpush.msra.mxu0 0.0
    %414 = vmatpush.msra.mxu0 0.0
    %415 = vmatpush.msra.mxu0 0.0
    %416 = vmatpush.msra.mxu0 0.0
    %417 = vmatpush.msra.mxu0 0.0
    %418 = vmatpush.msra.mxu0 0.0
    %419 = vmatpush.msra.mxu0 0.0
    %420 = vmatpush.msra.mxu0 0.0
    %421 = vmatpush.msra.mxu0 0.0
    %422 = vmatpush.msra.mxu0 %v141
    %423 = vmatmul.f32.gmra.mxu0 %v112
    %v424 = vpop.f32.mrf.mxu0
    %v425 = vadd.f32 %v73, %v424
    %426 = vdwg.mxu0
    %427 = vmatpush.msra.mxu0 0.0
    %428 = vmatpush.msra.mxu0 0.0
    %429 = vmatpush.msra.mxu0 0.0
    %430 = vmatpush.msra.mxu0 0.0
    %431 = vmatpush.msra.mxu0 0.0
    %432 = vmatpush.msra.mxu0 0.0
    %433 = vmatpush.msra.mxu0 0.0
    %434 = vmatpush.msra.mxu0 0.0
    %435 = vmatpush.msra.mxu0 0.0
    %436 = vmatpush.msra.mxu0 0.0
    %437 = vmatpush.msra.mxu0 0.0
    %438 = vmatpush.msra.mxu0 0.0
    %439 = vmatpush.msra.mxu0 0.0
    %440 = vmatpush.msra.mxu0 0.0
    %441 = vmatpush.msra.mxu0 0.0
    %442 = vmatpush.msra.mxu0 %v143
    %443 = vmatmul.f32.gmra.mxu0 %v112
    %v444 = vpop.f32.mrf.mxu0
    %v445 = vadd.f32 %v73, %v444
    %446 = vdwg.mxu0
    %447 = vmatpush.msra.mxu0 0.0
    %448 = vmatpush.msra.mxu0 0.0
    %449 = vmatpush.msra.mxu0 0.0
    %450 = vmatpush.msra.mxu0 0.0
    %451 = vmatpush.msra.mxu0 0.0
    %452 = vmatpush.msra.mxu0 0.0
    %453 = vmatpush.msra.mxu0 0.0
    %454 = vmatpush.msra.mxu0 0.0
    %455 = vmatpush.msra.mxu0 0.0
    %456 = vmatpush.msra.mxu0 0.0
    %457 = vmatpush.msra.mxu0 0.0
    %458 = vmatpush.msra.mxu0 0.0
    %459 = vmatpush.msra.mxu0 0.0
    %460 = vmatpush.msra.mxu0 0.0
    %461 = vmatpush.msra.mxu0 0.0
    %462 = vmatpush.msra.mxu0 %v145
    %463 = vmatmul.f32.gmra.mxu0 %v112
    %v464 = vpop.f32.mrf.mxu0
    %v465 = vadd.f32 %v73, %v464
    %466 = vdwg.mxu0
    %v467 = vmax.f32 %v165, 0.0
    %v468 = vmax.f32 %v185, 0.0
    %v469 = vmax.f32 %v205, 0.0
    %v470 = vmax.f32 %v225, 0.0
    %v471 = vmax.f32 %v245, 0.0
    %v472 = vmax.f32 %v265, 0.0
    %v473 = vmax.f32 %v285, 0.0
    %v474 = vmax.f32 %v305, 0.0
    %v475 = vmax.f32 %v325, 0.0
    %v476 = vmax.f32 %v345, 0.0
    %v477 = vmax.f32 %v365, 0.0
    %v478 = vmax.f32 %v385, 0.0
    %v479 = vmax.f32 %v405, 0.0
    %v480 = vmax.f32 %v425, 0.0
    %v481 = vmax.f32 %v445, 0.0
    %v482 = vmax.f32 %v465, 0.0
    %483 = vst [vmem:[#allocation2 + $0x680] sm:$0xf0] 0.0
    %484 = vst [vmem:[#allocation2 + $0x688] sm:$0xf0] 0.0
    %485 = vst [vmem:[#allocation2 + $0x690] sm:$0xf0] 0.0
    %486 = vst [vmem:[#allocation2 + $0x698] sm:$0xf0] 0.0
    %487 = vst [vmem:[#allocation2 + $0x6a0] sm:$0xf0] 0.0
    %488 = vst [vmem:[#allocation2 + $0x6a8] sm:$0xf0] 0.0
    %489 = vst [vmem:[#allocation2 + $0x6b0] sm:$0xf0] 0.0
    %490 = vst [vmem:[#allocation2 + $0x6b8] sm:$0xf0] 0.0
    %491 = vst [vmem:[#allocation2 + $0x6c0] sm:$0xf0] 0.0
    %492 = vst [vmem:[#allocation2 + $0x6c8] sm:$0xf0] 0.0
    %493 = vst [vmem:[#allocation2 + $0x6d0] sm:$0xf0] 0.0
    %494 = vst [vmem:[#allocation2 + $0x6d8] sm:$0xf0] 0.0
    %495 = vst [vmem:[#allocation2 + $0x6e0] sm:$0xf0] 0.0
    %496 = vst [vmem:[#allocation2 + $0x6e8] sm:$0xf0] 0.0
    %497 = vst [vmem:[#allocation2 + $0x6f0] sm:$0xf0] 0.0
    %498 = vst [vmem:[#allocation2 + $0x6f8] sm:$0xf0] 0.0
    %499 = vst [vmem:[#allocation2 + $0x700] sm:$0xff] 0.0
    %500 = vst [vmem:[#allocation2 + $0x708] sm:$0xff] 0.0
    %501 = vst [vmem:[#allocation2 + $0x710] sm:$0xff] 0.0
    %502 = vst [vmem:[#allocation2 + $0x718] sm:$0xff] 0.0
    %503 = vst [vmem:[#allocation2 + $0x720] sm:$0xff] 0.0
    %504 = vst [vmem:[#allocation2 + $0x728] sm:$0xff] 0.0
    %505 = vst [vmem:[#allocation2 + $0x730] sm:$0xff] 0.0
    %506 = vst [vmem:[#allocation2 + $0x738] sm:$0xff] 0.0
    %507 = vst [vmem:[#allocation2 + $0x740] sm:$0xff] 0.0
    %508 = vst [vmem:[#allocation2 + $0x748] sm:$0xff] 0.0
    %509 = vst [vmem:[#allocation2 + $0x750] sm:$0xff] 0.0
    %510 = vst [vmem:[#allocation2 + $0x758] sm:$0xff] 0.0
    %511 = vst [vmem:[#allocation2 + $0x760] sm:$0xff] 0.0
    %512 = vst [vmem:[#allocation2 + $0x768] sm:$0xff] 0.0
    %513 = vst [vmem:[#allocation2 + $0x770] sm:$0xff] 0.0
    %514 = vst [vmem:[#allocation2 + $0x778] sm:$0xff] 0.0
    %515 = vst [vmem:[#allocation2 + $0x780] sm:$0xff] 0.0
    %516 = vst [vmem:[#allocation2 + $0x788] sm:$0xff] 0.0
    %517 = vst [vmem:[#allocation2 + $0x790] sm:$0xff] 0.0
    %518 = vst [vmem:[#allocation2 + $0x798] sm:$0xff] 0.0
    %519 = vst [vmem:[#allocation2 + $0x7a0] sm:$0xff] 0.0
    %520 = vst [vmem:[#allocation2 + $0x7a8] sm:$0xff] 0.0
    %521 = vst [vmem:[#allocation2 + $0x7b0] sm:$0xff] 0.0
    %522 = vst [vmem:[#allocation2 + $0x7b8] sm:$0xff] 0.0
    %523 = vst [vmem:[#allocation2 + $0x7c0] sm:$0xff] 0.0
    %524 = vst [vmem:[#allocation2 + $0x7c8] sm:$0xff] 0.0
    %525 = vst [vmem:[#allocation2 + $0x7d0] sm:$0xff] 0.0
    %526 = vst [vmem:[#allocation2 + $0x7d8] sm:$0xff] 0.0
    %527 = vst [vmem:[#allocation2 + $0x7e0] sm:$0xff] 0.0
    %528 = vst [vmem:[#allocation2 + $0x7e8] sm:$0xff] 0.0
    %529 = vst [vmem:[#allocation2 + $0x7f0] sm:$0xff] 0.0
    %530 = vst [vmem:[#allocation2 + $0x7f8] sm:$0xff] 0.0
    %531 = vrot.lane.b32.xlu0 %v467, 17
    %v532 = vpop.permute.xlu0 %531
    %533 = vrot.lane.b32.xlu0 %v468, 17
    %v534 = vpop.permute.xlu0 %533
    %535 = vrot.lane.b32.xlu0 %v469, 17
    %v536 = vpop.permute.xlu0 %535
    %537 = vrot.lane.b32.xlu0 %v470, 17
    %v538 = vpop.permute.xlu0 %537
    %539 = vrot.lane.b32.xlu0 %v471, 17
    %v540 = vpop.permute.xlu0 %539
    %541 = vrot.lane.b32.xlu0 %v472, 17
    %v542 = vpop.permute.xlu0 %541
    %543 = vrot.lane.b32.xlu0 %v473, 17
    %v544 = vpop.permute.xlu0 %543
    %545 = vrot.lane.b32.xlu0 %v474, 17
    %v546 = vpop.permute.xlu0 %545
    %547 = vrot.lane.b32.xlu0 %v475, 17
    %v548 = vpop.permute.xlu0 %547
    %549 = vrot.lane.b32.xlu0 %v476, 17
    %v550 = vpop.permute.xlu0 %549
    %551 = vrot.lane.b32.xlu0 %v477, 17
    %v552 = vpop.permute.xlu0 %551
    %553 = vrot.lane.b32.xlu0 %v478, 17
    %v554 = vpop.permute.xlu0 %553
    %555 = vrot.lane.b32.xlu0 %v479, 17
    %v556 = vpop.permute.xlu0 %555
    %557 = vrot.lane.b32.xlu0 %v480, 17
    %v558 = vpop.permute.xlu0 %557
    %559 = vrot.lane.b32.xlu0 %v481, 17
    %v560 = vpop.permute.xlu0 %559
    %561 = vrot.lane.b32.xlu0 %v482, 17
    %v562 = vpop.permute.xlu0 %561
    %v563 = vlaneseq
    %v564 = vand.u32 %v563, 127
    %vm565 = vcmp.lt.s32.totalorder %v564, 17
    %v566 = vsel %vm565, %v560, %v562
    %v567 = vsel %vm565, %v558, %v560
    %v568 = vsel %vm565, %v556, %v558
    %v569 = vsel %vm565, %v554, %v556
    %v570 = vsel %vm565, %v552, %v554
    %v571 = vsel %vm565, %v550, %v552
    %v572 = vsel %vm565, %v548, %v550
    %v573 = vsel %vm565, %v546, %v548
    %v574 = vsel %vm565, %v544, %v546
    %v575 = vsel %vm565, %v542, %v544
    %v576 = vsel %vm565, %v540, %v542
    %v577 = vsel %vm565, %v538, %v540
    %v578 = vsel %vm565, %v536, %v538
    %v579 = vsel %vm565, %v534, %v536
    %v580 = vsel %vm565, %v532, %v534
    %v581 = vsel %vm565, %v562, %v532
    %v582 = vld [vmem:[#allocation6] ss:$8 sm:$0xf]
    %v583 = vld [vmem:[#allocation6] ss:$8 sm:$0xf0]
    %v584 = vor.u32 %v582, %v583
    %s585 = scalar_lea.vmem [#allocation6], 64
    %v586 = vld [vmem:[%s585] ss:$8 sm:$0xf]
    %v587 = vld [vmem:[%s585] ss:$8 sm:$0xf0]
    %v588 = vor.u32 %v586, %v587
    %v591 = vperm.slane %v584, 0
    %v592 = vperm.slane %v584, 1
    %v593 = vperm.slane %v584, 2
    %v594 = vperm.slane %v584, 3
    %v595 = vperm.slane %v584, 4
    %v596 = vperm.slane %v584, 5
    %v597 = vperm.slane %v584, 6
    %v598 = vperm.slane %v584, 7
    %v599 = vperm.slane %v588, 0
    %v600 = vperm.slane %v588, 1
    %v601 = vperm.slane %v588, 2
    %v602 = vperm.slane %v588, 3
    %v603 = vperm.slane %v588, 4
    %v604 = vperm.slane %v588, 5
    %v605 = vperm.slane %v588, 6
    %v606 = vperm.slane %v588, 7
    %v623 = vmul.f32 %v567, %v591
    %v624 = vmul.f32 %v566, %v592
    %v625 = vmul.f32 %v581, %v593
    %v626 = vmul.f32 %v580, %v594
    %v627 = vmul.f32 %v579, %v595
    %v628 = vmul.f32 %v578, %v596
    %v629 = vmul.f32 %v577, %v597
    %v630 = vmul.f32 %v576, %v598
    %v631 = vmul.f32 %v575, %v599
    %v632 = vmul.f32 %v574, %v600
    %v633 = vmul.f32 %v573, %v601
    %v634 = vmul.f32 %v572, %v602
    %v635 = vmul.f32 %v571, %v603
    %v636 = vmul.f32 %v570, %v604
    %v637 = vmul.f32 %v569, %v605
    %v638 = vmul.f32 %v568, %v606
    %639 = vst [vmem:[#allocation2] sm:$0xf] %v623
    %640 = vst [vmem:[#allocation2 + $0x8] sm:$0xf] %v624
    %641 = vst [vmem:[#allocation2 + $0x10] sm:$0xf] %v625
    %642 = vst [vmem:[#allocation2 + $0x18] sm:$0xf] %v626
    %643 = vst [vmem:[#allocation2 + $0x20] sm:$0xf] %v627
    %644 = vst [vmem:[#allocation2 + $0x28] sm:$0xf] %v628
    %645 = vst [vmem:[#allocation2 + $0x30] sm:$0xf] %v629
    %646 = vst [vmem:[#allocation2 + $0x38] sm:$0xf] %v630
    %647 = vst [vmem:[#allocation2 + $0x40] sm:$0xf] %v631
    %648 = vst [vmem:[#allocation2 + $0x48] sm:$0xf] %v632
    %649 = vst [vmem:[#allocation2 + $0x50] sm:$0xf] %v633
    %650 = vst [vmem:[#allocation2 + $0x58] sm:$0xf] %v634
    %651 = vst [vmem:[#allocation2 + $0x60] sm:$0xf] %v635
    %652 = vst [vmem:[#allocation2 + $0x68] sm:$0xf] %v636
    %653 = vst [vmem:[#allocation2 + $0x70] sm:$0xf] %v637
    %654 = vst [vmem:[#allocation2 + $0x78] sm:$0xf] %v638
    %655 = vrot.lane.b32.xlu0 %v467, 16
    %v656 = vpop.permute.xlu0 %655
    %657 = vrot.lane.b32.xlu0 %v468, 16
    %v658 = vpop.permute.xlu0 %657
    %659 = vrot.lane.b32.xlu0 %v469, 16
    %v660 = vpop.permute.xlu0 %659
    %661 = vrot.lane.b32.xlu0 %v470, 16
    %v662 = vpop.permute.xlu0 %661
    %663 = vrot.lane.b32.xlu0 %v471, 16
    %v664 = vpop.permute.xlu0 %663
    %665 = vrot.lane.b32.xlu0 %v472, 16
    %v666 = vpop.permute.xlu0 %665
    %667 = vrot.lane.b32.xlu0 %v473, 16
    %v668 = vpop.permute.xlu0 %667
    %669 = vrot.lane.b32.xlu0 %v474, 16
    %v670 = vpop.permute.xlu0 %669
    %671 = vrot.lane.b32.xlu0 %v475, 16
    %v672 = vpop.permute.xlu0 %671
    %673 = vrot.lane.b32.xlu0 %v476, 16
    %v674 = vpop.permute.xlu0 %673
    %675 = vrot.lane.b32.xlu0 %v477, 16
    %v676 = vpop.permute.xlu0 %675
    %677 = vrot.lane.b32.xlu0 %v478, 16
    %v678 = vpop.permute.xlu0 %677
    %679 = vrot.lane.b32.xlu0 %v479, 16
    %v680 = vpop.permute.xlu0 %679
    %681 = vrot.lane.b32.xlu0 %v480, 16
    %v682 = vpop.permute.xlu0 %681
    %683 = vrot.lane.b32.xlu0 %v481, 16
    %v684 = vpop.permute.xlu0 %683
    %685 = vrot.lane.b32.xlu0 %v482, 16
    %v686 = vpop.permute.xlu0 %685
    %vm687 = vcmp.lt.s32.totalorder %v564, 16
    %v688 = vsel %vm687, %v684, %v686
    %v689 = vsel %vm687, %v682, %v684
    %v690 = vsel %vm687, %v680, %v682
    %v691 = vsel %vm687, %v678, %v680
    %v692 = vsel %vm687, %v676, %v678
    %v693 = vsel %vm687, %v674, %v676
    %v694 = vsel %vm687, %v672, %v674
    %v695 = vsel %vm687, %v670, %v672
    %v696 = vsel %vm687, %v668, %v670
    %v697 = vsel %vm687, %v666, %v668
    %v698 = vsel %vm687, %v664, %v666
    %v699 = vsel %vm687, %v662, %v664
    %v700 = vsel %vm687, %v660, %v662
    %v701 = vsel %vm687, %v658, %v660
    %v702 = vsel %vm687, %v656, %v658
    %v703 = vsel %vm687, %v686, %v656
    %s704 = scalar_lea.vmem [#allocation6], 1
    %v705 = vld [vmem:[%s704] ss:$8 sm:$0xf]
    %v706 = vld [vmem:[%s704] ss:$8 sm:$0xf0]
    %v707 = vor.u32 %v705, %v706
    %s708 = scalar_lea.vmem [#allocation6], 65
    %v709 = vld [vmem:[%s708] ss:$8 sm:$0xf]
    %v710 = vld [vmem:[%s708] ss:$8 sm:$0xf0]
    %v711 = vor.u32 %v709, %v710
    %v714 = vperm.slane %v707, 0
    %v715 = vperm.slane %v707, 1
    %v716 = vperm.slane %v707, 2
    %v717 = vperm.slane %v707, 3
    %v718 = vperm.slane %v707, 4
    %v719 = vperm.slane %v707, 5
    %v720 = vperm.slane %v707, 6
    %v721 = vperm.slane %v707, 7
    %v722 = vperm.slane %v711, 0
    %v723 = vperm.slane %v711, 1
    %v724 = vperm.slane %v711, 2
    %v725 = vperm.slane %v711, 3
    %v726 = vperm.slane %v711, 4
    %v727 = vperm.slane %v711, 5
    %v728 = vperm.slane %v711, 6
    %v729 = vperm.slane %v711, 7
    %v746 = vmul.f32 %v689, %v714
    %v747 = vmul.f32 %v688, %v715
    %v748 = vmul.f32 %v703, %v716
    %v749 = vmul.f32 %v702, %v717
    %v750 = vmul.f32 %v701, %v718
    %v751 = vmul.f32 %v700, %v719
    %v752 = vmul.f32 %v699, %v720
    %v753 = vmul.f32 %v698, %v721
    %v754 = vmul.f32 %v697, %v722
    %v755 = vmul.f32 %v696, %v723
    %v756 = vmul.f32 %v695, %v724
    %v757 = vmul.f32 %v694, %v725
    %v758 = vmul.f32 %v693, %v726
    %v759 = vmul.f32 %v692, %v727
    %v760 = vmul.f32 %v691, %v728
    %v761 = vmul.f32 %v690, %v729
    %v778 = vrot.slane %v746, 4
    %v779 = vrot.slane %v747, 4
    %v780 = vrot.slane %v748, 4
    %v781 = vrot.slane %v749, 4
    %v782 = vrot.slane %v750, 4
    %v783 = vrot.slane %v751, 4
    %v784 = vrot.slane %v752, 4
    %v785 = vrot.slane %v753, 4
    %v786 = vrot.slane %v754, 4
    %v787 = vrot.slane %v755, 4
    %v788 = vrot.slane %v756, 4
    %v789 = vrot.slane %v757, 4
    %v790 = vrot.slane %v758, 4
    %v791 = vrot.slane %v759, 4
    %v792 = vrot.slane %v760, 4
    %v793 = vrot.slane %v761, 4
    %810 = vst [vmem:[#allocation2] sm:$0xf0] %v778
    %811 = vst [vmem:[#allocation2 + $0x8] sm:$0xf0] %v779
    %812 = vst [vmem:[#allocation2 + $0x10] sm:$0xf0] %v780
    %813 = vst [vmem:[#allocation2 + $0x18] sm:$0xf0] %v781
    %814 = vst [vmem:[#allocation2 + $0x20] sm:$0xf0] %v782
    %815 = vst [vmem:[#allocation2 + $0x28] sm:$0xf0] %v783
    %816 = vst [vmem:[#allocation2 + $0x30] sm:$0xf0] %v784
    %817 = vst [vmem:[#allocation2 + $0x38] sm:$0xf0] %v785
    %818 = vst [vmem:[#allocation2 + $0x40] sm:$0xf0] %v786
    %819 = vst [vmem:[#allocation2 + $0x48] sm:$0xf0] %v787
    %820 = vst [vmem:[#allocation2 + $0x50] sm:$0xf0] %v788
    %821 = vst [vmem:[#allocation2 + $0x58] sm:$0xf0] %v789
    %822 = vst [vmem:[#allocation2 + $0x60] sm:$0xf0] %v790
    %823 = vst [vmem:[#allocation2 + $0x68] sm:$0xf0] %v791
    %824 = vst [vmem:[#allocation2 + $0x70] sm:$0xf0] %v792
    %825 = vst [vmem:[#allocation2 + $0x78] sm:$0xf0] %v793
    %826 = vrot.lane.b32.xlu0 %v467, 15
    %v827 = vpop.permute.xlu0 %826
    %828 = vrot.lane.b32.xlu0 %v468, 15
    %v829 = vpop.permute.xlu0 %828
    %830 = vrot.lane.b32.xlu0 %v469, 15
    %v831 = vpop.permute.xlu0 %830
    %832 = vrot.lane.b32.xlu0 %v470, 15
    %v833 = vpop.permute.xlu0 %832
    %834 = vrot.lane.b32.xlu0 %v471, 15
    %v835 = vpop.permute.xlu0 %834
    %836 = vrot.lane.b32.xlu0 %v472, 15
    %v837 = vpop.permute.xlu0 %836
    %838 = vrot.lane.b32.xlu0 %v473, 15
    %v839 = vpop.permute.xlu0 %838
    %840 = vrot.lane.b32.xlu0 %v474, 15
    %v841 = vpop.permute.xlu0 %840
    %842 = vrot.lane.b32.xlu0 %v475, 15
    %v843 = vpop.permute.xlu0 %842
    %844 = vrot.lane.b32.xlu0 %v476, 15
    %v845 = vpop.permute.xlu0 %844
    %846 = vrot.lane.b32.xlu0 %v477, 15
    %v847 = vpop.permute.xlu0 %846
    %848 = vrot.lane.b32.xlu0 %v478, 15
    %v849 = vpop.permute.xlu0 %848
    %850 = vrot.lane.b32.xlu0 %v479, 15
    %v851 = vpop.permute.xlu0 %850
    %852 = vrot.lane.b32.xlu0 %v480, 15
    %v853 = vpop.permute.xlu0 %852
    %854 = vrot.lane.b32.xlu0 %v481, 15
    %v855 = vpop.permute.xlu0 %854
    %856 = vrot.lane.b32.xlu0 %v482, 15
    %v857 = vpop.permute.xlu0 %856
    %vm858 = vcmp.lt.s32.totalorder %v564, 15
    %v859 = vsel %vm858, %v855, %v857
    %v860 = vsel %vm858, %v853, %v855
    %v861 = vsel %vm858, %v851, %v853
    %v862 = vsel %vm858, %v849, %v851
    %v863 = vsel %vm858, %v847, %v849
    %v864 = vsel %vm858, %v845, %v847
    %v865 = vsel %vm858, %v843, %v845
    %v866 = vsel %vm858, %v841, %v843
    %v867 = vsel %vm858, %v839, %v841
    %v868 = vsel %vm858, %v837, %v839
    %v869 = vsel %vm858, %v835, %v837
    %v870 = vsel %vm858, %v833, %v835
    %v871 = vsel %vm858, %v831, %v833
    %v872 = vsel %vm858, %v829, %v831
    %v873 = vsel %vm858, %v827, %v829
    %v874 = vsel %vm858, %v857, %v827
    %s875 = scalar_lea.vmem [#allocation6], 2
    %v876 = vld [vmem:[%s875] ss:$8 sm:$0xf]
    %v877 = vld [vmem:[%s875] ss:$8 sm:$0xf0]
    %v878 = vor.u32 %v876, %v877
    %s879 = scalar_lea.vmem [#allocation6], 66
    %v880 = vld [vmem:[%s879] ss:$8 sm:$0xf]
    %v881 = vld [vmem:[%s879] ss:$8 sm:$0xf0]
    %v882 = vor.u32 %v880, %v881
    %v885 = vperm.slane %v878, 0
    %v886 = vperm.slane %v878, 1
    %v887 = vperm.slane %v878, 2
    %v888 = vperm.slane %v878, 3
    %v889 = vperm.slane %v878, 4
    %v890 = vperm.slane %v878, 5
    %v891 = vperm.slane %v878, 6
    %v892 = vperm.slane %v878, 7
    %v893 = vperm.slane %v882, 0
    %v894 = vperm.slane %v882, 1
    %v895 = vperm.slane %v882, 2
    %v896 = vperm.slane %v882, 3
    %v897 = vperm.slane %v882, 4
    %v898 = vperm.slane %v882, 5
    %v899 = vperm.slane %v882, 6
    %v900 = vperm.slane %v882, 7
    %v917 = vmul.f32 %v860, %v885
    %v918 = vmul.f32 %v859, %v886
    %v919 = vmul.f32 %v874, %v887
    %v920 = vmul.f32 %v873, %v888
    %v921 = vmul.f32 %v872, %v889
    %v922 = vmul.f32 %v871, %v890
    %v923 = vmul.f32 %v870, %v891
    %v924 = vmul.f32 %v869, %v892
    %v925 = vmul.f32 %v868, %v893
    %v926 = vmul.f32 %v867, %v894
    %v927 = vmul.f32 %v866, %v895
    %v928 = vmul.f32 %v865, %v896
    %v929 = vmul.f32 %v864, %v897
    %v930 = vmul.f32 %v863, %v898
    %v931 = vmul.f32 %v862, %v899
    %v932 = vmul.f32 %v861, %v900
    %933 = vst [vmem:[#allocation2 + $0x80] sm:$0xf] %v917
    %934 = vst [vmem:[#allocation2 + $0x88] sm:$0xf] %v918
    %935 = vst [vmem:[#allocation2 + $0x90] sm:$0xf] %v919
    %936 = vst [vmem:[#allocation2 + $0x98] sm:$0xf] %v920
    %937 = vst [vmem:[#allocation2 + $0xa0] sm:$0xf] %v921
    %938 = vst [vmem:[#allocation2 + $0xa8] sm:$0xf] %v922
    %939 = vst [vmem:[#allocation2 + $0xb0] sm:$0xf] %v923
    %940 = vst [vmem:[#allocation2 + $0xb8] sm:$0xf] %v924
    %941 = vst [vmem:[#allocation2 + $0xc0] sm:$0xf] %v925
    %942 = vst [vmem:[#allocation2 + $0xc8] sm:$0xf] %v926
    %943 = vst [vmem:[#allocation2 + $0xd0] sm:$0xf] %v927
    %944 = vst [vmem:[#allocation2 + $0xd8] sm:$0xf] %v928
    %945 = vst [vmem:[#allocation2 + $0xe0] sm:$0xf] %v929
    %946 = vst [vmem:[#allocation2 + $0xe8] sm:$0xf] %v930
    %947 = vst [vmem:[#allocation2 + $0xf0] sm:$0xf] %v931
    %948 = vst [vmem:[#allocation2 + $0xf8] sm:$0xf] %v932
    %949 = vrot.lane.b32.xlu0 %v467, 1
    %v950 = vpop.permute.xlu0 %949
    %951 = vrot.lane.b32.xlu0 %v468, 1
    %v952 = vpop.permute.xlu0 %951
    %953 = vrot.lane.b32.xlu0 %v469, 1
    %v954 = vpop.permute.xlu0 %953
    %955 = vrot.lane.b32.xlu0 %v470, 1
    %v956 = vpop.permute.xlu0 %955
    %957 = vrot.lane.b32.xlu0 %v471, 1
    %v958 = vpop.permute.xlu0 %957
    %959 = vrot.lane.b32.xlu0 %v472, 1
    %v960 = vpop.permute.xlu0 %959
    %961 = vrot.lane.b32.xlu0 %v473, 1
    %v962 = vpop.permute.xlu0 %961
    %963 = vrot.lane.b32.xlu0 %v474, 1
    %v964 = vpop.permute.xlu0 %963
    %965 = vrot.lane.b32.xlu0 %v475, 1
    %v966 = vpop.permute.xlu0 %965
    %967 = vrot.lane.b32.xlu0 %v476, 1
    %v968 = vpop.permute.xlu0 %967
    %969 = vrot.lane.b32.xlu0 %v477, 1
    %v970 = vpop.permute.xlu0 %969
    %971 = vrot.lane.b32.xlu0 %v478, 1
    %v972 = vpop.permute.xlu0 %971
    %973 = vrot.lane.b32.xlu0 %v479, 1
    %v974 = vpop.permute.xlu0 %973
    %975 = vrot.lane.b32.xlu0 %v480, 1
    %v976 = vpop.permute.xlu0 %975
    %977 = vrot.lane.b32.xlu0 %v481, 1
    %v978 = vpop.permute.xlu0 %977
    %979 = vrot.lane.b32.xlu0 %v482, 1
    %v980 = vpop.permute.xlu0 %979
    %vm981 = vcmp.lt.s32.totalorder %v564, 1
    %v982 = vsel %vm981, %v978, %v980
    %v983 = vsel %vm981, %v976, %v978
    %v984 = vsel %vm981, %v974, %v976
    %v985 = vsel %vm981, %v972, %v974
    %v986 = vsel %vm981, %v970, %v972
    %v987 = vsel %vm981, %v968, %v970
    %v988 = vsel %vm981, %v966, %v968
    %v989 = vsel %vm981, %v964, %v966
    %v990 = vsel %vm981, %v962, %v964
    %v991 = vsel %vm981, %v960, %v962
    %v992 = vsel %vm981, %v958, %v960
    %v993 = vsel %vm981, %v956, %v958
    %v994 = vsel %vm981, %v954, %v956
    %v995 = vsel %vm981, %v952, %v954
    %v996 = vsel %vm981, %v950, %v952
    %v997 = vsel %vm981, %v980, %v950
    %s998 = scalar_lea.vmem [#allocation6], 3
    %v999 = vld [vmem:[%s998] ss:$8 sm:$0xf]
    %v1000 = vld [vmem:[%s998] ss:$8 sm:$0xf0]
    %v1001 = vor.u32 %v999, %v1000
    %s1002 = scalar_lea.vmem [#allocation6], 67
    %v1003 = vld [vmem:[%s1002] ss:$8 sm:$0xf]
    %v1004 = vld [vmem:[%s1002] ss:$8 sm:$0xf0]
    %v1005 = vor.u32 %v1003, %v1004
    %v1008 = vperm.slane %v1001, 0
    %v1009 = vperm.slane %v1001, 1
    %v1010 = vperm.slane %v1001, 2
    %v1011 = vperm.slane %v1001, 3
    %v1012 = vperm.slane %v1001, 4
    %v1013 = vperm.slane %v1001, 5
    %v1014 = vperm.slane %v1001, 6
    %v1015 = vperm.slane %v1001, 7
    %v1016 = vperm.slane %v1005, 0
    %v1017 = vperm.slane %v1005, 1
    %v1018 = vperm.slane %v1005, 2
    %v1019 = vperm.slane %v1005, 3
    %v1020 = vperm.slane %v1005, 4
    %v1021 = vperm.slane %v1005, 5
    %v1022 = vperm.slane %v1005, 6
    %v1023 = vperm.slane %v1005, 7
    %v1040 = vmul.f32 %v983, %v1008
    %v1041 = vmul.f32 %v982, %v1009
    %v1042 = vmul.f32 %v997, %v1010
    %v1043 = vmul.f32 %v996, %v1011
    %v1044 = vmul.f32 %v995, %v1012
    %v1045 = vmul.f32 %v994, %v1013
    %v1046 = vmul.f32 %v993, %v1014
    %v1047 = vmul.f32 %v992, %v1015
    %v1048 = vmul.f32 %v991, %v1016
    %v1049 = vmul.f32 %v990, %v1017
    %v1050 = vmul.f32 %v989, %v1018
    %v1051 = vmul.f32 %v988, %v1019
    %v1052 = vmul.f32 %v987, %v1020
    %v1053 = vmul.f32 %v986, %v1021
    %v1054 = vmul.f32 %v985, %v1022
    %v1055 = vmul.f32 %v984, %v1023
    %v1072 = vrot.slane %v1040, 4
    %v1073 = vrot.slane %v1041, 4
    %v1074 = vrot.slane %v1042, 4
    %v1075 = vrot.slane %v1043, 4
    %v1076 = vrot.slane %v1044, 4
    %v1077 = vrot.slane %v1045, 4
    %v1078 = vrot.slane %v1046, 4
    %v1079 = vrot.slane %v1047, 4
    %v1080 = vrot.slane %v1048, 4
    %v1081 = vrot.slane %v1049, 4
    %v1082 = vrot.slane %v1050, 4
    %v1083 = vrot.slane %v1051, 4
    %v1084 = vrot.slane %v1052, 4
    %v1085 = vrot.slane %v1053, 4
    %v1086 = vrot.slane %v1054, 4
    %v1087 = vrot.slane %v1055, 4
    %1104 = vst [vmem:[#allocation2 + $0x80] sm:$0xf0] %v1072
    %1105 = vst [vmem:[#allocation2 + $0x88] sm:$0xf0] %v1073
    %1106 = vst [vmem:[#allocation2 + $0x90] sm:$0xf0] %v1074
    %1107 = vst [vmem:[#allocation2 + $0x98] sm:$0xf0] %v1075
    %1108 = vst [vmem:[#allocation2 + $0xa0] sm:$0xf0] %v1076
    %1109 = vst [vmem:[#allocation2 + $0xa8] sm:$0xf0] %v1077
    %1110 = vst [vmem:[#allocation2 + $0xb0] sm:$0xf0] %v1078
    %1111 = vst [vmem:[#allocation2 + $0xb8] sm:$0xf0] %v1079
    %1112 = vst [vmem:[#allocation2 + $0xc0] sm:$0xf0] %v1080
    %1113 = vst [vmem:[#allocation2 + $0xc8] sm:$0xf0] %v1081
    %1114 = vst [vmem:[#allocation2 + $0xd0] sm:$0xf0] %v1082
    %1115 = vst [vmem:[#allocation2 + $0xd8] sm:$0xf0] %v1083
    %1116 = vst [vmem:[#allocation2 + $0xe0] sm:$0xf0] %v1084
    %1117 = vst [vmem:[#allocation2 + $0xe8] sm:$0xf0] %v1085
    %1118 = vst [vmem:[#allocation2 + $0xf0] sm:$0xf0] %v1086
    %1119 = vst [vmem:[#allocation2 + $0xf8] sm:$0xf0] %v1087
    %s1120 = scalar_lea.vmem [#allocation6], 4
    %v1121 = vld [vmem:[%s1120] ss:$8 sm:$0xf]
    %v1122 = vld [vmem:[%s1120] ss:$8 sm:$0xf0]
    %v1123 = vor.u32 %v1121, %v1122
    %s1124 = scalar_lea.vmem [#allocation6], 68
    %v1125 = vld [vmem:[%s1124] ss:$8 sm:$0xf]
    %v1126 = vld [vmem:[%s1124] ss:$8 sm:$0xf0]
    %v1127 = vor.u32 %v1125, %v1126
    %v1130 = vperm.slane %v1123, 0
    %v1131 = vperm.slane %v1123, 1
    %v1132 = vperm.slane %v1123, 2
    %v1133 = vperm.slane %v1123, 3
    %v1134 = vperm.slane %v1123, 4
    %v1135 = vperm.slane %v1123, 5
    %v1136 = vperm.slane %v1123, 6
    %v1137 = vperm.slane %v1123, 7
    %v1138 = vperm.slane %v1127, 0
    %v1139 = vperm.slane %v1127, 1
    %v1140 = vperm.slane %v1127, 2
    %v1141 = vperm.slane %v1127, 3
    %v1142 = vperm.slane %v1127, 4
    %v1143 = vperm.slane %v1127, 5
    %v1144 = vperm.slane %v1127, 6
    %v1145 = vperm.slane %v1127, 7
    %v1162 = vmul.f32 %v481, %v1130
    %v1163 = vmul.f32 %v482, %v1131
    %v1164 = vmul.f32 %v467, %v1132
    %v1165 = vmul.f32 %v468, %v1133
    %v1166 = vmul.f32 %v469, %v1134
    %v1167 = vmul.f32 %v470, %v1135
    %v1168 = vmul.f32 %v471, %v1136
    %v1169 = vmul.f32 %v472, %v1137
    %v1170 = vmul.f32 %v473, %v1138
    %v1171 = vmul.f32 %v474, %v1139
    %v1172 = vmul.f32 %v475, %v1140
    %v1173 = vmul.f32 %v476, %v1141
    %v1174 = vmul.f32 %v477, %v1142
    %v1175 = vmul.f32 %v478, %v1143
    %v1176 = vmul.f32 %v479, %v1144
    %v1177 = vmul.f32 %v480, %v1145
    %1178 = vst [vmem:[#allocation2 + $0x100] sm:$0xf] %v1162
    %1179 = vst [vmem:[#allocation2 + $0x108] sm:$0xf] %v1163
    %1180 = vst [vmem:[#allocation2 + $0x110] sm:$0xf] %v1164
    %1181 = vst [vmem:[#allocation2 + $0x118] sm:$0xf] %v1165
    %1182 = vst [vmem:[#allocation2 + $0x120] sm:$0xf] %v1166
    %1183 = vst [vmem:[#allocation2 + $0x128] sm:$0xf] %v1167
    %1184 = vst [vmem:[#allocation2 + $0x130] sm:$0xf] %v1168
    %1185 = vst [vmem:[#allocation2 + $0x138] sm:$0xf] %v1169
    %1186 = vst [vmem:[#allocation2 + $0x140] sm:$0xf] %v1170
    %1187 = vst [vmem:[#allocation2 + $0x148] sm:$0xf] %v1171
    %1188 = vst [vmem:[#allocation2 + $0x150] sm:$0xf] %v1172
    %1189 = vst [vmem:[#allocation2 + $0x158] sm:$0xf] %v1173
    %1190 = vst [vmem:[#allocation2 + $0x160] sm:$0xf] %v1174
    %1191 = vst [vmem:[#allocation2 + $0x168] sm:$0xf] %v1175
    %1192 = vst [vmem:[#allocation2 + $0x170] sm:$0xf] %v1176
    %1193 = vst [vmem:[#allocation2 + $0x178] sm:$0xf] %v1177
    %1194 = vrot.lane.b32.xlu0 %v467, 127
    %v1195 = vpop.permute.xlu0 %1194
    %1196 = vrot.lane.b32.xlu0 %v468, 127
    %v1197 = vpop.permute.xlu0 %1196
    %1198 = vrot.lane.b32.xlu0 %v469, 127
    %v1199 = vpop.permute.xlu0 %1198
    %1200 = vrot.lane.b32.xlu0 %v470, 127
    %v1201 = vpop.permute.xlu0 %1200
    %1202 = vrot.lane.b32.xlu0 %v471, 127
    %v1203 = vpop.permute.xlu0 %1202
    %1204 = vrot.lane.b32.xlu0 %v472, 127
    %v1205 = vpop.permute.xlu0 %1204
    %1206 = vrot.lane.b32.xlu0 %v473, 127
    %v1207 = vpop.permute.xlu0 %1206
    %1208 = vrot.lane.b32.xlu0 %v474, 127
    %v1209 = vpop.permute.xlu0 %1208
    %1210 = vrot.lane.b32.xlu0 %v475, 127
    %v1211 = vpop.permute.xlu0 %1210
    %1212 = vrot.lane.b32.xlu0 %v476, 127
    %v1213 = vpop.permute.xlu0 %1212
    %1214 = vrot.lane.b32.xlu0 %v477, 127
    %v1215 = vpop.permute.xlu0 %1214
    %1216 = vrot.lane.b32.xlu0 %v478, 127
    %v1217 = vpop.permute.xlu0 %1216
    %1218 = vrot.lane.b32.xlu0 %v479, 127
    %v1219 = vpop.permute.xlu0 %1218
    %1220 = vrot.lane.b32.xlu0 %v480, 127
    %v1221 = vpop.permute.xlu0 %1220
    %1222 = vrot.lane.b32.xlu0 %v481, 127
    %v1223 = vpop.permute.xlu0 %1222
    %1224 = vrot.lane.b32.xlu0 %v482, 127
    %v1225 = vpop.permute.xlu0 %1224
    %vm1226 = vcmp.lt.s32.totalorder %v564, 127
    %v1227 = vsel %vm1226, %v1223, %v1225
    %v1228 = vsel %vm1226, %v1221, %v1223
    %v1229 = vsel %vm1226, %v1219, %v1221
    %v1230 = vsel %vm1226, %v1217, %v1219
    %v1231 = vsel %vm1226, %v1215, %v1217
    %v1232 = vsel %vm1226, %v1213, %v1215
    %v1233 = vsel %vm1226, %v1211, %v1213
    %v1234 = vsel %vm1226, %v1209, %v1211
    %v1235 = vsel %vm1226, %v1207, %v1209
    %v1236 = vsel %vm1226, %v1205, %v1207
    %v1237 = vsel %vm1226, %v1203, %v1205
    %v1238 = vsel %vm1226, %v1201, %v1203
    %v1239 = vsel %vm1226, %v1199, %v1201
    %v1240 = vsel %vm1226, %v1197, %v1199
    %v1241 = vsel %vm1226, %v1195, %v1197
    %v1242 = vsel %vm1226, %v1225, %v1195
    %s1243 = scalar_lea.vmem [#allocation6], 5
    %v1244 = vld [vmem:[%s1243] ss:$8 sm:$0xf]
    %v1245 = vld [vmem:[%s1243] ss:$8 sm:$0xf0]
    %v1246 = vor.u32 %v1244, %v1245
    %s1247 = scalar_lea.vmem [#allocation6], 69
    %v1248 = vld [vmem:[%s1247] ss:$8 sm:$0xf]
    %v1249 = vld [vmem:[%s1247] ss:$8 sm:$0xf0]
    %v1250 = vor.u32 %v1248, %v1249
    %v1253 = vperm.slane %v1246, 0
    %v1254 = vperm.slane %v1246, 1
    %v1255 = vperm.slane %v1246, 2
    %v1256 = vperm.slane %v1246, 3
    %v1257 = vperm.slane %v1246, 4
    %v1258 = vperm.slane %v1246, 5
    %v1259 = vperm.slane %v1246, 6
    %v1260 = vperm.slane %v1246, 7
    %v1261 = vperm.slane %v1250, 0
    %v1262 = vperm.slane %v1250, 1
    %v1263 = vperm.slane %v1250, 2
    %v1264 = vperm.slane %v1250, 3
    %v1265 = vperm.slane %v1250, 4
    %v1266 = vperm.slane %v1250, 5
    %v1267 = vperm.slane %v1250, 6
    %v1268 = vperm.slane %v1250, 7
    %v1285 = vmul.f32 %v1227, %v1253
    %v1286 = vmul.f32 %v1242, %v1254
    %v1287 = vmul.f32 %v1241, %v1255
    %v1288 = vmul.f32 %v1240, %v1256
    %v1289 = vmul.f32 %v1239, %v1257
    %v1290 = vmul.f32 %v1238, %v1258
    %v1291 = vmul.f32 %v1237, %v1259
    %v1292 = vmul.f32 %v1236, %v1260
    %v1293 = vmul.f32 %v1235, %v1261
    %v1294 = vmul.f32 %v1234, %v1262
    %v1295 = vmul.f32 %v1233, %v1263
    %v1296 = vmul.f32 %v1232, %v1264
    %v1297 = vmul.f32 %v1231, %v1265
    %v1298 = vmul.f32 %v1230, %v1266
    %v1299 = vmul.f32 %v1229, %v1267
    %v1300 = vmul.f32 %v1228, %v1268
    %v1317 = vrot.slane %v1285, 4
    %v1318 = vrot.slane %v1286, 4
    %v1319 = vrot.slane %v1287, 4
    %v1320 = vrot.slane %v1288, 4
    %v1321 = vrot.slane %v1289, 4
    %v1322 = vrot.slane %v1290, 4
    %v1323 = vrot.slane %v1291, 4
    %v1324 = vrot.slane %v1292, 4
    %v1325 = vrot.slane %v1293, 4
    %v1326 = vrot.slane %v1294, 4
    %v1327 = vrot.slane %v1295, 4
    %v1328 = vrot.slane %v1296, 4
    %v1329 = vrot.slane %v1297, 4
    %v1330 = vrot.slane %v1298, 4
    %v1331 = vrot.slane %v1299, 4
    %v1332 = vrot.slane %v1300, 4
    %1349 = vst [vmem:[#allocation2 + $0x100] sm:$0xf0] %v1317
    %1350 = vst [vmem:[#allocation2 + $0x108] sm:$0xf0] %v1318
    %1351 = vst [vmem:[#allocation2 + $0x110] sm:$0xf0] %v1319
    %1352 = vst [vmem:[#allocation2 + $0x118] sm:$0xf0] %v1320
    %1353 = vst [vmem:[#allocation2 + $0x120] sm:$0xf0] %v1321
    %1354 = vst [vmem:[#allocation2 + $0x128] sm:$0xf0] %v1322
    %1355 = vst [vmem:[#allocation2 + $0x130] sm:$0xf0] %v1323
    %1356 = vst [vmem:[#allocation2 + $0x138] sm:$0xf0] %v1324
    %1357 = vst [vmem:[#allocation2 + $0x140] sm:$0xf0] %v1325
    %1358 = vst [vmem:[#allocation2 + $0x148] sm:$0xf0] %v1326
    %1359 = vst [vmem:[#allocation2 + $0x150] sm:$0xf0] %v1327
    %1360 = vst [vmem:[#allocation2 + $0x158] sm:$0xf0] %v1328
    %1361 = vst [vmem:[#allocation2 + $0x160] sm:$0xf0] %v1329
    %1362 = vst [vmem:[#allocation2 + $0x168] sm:$0xf0] %v1330
    %1363 = vst [vmem:[#allocation2 + $0x170] sm:$0xf0] %v1331
    %1364 = vst [vmem:[#allocation2 + $0x178] sm:$0xf0] %v1332
    %1365 = vrot.lane.b32.xlu0 %v467, 113
    %v1366 = vpop.permute.xlu0 %1365
    %1367 = vrot.lane.b32.xlu0 %v468, 113
    %v1368 = vpop.permute.xlu0 %1367
    %1369 = vrot.lane.b32.xlu0 %v469, 113
    %v1370 = vpop.permute.xlu0 %1369
    %1371 = vrot.lane.b32.xlu0 %v470, 113
    %v1372 = vpop.permute.xlu0 %1371
    %1373 = vrot.lane.b32.xlu0 %v471, 113
    %v1374 = vpop.permute.xlu0 %1373
    %1375 = vrot.lane.b32.xlu0 %v472, 113
    %v1376 = vpop.permute.xlu0 %1375
    %1377 = vrot.lane.b32.xlu0 %v473, 113
    %v1378 = vpop.permute.xlu0 %1377
    %1379 = vrot.lane.b32.xlu0 %v474, 113
    %v1380 = vpop.permute.xlu0 %1379
    %1381 = vrot.lane.b32.xlu0 %v475, 113
    %v1382 = vpop.permute.xlu0 %1381
    %1383 = vrot.lane.b32.xlu0 %v476, 113
    %v1384 = vpop.permute.xlu0 %1383
    %1385 = vrot.lane.b32.xlu0 %v477, 113
    %v1386 = vpop.permute.xlu0 %1385
    %1387 = vrot.lane.b32.xlu0 %v478, 113
    %v1388 = vpop.permute.xlu0 %1387
    %1389 = vrot.lane.b32.xlu0 %v479, 113
    %v1390 = vpop.permute.xlu0 %1389
    %1391 = vrot.lane.b32.xlu0 %v480, 113
    %v1392 = vpop.permute.xlu0 %1391
    %1393 = vrot.lane.b32.xlu0 %v481, 113
    %v1394 = vpop.permute.xlu0 %1393
    %1395 = vrot.lane.b32.xlu0 %v482, 113
    %v1396 = vpop.permute.xlu0 %1395
    %vm1397 = vcmp.lt.s32.totalorder %v564, 113
    %v1398 = vsel %vm1397, %v1394, %v1396
    %v1399 = vsel %vm1397, %v1392, %v1394
    %v1400 = vsel %vm1397, %v1390, %v1392
    %v1401 = vsel %vm1397, %v1388, %v1390
    %v1402 = vsel %vm1397, %v1386, %v1388
    %v1403 = vsel %vm1397, %v1384, %v1386
    %v1404 = vsel %vm1397, %v1382, %v1384
    %v1405 = vsel %vm1397, %v1380, %v1382
    %v1406 = vsel %vm1397, %v1378, %v1380
    %v1407 = vsel %vm1397, %v1376, %v1378
    %v1408 = vsel %vm1397, %v1374, %v1376
    %v1409 = vsel %vm1397, %v1372, %v1374
    %v1410 = vsel %vm1397, %v1370, %v1372
    %v1411 = vsel %vm1397, %v1368, %v1370
    %v1412 = vsel %vm1397, %v1366, %v1368
    %v1413 = vsel %vm1397, %v1396, %v1366
    %s1414 = scalar_lea.vmem [#allocation6], 6
    %v1415 = vld [vmem:[%s1414] ss:$8 sm:$0xf]
    %v1416 = vld [vmem:[%s1414] ss:$8 sm:$0xf0]
    %v1417 = vor.u32 %v1415, %v1416
    %s1418 = scalar_lea.vmem [#allocation6], 70
    %v1419 = vld [vmem:[%s1418] ss:$8 sm:$0xf]
    %v1420 = vld [vmem:[%s1418] ss:$8 sm:$0xf0]
    %v1421 = vor.u32 %v1419, %v1420
    %v1424 = vperm.slane %v1417, 0
    %v1425 = vperm.slane %v1417, 1
    %v1426 = vperm.slane %v1417, 2
    %v1427 = vperm.slane %v1417, 3
    %v1428 = vperm.slane %v1417, 4
    %v1429 = vperm.slane %v1417, 5
    %v1430 = vperm.slane %v1417, 6
    %v1431 = vperm.slane %v1417, 7
    %v1432 = vperm.slane %v1421, 0
    %v1433 = vperm.slane %v1421, 1
    %v1434 = vperm.slane %v1421, 2
    %v1435 = vperm.slane %v1421, 3
    %v1436 = vperm.slane %v1421, 4
    %v1437 = vperm.slane %v1421, 5
    %v1438 = vperm.slane %v1421, 6
    %v1439 = vperm.slane %v1421, 7
    %v1456 = vmul.f32 %v1398, %v1424
    %v1457 = vmul.f32 %v1413, %v1425
    %v1458 = vmul.f32 %v1412, %v1426
    %v1459 = vmul.f32 %v1411, %v1427
    %v1460 = vmul.f32 %v1410, %v1428
    %v1461 = vmul.f32 %v1409, %v1429
    %v1462 = vmul.f32 %v1408, %v1430
    %v1463 = vmul.f32 %v1407, %v1431
    %v1464 = vmul.f32 %v1406, %v1432
    %v1465 = vmul.f32 %v1405, %v1433
    %v1466 = vmul.f32 %v1404, %v1434
    %v1467 = vmul.f32 %v1403, %v1435
    %v1468 = vmul.f32 %v1402, %v1436
    %v1469 = vmul.f32 %v1401, %v1437
    %v1470 = vmul.f32 %v1400, %v1438
    %v1471 = vmul.f32 %v1399, %v1439
    %1472 = vst [vmem:[#allocation2 + $0x180] sm:$0xf] %v1456
    %1473 = vst [vmem:[#allocation2 + $0x188] sm:$0xf] %v1457
    %1474 = vst [vmem:[#allocation2 + $0x190] sm:$0xf] %v1458
    %1475 = vst [vmem:[#allocation2 + $0x198] sm:$0xf] %v1459
    %1476 = vst [vmem:[#allocation2 + $0x1a0] sm:$0xf] %v1460
    %1477 = vst [vmem:[#allocation2 + $0x1a8] sm:$0xf] %v1461
    %1478 = vst [vmem:[#allocation2 + $0x1b0] sm:$0xf] %v1462
    %1479 = vst [vmem:[#allocation2 + $0x1b8] sm:$0xf] %v1463
    %1480 = vst [vmem:[#allocation2 + $0x1c0] sm:$0xf] %v1464
    %1481 = vst [vmem:[#allocation2 + $0x1c8] sm:$0xf] %v1465
    %1482 = vst [vmem:[#allocation2 + $0x1d0] sm:$0xf] %v1466
    %1483 = vst [vmem:[#allocation2 + $0x1d8] sm:$0xf] %v1467
    %1484 = vst [vmem:[#allocation2 + $0x1e0] sm:$0xf] %v1468
    %1485 = vst [vmem:[#allocation2 + $0x1e8] sm:$0xf] %v1469
    %1486 = vst [vmem:[#allocation2 + $0x1f0] sm:$0xf] %v1470
    %1487 = vst [vmem:[#allocation2 + $0x1f8] sm:$0xf] %v1471
    %1488 = vrot.lane.b32.xlu0 %v467, 112
    %v1489 = vpop.permute.xlu0 %1488
    %1490 = vrot.lane.b32.xlu0 %v468, 112
    %v1491 = vpop.permute.xlu0 %1490
    %1492 = vrot.lane.b32.xlu0 %v469, 112
    %v1493 = vpop.permute.xlu0 %1492
    %1494 = vrot.lane.b32.xlu0 %v470, 112
    %v1495 = vpop.permute.xlu0 %1494
    %1496 = vrot.lane.b32.xlu0 %v471, 112
    %v1497 = vpop.permute.xlu0 %1496
    %1498 = vrot.lane.b32.xlu0 %v472, 112
    %v1499 = vpop.permute.xlu0 %1498
    %1500 = vrot.lane.b32.xlu0 %v473, 112
    %v1501 = vpop.permute.xlu0 %1500
    %1502 = vrot.lane.b32.xlu0 %v474, 112
    %v1503 = vpop.permute.xlu0 %1502
    %1504 = vrot.lane.b32.xlu0 %v475, 112
    %v1505 = vpop.permute.xlu0 %1504
    %1506 = vrot.lane.b32.xlu0 %v476, 112
    %v1507 = vpop.permute.xlu0 %1506
    %1508 = vrot.lane.b32.xlu0 %v477, 112
    %v1509 = vpop.permute.xlu0 %1508
    %1510 = vrot.lane.b32.xlu0 %v478, 112
    %v1511 = vpop.permute.xlu0 %1510
    %1512 = vrot.lane.b32.xlu0 %v479, 112
    %v1513 = vpop.permute.xlu0 %1512
    %1514 = vrot.lane.b32.xlu0 %v480, 112
    %v1515 = vpop.permute.xlu0 %1514
    %1516 = vrot.lane.b32.xlu0 %v481, 112
    %v1517 = vpop.permute.xlu0 %1516
    %1518 = vrot.lane.b32.xlu0 %v482, 112
    %v1519 = vpop.permute.xlu0 %1518
    %vm1520 = vcmp.lt.s32.totalorder %v564, 112
    %v1521 = vsel %vm1520, %v1517, %v1519
    %v1522 = vsel %vm1520, %v1515, %v1517
    %v1523 = vsel %vm1520, %v1513, %v1515
    %v1524 = vsel %vm1520, %v1511, %v1513
    %v1525 = vsel %vm1520, %v1509, %v1511
    %v1526 = vsel %vm1520, %v1507, %v1509
    %v1527 = vsel %vm1520, %v1505, %v1507
    %v1528 = vsel %vm1520, %v1503, %v1505
    %v1529 = vsel %vm1520, %v1501, %v1503
    %v1530 = vsel %vm1520, %v1499, %v1501
    %v1531 = vsel %vm1520, %v1497, %v1499
    %v1532 = vsel %vm1520, %v1495, %v1497
    %v1533 = vsel %vm1520, %v1493, %v1495
    %v1534 = vsel %vm1520, %v1491, %v1493
    %v1535 = vsel %vm1520, %v1489, %v1491
    %v1536 = vsel %vm1520, %v1519, %v1489
    %s1537 = scalar_lea.vmem [#allocation6], 7
    %v1538 = vld [vmem:[%s1537] ss:$8 sm:$0xf]
    %v1539 = vld [vmem:[%s1537] ss:$8 sm:$0xf0]
    %v1540 = vor.u32 %v1538, %v1539
    %s1541 = scalar_lea.vmem [#allocation6], 71
    %v1542 = vld [vmem:[%s1541] ss:$8 sm:$0xf]
    %v1543 = vld [vmem:[%s1541] ss:$8 sm:$0xf0]
    %v1544 = vor.u32 %v1542, %v1543
    %v1547 = vperm.slane %v1540, 0
    %v1548 = vperm.slane %v1540, 1
    %v1549 = vperm.slane %v1540, 2
    %v1550 = vperm.slane %v1540, 3
    %v1551 = vperm.slane %v1540, 4
    %v1552 = vperm.slane %v1540, 5
    %v1553 = vperm.slane %v1540, 6
    %v1554 = vperm.slane %v1540, 7
    %v1555 = vperm.slane %v1544, 0
    %v1556 = vperm.slane %v1544, 1
    %v1557 = vperm.slane %v1544, 2
    %v1558 = vperm.slane %v1544, 3
    %v1559 = vperm.slane %v1544, 4
    %v1560 = vperm.slane %v1544, 5
    %v1561 = vperm.slane %v1544, 6
    %v1562 = vperm.slane %v1544, 7
    %v1579 = vmul.f32 %v1521, %v1547
    %v1580 = vmul.f32 %v1536, %v1548
    %v1581 = vmul.f32 %v1535, %v1549
    %v1582 = vmul.f32 %v1534, %v1550
    %v1583 = vmul.f32 %v1533, %v1551
    %v1584 = vmul.f32 %v1532, %v1552
    %v1585 = vmul.f32 %v1531, %v1553
    %v1586 = vmul.f32 %v1530, %v1554
    %v1587 = vmul.f32 %v1529, %v1555
    %v1588 = vmul.f32 %v1528, %v1556
    %v1589 = vmul.f32 %v1527, %v1557
    %v1590 = vmul.f32 %v1526, %v1558
    %v1591 = vmul.f32 %v1525, %v1559
    %v1592 = vmul.f32 %v1524, %v1560
    %v1593 = vmul.f32 %v1523, %v1561
    %v1594 = vmul.f32 %v1522, %v1562
    %v1611 = vrot.slane %v1579, 4
    %v1612 = vrot.slane %v1580, 4
    %v1613 = vrot.slane %v1581, 4
    %v1614 = vrot.slane %v1582, 4
    %v1615 = vrot.slane %v1583, 4
    %v1616 = vrot.slane %v1584, 4
    %v1617 = vrot.slane %v1585, 4
    %v1618 = vrot.slane %v1586, 4
    %v1619 = vrot.slane %v1587, 4
    %v1620 = vrot.slane %v1588, 4
    %v1621 = vrot.slane %v1589, 4
    %v1622 = vrot.slane %v1590, 4
    %v1623 = vrot.slane %v1591, 4
    %v1624 = vrot.slane %v1592, 4
    %v1625 = vrot.slane %v1593, 4
    %v1626 = vrot.slane %v1594, 4
    %1643 = vst [vmem:[#allocation2 + $0x180] sm:$0xf0] %v1611
    %1644 = vst [vmem:[#allocation2 + $0x188] sm:$0xf0] %v1612
    %1645 = vst [vmem:[#allocation2 + $0x190] sm:$0xf0] %v1613
    %1646 = vst [vmem:[#allocation2 + $0x198] sm:$0xf0] %v1614
    %1647 = vst [vmem:[#allocation2 + $0x1a0] sm:$0xf0] %v1615
    %1648 = vst [vmem:[#allocation2 + $0x1a8] sm:$0xf0] %v1616
    %1649 = vst [vmem:[#allocation2 + $0x1b0] sm:$0xf0] %v1617
    %1650 = vst [vmem:[#allocation2 + $0x1b8] sm:$0xf0] %v1618
    %1651 = vst [vmem:[#allocation2 + $0x1c0] sm:$0xf0] %v1619
    %1652 = vst [vmem:[#allocation2 + $0x1c8] sm:$0xf0] %v1620
    %1653 = vst [vmem:[#allocation2 + $0x1d0] sm:$0xf0] %v1621
    %1654 = vst [vmem:[#allocation2 + $0x1d8] sm:$0xf0] %v1622
    %1655 = vst [vmem:[#allocation2 + $0x1e0] sm:$0xf0] %v1623
    %1656 = vst [vmem:[#allocation2 + $0x1e8] sm:$0xf0] %v1624
    %1657 = vst [vmem:[#allocation2 + $0x1f0] sm:$0xf0] %v1625
    %1658 = vst [vmem:[#allocation2 + $0x1f8] sm:$0xf0] %v1626
    %1659 = vrot.lane.b32.xlu0 %v467, 111
    %v1660 = vpop.permute.xlu0 %1659
    %1661 = vrot.lane.b32.xlu0 %v468, 111
    %v1662 = vpop.permute.xlu0 %1661
    %1663 = vrot.lane.b32.xlu0 %v469, 111
    %v1664 = vpop.permute.xlu0 %1663
    %1665 = vrot.lane.b32.xlu0 %v470, 111
    %v1666 = vpop.permute.xlu0 %1665
    %1667 = vrot.lane.b32.xlu0 %v471, 111
    %v1668 = vpop.permute.xlu0 %1667
    %1669 = vrot.lane.b32.xlu0 %v472, 111
    %v1670 = vpop.permute.xlu0 %1669
    %1671 = vrot.lane.b32.xlu0 %v473, 111
    %v1672 = vpop.permute.xlu0 %1671
    %1673 = vrot.lane.b32.xlu0 %v474, 111
    %v1674 = vpop.permute.xlu0 %1673
    %1675 = vrot.lane.b32.xlu0 %v475, 111
    %v1676 = vpop.permute.xlu0 %1675
    %1677 = vrot.lane.b32.xlu0 %v476, 111
    %v1678 = vpop.permute.xlu0 %1677
    %1679 = vrot.lane.b32.xlu0 %v477, 111
    %v1680 = vpop.permute.xlu0 %1679
    %1681 = vrot.lane.b32.xlu0 %v478, 111
    %v1682 = vpop.permute.xlu0 %1681
    %1683 = vrot.lane.b32.xlu0 %v479, 111
    %v1684 = vpop.permute.xlu0 %1683
    %1685 = vrot.lane.b32.xlu0 %v480, 111
    %v1686 = vpop.permute.xlu0 %1685
    %1687 = vrot.lane.b32.xlu0 %v481, 111
    %v1688 = vpop.permute.xlu0 %1687
    %1689 = vrot.lane.b32.xlu0 %v482, 111
    %v1690 = vpop.permute.xlu0 %1689
    %vm1691 = vcmp.lt.s32.totalorder %v564, 111
    %v1692 = vsel %vm1691, %v1688, %v1690
    %v1693 = vsel %vm1691, %v1686, %v1688
    %v1694 = vsel %vm1691, %v1684, %v1686
    %v1695 = vsel %vm1691, %v1682, %v1684
    %v1696 = vsel %vm1691, %v1680, %v1682
    %v1697 = vsel %vm1691, %v1678, %v1680
    %v1698 = vsel %vm1691, %v1676, %v1678
    %v1699 = vsel %vm1691, %v1674, %v1676
    %v1700 = vsel %vm1691, %v1672, %v1674
    %v1701 = vsel %vm1691, %v1670, %v1672
    %v1702 = vsel %vm1691, %v1668, %v1670
    %v1703 = vsel %vm1691, %v1666, %v1668
    %v1704 = vsel %vm1691, %v1664, %v1666
    %v1705 = vsel %vm1691, %v1662, %v1664
    %v1706 = vsel %vm1691, %v1660, %v1662
    %v1707 = vsel %vm1691, %v1690, %v1660
    %s1708 = scalar_lea.vmem [#allocation6], 128
    %v1709 = vld [vmem:[%s1708] ss:$8 sm:$0xf]
    %v1710 = vld [vmem:[%s1708] ss:$8 sm:$0xf0]
    %v1711 = vor.u32 %v1709, %v1710
    %s1712 = scalar_lea.vmem [#allocation6], 192
    %v1713 = vld [vmem:[%s1712] ss:$8 sm:$0xf]
    %v1714 = vld [vmem:[%s1712] ss:$8 sm:$0xf0]
    %v1715 = vor.u32 %v1713, %v1714
    %v1718 = vperm.slane %v1711, 0
    %v1719 = vperm.slane %v1711, 1
    %v1720 = vperm.slane %v1711, 2
    %v1721 = vperm.slane %v1711, 3
    %v1722 = vperm.slane %v1711, 4
    %v1723 = vperm.slane %v1711, 5
    %v1724 = vperm.slane %v1711, 6
    %v1725 = vperm.slane %v1711, 7
    %v1726 = vperm.slane %v1715, 0
    %v1727 = vperm.slane %v1715, 1
    %v1728 = vperm.slane %v1715, 2
    %v1729 = vperm.slane %v1715, 3
    %v1730 = vperm.slane %v1715, 4
    %v1731 = vperm.slane %v1715, 5
    %v1732 = vperm.slane %v1715, 6
    %v1733 = vperm.slane %v1715, 7
    %v1750 = vmul.f32 %v1692, %v1718
    %v1751 = vmul.f32 %v1707, %v1719
    %v1752 = vmul.f32 %v1706, %v1720
    %v1753 = vmul.f32 %v1705, %v1721
    %v1754 = vmul.f32 %v1704, %v1722
    %v1755 = vmul.f32 %v1703, %v1723
    %v1756 = vmul.f32 %v1702, %v1724
    %v1757 = vmul.f32 %v1701, %v1725
    %v1758 = vmul.f32 %v1700, %v1726
    %v1759 = vmul.f32 %v1699, %v1727
    %v1760 = vmul.f32 %v1698, %v1728
    %v1761 = vmul.f32 %v1697, %v1729
    %v1762 = vmul.f32 %v1696, %v1730
    %v1763 = vmul.f32 %v1695, %v1731
    %v1764 = vmul.f32 %v1694, %v1732
    %v1765 = vmul.f32 %v1693, %v1733
    %1766 = vst [vmem:[#allocation2 + $0x200] sm:$0xf] %v1750
    %1767 = vst [vmem:[#allocation2 + $0x208] sm:$0xf] %v1751
    %1768 = vst [vmem:[#allocation2 + $0x210] sm:$0xf] %v1752
    %1769 = vst [vmem:[#allocation2 + $0x218] sm:$0xf] %v1753
    %1770 = vst [vmem:[#allocation2 + $0x220] sm:$0xf] %v1754
    %1771 = vst [vmem:[#allocation2 + $0x228] sm:$0xf] %v1755
    %1772 = vst [vmem:[#allocation2 + $0x230] sm:$0xf] %v1756
    %1773 = vst [vmem:[#allocation2 + $0x238] sm:$0xf] %v1757
    %1774 = vst [vmem:[#allocation2 + $0x240] sm:$0xf] %v1758
    %1775 = vst [vmem:[#allocation2 + $0x248] sm:$0xf] %v1759
    %1776 = vst [vmem:[#allocation2 + $0x250] sm:$0xf] %v1760
    %1777 = vst [vmem:[#allocation2 + $0x258] sm:$0xf] %v1761
    %1778 = vst [vmem:[#allocation2 + $0x260] sm:$0xf] %v1762
    %1779 = vst [vmem:[#allocation2 + $0x268] sm:$0xf] %v1763
    %1780 = vst [vmem:[#allocation2 + $0x270] sm:$0xf] %v1764
    %1781 = vst [vmem:[#allocation2 + $0x278] sm:$0xf] %v1765
    %s1782 = scalar_lea.vmem [#allocation6], 129
    %v1783 = vld [vmem:[%s1782] ss:$8 sm:$0xf]
    %v1784 = vld [vmem:[%s1782] ss:$8 sm:$0xf0]
    %v1785 = vor.u32 %v1783, %v1784
    %s1786 = scalar_lea.vmem [#allocation6], 193
    %v1787 = vld [vmem:[%s1786] ss:$8 sm:$0xf]
    %v1788 = vld [vmem:[%s1786] ss:$8 sm:$0xf0]
    %v1789 = vor.u32 %v1787, %v1788
    %v1792 = vperm.slane %v1785, 0
    %v1793 = vperm.slane %v1785, 1
    %v1794 = vperm.slane %v1785, 2
    %v1795 = vperm.slane %v1785, 3
    %v1796 = vperm.slane %v1785, 4
    %v1797 = vperm.slane %v1785, 5
    %v1798 = vperm.slane %v1785, 6
    %v1799 = vperm.slane %v1785, 7
    %v1800 = vperm.slane %v1789, 0
    %v1801 = vperm.slane %v1789, 1
    %v1802 = vperm.slane %v1789, 2
    %v1803 = vperm.slane %v1789, 3
    %v1804 = vperm.slane %v1789, 4
    %v1805 = vperm.slane %v1789, 5
    %v1806 = vperm.slane %v1789, 6
    %v1807 = vperm.slane %v1789, 7
    %v1824 = vmul.f32 %v581, %v1792
    %v1825 = vmul.f32 %v580, %v1793
    %v1826 = vmul.f32 %v579, %v1794
    %v1827 = vmul.f32 %v578, %v1795
    %v1828 = vmul.f32 %v577, %v1796
    %v1829 = vmul.f32 %v576, %v1797
    %v1830 = vmul.f32 %v575, %v1798
    %v1831 = vmul.f32 %v574, %v1799
    %v1832 = vmul.f32 %v573, %v1800
    %v1833 = vmul.f32 %v572, %v1801
    %v1834 = vmul.f32 %v571, %v1802
    %v1835 = vmul.f32 %v570, %v1803
    %v1836 = vmul.f32 %v569, %v1804
    %v1837 = vmul.f32 %v568, %v1805
    %v1838 = vmul.f32 %v567, %v1806
    %v1839 = vmul.f32 %v566, %v1807
    %v1856 = vrot.slane %v1824, 4
    %v1857 = vrot.slane %v1825, 4
    %v1858 = vrot.slane %v1826, 4
    %v1859 = vrot.slane %v1827, 4
    %v1860 = vrot.slane %v1828, 4
    %v1861 = vrot.slane %v1829, 4
    %v1862 = vrot.slane %v1830, 4
    %v1863 = vrot.slane %v1831, 4
    %v1864 = vrot.slane %v1832, 4
    %v1865 = vrot.slane %v1833, 4
    %v1866 = vrot.slane %v1834, 4
    %v1867 = vrot.slane %v1835, 4
    %v1868 = vrot.slane %v1836, 4
    %v1869 = vrot.slane %v1837, 4
    %v1870 = vrot.slane %v1838, 4
    %v1871 = vrot.slane %v1839, 4
    %1888 = vst [vmem:[#allocation2 + $0x200] sm:$0xf0] %v1856
    %1889 = vst [vmem:[#allocation2 + $0x208] sm:$0xf0] %v1857
    %1890 = vst [vmem:[#allocation2 + $0x210] sm:$0xf0] %v1858
    %1891 = vst [vmem:[#allocation2 + $0x218] sm:$0xf0] %v1859
    %1892 = vst [vmem:[#allocation2 + $0x220] sm:$0xf0] %v1860
    %1893 = vst [vmem:[#allocation2 + $0x228] sm:$0xf0] %v1861
    %1894 = vst [vmem:[#allocation2 + $0x230] sm:$0xf0] %v1862
    %1895 = vst [vmem:[#allocation2 + $0x238] sm:$0xf0] %v1863
    %1896 = vst [vmem:[#allocation2 + $0x240] sm:$0xf0] %v1864
    %1897 = vst [vmem:[#allocation2 + $0x248] sm:$0xf0] %v1865
    %1898 = vst [vmem:[#allocation2 + $0x250] sm:$0xf0] %v1866
    %1899 = vst [vmem:[#allocation2 + $0x258] sm:$0xf0] %v1867
    %1900 = vst [vmem:[#allocation2 + $0x260] sm:$0xf0] %v1868
    %1901 = vst [vmem:[#allocation2 + $0x268] sm:$0xf0] %v1869
    %1902 = vst [vmem:[#allocation2 + $0x270] sm:$0xf0] %v1870
    %1903 = vst [vmem:[#allocation2 + $0x278] sm:$0xf0] %v1871
    %s1904 = scalar_lea.vmem [#allocation6], 130
    %v1905 = vld [vmem:[%s1904] ss:$8 sm:$0xf]
    %v1906 = vld [vmem:[%s1904] ss:$8 sm:$0xf0]
    %v1907 = vor.u32 %v1905, %v1906
    %s1908 = scalar_lea.vmem [#allocation6], 194
    %v1909 = vld [vmem:[%s1908] ss:$8 sm:$0xf]
    %v1910 = vld [vmem:[%s1908] ss:$8 sm:$0xf0]
    %v1911 = vor.u32 %v1909, %v1910
    %v1914 = vperm.slane %v1907, 0
    %v1915 = vperm.slane %v1907, 1
    %v1916 = vperm.slane %v1907, 2
    %v1917 = vperm.slane %v1907, 3
    %v1918 = vperm.slane %v1907, 4
    %v1919 = vperm.slane %v1907, 5
    %v1920 = vperm.slane %v1907, 6
    %v1921 = vperm.slane %v1907, 7
    %v1922 = vperm.slane %v1911, 0
    %v1923 = vperm.slane %v1911, 1
    %v1924 = vperm.slane %v1911, 2
    %v1925 = vperm.slane %v1911, 3
    %v1926 = vperm.slane %v1911, 4
    %v1927 = vperm.slane %v1911, 5
    %v1928 = vperm.slane %v1911, 6
    %v1929 = vperm.slane %v1911, 7
    %v1946 = vmul.f32 %v703, %v1914
    %v1947 = vmul.f32 %v702, %v1915
    %v1948 = vmul.f32 %v701, %v1916
    %v1949 = vmul.f32 %v700, %v1917
    %v1950 = vmul.f32 %v699, %v1918
    %v1951 = vmul.f32 %v698, %v1919
    %v1952 = vmul.f32 %v697, %v1920
    %v1953 = vmul.f32 %v696, %v1921
    %v1954 = vmul.f32 %v695, %v1922
    %v1955 = vmul.f32 %v694, %v1923
    %v1956 = vmul.f32 %v693, %v1924
    %v1957 = vmul.f32 %v692, %v1925
    %v1958 = vmul.f32 %v691, %v1926
    %v1959 = vmul.f32 %v690, %v1927
    %v1960 = vmul.f32 %v689, %v1928
    %v1961 = vmul.f32 %v688, %v1929
    %1962 = vst [vmem:[#allocation2 + $0x280] sm:$0xf] %v1946
    %1963 = vst [vmem:[#allocation2 + $0x288] sm:$0xf] %v1947
    %1964 = vst [vmem:[#allocation2 + $0x290] sm:$0xf] %v1948
    %1965 = vst [vmem:[#allocation2 + $0x298] sm:$0xf] %v1949
    %1966 = vst [vmem:[#allocation2 + $0x2a0] sm:$0xf] %v1950
    %1967 = vst [vmem:[#allocation2 + $0x2a8] sm:$0xf] %v1951
    %1968 = vst [vmem:[#allocation2 + $0x2b0] sm:$0xf] %v1952
    %1969 = vst [vmem:[#allocation2 + $0x2b8] sm:$0xf] %v1953
    %1970 = vst [vmem:[#allocation2 + $0x2c0] sm:$0xf] %v1954
    %1971 = vst [vmem:[#allocation2 + $0x2c8] sm:$0xf] %v1955
    %1972 = vst [vmem:[#allocation2 + $0x2d0] sm:$0xf] %v1956
    %1973 = vst [vmem:[#allocation2 + $0x2d8] sm:$0xf] %v1957
    %1974 = vst [vmem:[#allocation2 + $0x2e0] sm:$0xf] %v1958
    %1975 = vst [vmem:[#allocation2 + $0x2e8] sm:$0xf] %v1959
    %1976 = vst [vmem:[#allocation2 + $0x2f0] sm:$0xf] %v1960
    %1977 = vst [vmem:[#allocation2 + $0x2f8] sm:$0xf] %v1961
    %s1978 = scalar_lea.vmem [#allocation6], 131
    %v1979 = vld [vmem:[%s1978] ss:$8 sm:$0xf]
    %v1980 = vld [vmem:[%s1978] ss:$8 sm:$0xf0]
    %v1981 = vor.u32 %v1979, %v1980
    %s1982 = scalar_lea.vmem [#allocation6], 195
    %v1983 = vld [vmem:[%s1982] ss:$8 sm:$0xf]
    %v1984 = vld [vmem:[%s1982] ss:$8 sm:$0xf0]
    %v1985 = vor.u32 %v1983, %v1984
    %v1988 = vperm.slane %v1981, 0
    %v1989 = vperm.slane %v1981, 1
    %v1990 = vperm.slane %v1981, 2
    %v1991 = vperm.slane %v1981, 3
    %v1992 = vperm.slane %v1981, 4
    %v1993 = vperm.slane %v1981, 5
    %v1994 = vperm.slane %v1981, 6
    %v1995 = vperm.slane %v1981, 7
    %v1996 = vperm.slane %v1985, 0
    %v1997 = vperm.slane %v1985, 1
    %v1998 = vperm.slane %v1985, 2
    %v1999 = vperm.slane %v1985, 3
    %v2000 = vperm.slane %v1985, 4
    %v2001 = vperm.slane %v1985, 5
    %v2002 = vperm.slane %v1985, 6
    %v2003 = vperm.slane %v1985, 7
    %v2020 = vmul.f32 %v874, %v1988
    %v2021 = vmul.f32 %v873, %v1989
    %v2022 = vmul.f32 %v872, %v1990
    %v2023 = vmul.f32 %v871, %v1991
    %v2024 = vmul.f32 %v870, %v1992
    %v2025 = vmul.f32 %v869, %v1993
    %v2026 = vmul.f32 %v868, %v1994
    %v2027 = vmul.f32 %v867, %v1995
    %v2028 = vmul.f32 %v866, %v1996
    %v2029 = vmul.f32 %v865, %v1997
    %v2030 = vmul.f32 %v864, %v1998
    %v2031 = vmul.f32 %v863, %v1999
    %v2032 = vmul.f32 %v862, %v2000
    %v2033 = vmul.f32 %v861, %v2001
    %v2034 = vmul.f32 %v860, %v2002
    %v2035 = vmul.f32 %v859, %v2003
    %v2052 = vrot.slane %v2020, 4
    %v2053 = vrot.slane %v2021, 4
    %v2054 = vrot.slane %v2022, 4
    %v2055 = vrot.slane %v2023, 4
    %v2056 = vrot.slane %v2024, 4
    %v2057 = vrot.slane %v2025, 4
    %v2058 = vrot.slane %v2026, 4
    %v2059 = vrot.slane %v2027, 4
    %v2060 = vrot.slane %v2028, 4
    %v2061 = vrot.slane %v2029, 4
    %v2062 = vrot.slane %v2030, 4
    %v2063 = vrot.slane %v2031, 4
    %v2064 = vrot.slane %v2032, 4
    %v2065 = vrot.slane %v2033, 4
    %v2066 = vrot.slane %v2034, 4
    %v2067 = vrot.slane %v2035, 4
    %2084 = vst [vmem:[#allocation2 + $0x280] sm:$0xf0] %v2052
    %2085 = vst [vmem:[#allocation2 + $0x288] sm:$0xf0] %v2053
    %2086 = vst [vmem:[#allocation2 + $0x290] sm:$0xf0] %v2054
    %2087 = vst [vmem:[#allocation2 + $0x298] sm:$0xf0] %v2055
    %2088 = vst [vmem:[#allocation2 + $0x2a0] sm:$0xf0] %v2056
    %2089 = vst [vmem:[#allocation2 + $0x2a8] sm:$0xf0] %v2057
    %2090 = vst [vmem:[#allocation2 + $0x2b0] sm:$0xf0] %v2058
    %2091 = vst [vmem:[#allocation2 + $0x2b8] sm:$0xf0] %v2059
    %2092 = vst [vmem:[#allocation2 + $0x2c0] sm:$0xf0] %v2060
    %2093 = vst [vmem:[#allocation2 + $0x2c8] sm:$0xf0] %v2061
    %2094 = vst [vmem:[#allocation2 + $0x2d0] sm:$0xf0] %v2062
    %2095 = vst [vmem:[#allocation2 + $0x2d8] sm:$0xf0] %v2063
    %2096 = vst [vmem:[#allocation2 + $0x2e0] sm:$0xf0] %v2064
    %2097 = vst [vmem:[#allocation2 + $0x2e8] sm:$0xf0] %v2065
    %2098 = vst [vmem:[#allocation2 + $0x2f0] sm:$0xf0] %v2066
    %2099 = vst [vmem:[#allocation2 + $0x2f8] sm:$0xf0] %v2067
    %s2100 = scalar_lea.vmem [#allocation6], 132
    %v2101 = vld [vmem:[%s2100] ss:$8 sm:$0xf]
    %v2102 = vld [vmem:[%s2100] ss:$8 sm:$0xf0]
    %v2103 = vor.u32 %v2101, %v2102
    %s2104 = scalar_lea.vmem [#allocation6], 196
    %v2105 = vld [vmem:[%s2104] ss:$8 sm:$0xf]
    %v2106 = vld [vmem:[%s2104] ss:$8 sm:$0xf0]
    %v2107 = vor.u32 %v2105, %v2106
    %v2110 = vperm.slane %v2103, 0
    %v2111 = vperm.slane %v2103, 1
    %v2112 = vperm.slane %v2103, 2
    %v2113 = vperm.slane %v2103, 3
    %v2114 = vperm.slane %v2103, 4
    %v2115 = vperm.slane %v2103, 5
    %v2116 = vperm.slane %v2103, 6
    %v2117 = vperm.slane %v2103, 7
    %v2118 = vperm.slane %v2107, 0
    %v2119 = vperm.slane %v2107, 1
    %v2120 = vperm.slane %v2107, 2
    %v2121 = vperm.slane %v2107, 3
    %v2122 = vperm.slane %v2107, 4
    %v2123 = vperm.slane %v2107, 5
    %v2124 = vperm.slane %v2107, 6
    %v2125 = vperm.slane %v2107, 7
    %v2142 = vmul.f32 %v997, %v2110
    %v2143 = vmul.f32 %v996, %v2111
    %v2144 = vmul.f32 %v995, %v2112
    %v2145 = vmul.f32 %v994, %v2113
    %v2146 = vmul.f32 %v993, %v2114
    %v2147 = vmul.f32 %v992, %v2115
    %v2148 = vmul.f32 %v991, %v2116
    %v2149 = vmul.f32 %v990, %v2117
    %v2150 = vmul.f32 %v989, %v2118
    %v2151 = vmul.f32 %v988, %v2119
    %v2152 = vmul.f32 %v987, %v2120
    %v2153 = vmul.f32 %v986, %v2121
    %v2154 = vmul.f32 %v985, %v2122
    %v2155 = vmul.f32 %v984, %v2123
    %v2156 = vmul.f32 %v983, %v2124
    %v2157 = vmul.f32 %v982, %v2125
    %2158 = vst [vmem:[#allocation2 + $0x300] sm:$0xf] %v2142
    %2159 = vst [vmem:[#allocation2 + $0x308] sm:$0xf] %v2143
    %2160 = vst [vmem:[#allocation2 + $0x310] sm:$0xf] %v2144
    %2161 = vst [vmem:[#allocation2 + $0x318] sm:$0xf] %v2145
    %2162 = vst [vmem:[#allocation2 + $0x320] sm:$0xf] %v2146
    %2163 = vst [vmem:[#allocation2 + $0x328] sm:$0xf] %v2147
    %2164 = vst [vmem:[#allocation2 + $0x330] sm:$0xf] %v2148
    %2165 = vst [vmem:[#allocation2 + $0x338] sm:$0xf] %v2149
    %2166 = vst [vmem:[#allocation2 + $0x340] sm:$0xf] %v2150
    %2167 = vst [vmem:[#allocation2 + $0x348] sm:$0xf] %v2151
    %2168 = vst [vmem:[#allocation2 + $0x350] sm:$0xf] %v2152
    %2169 = vst [vmem:[#allocation2 + $0x358] sm:$0xf] %v2153
    %2170 = vst [vmem:[#allocation2 + $0x360] sm:$0xf] %v2154
    %2171 = vst [vmem:[#allocation2 + $0x368] sm:$0xf] %v2155
    %2172 = vst [vmem:[#allocation2 + $0x370] sm:$0xf] %v2156
    %2173 = vst [vmem:[#allocation2 + $0x378] sm:$0xf] %v2157
    %s2174 = scalar_lea.vmem [#allocation6], 133
    %v2175 = vld [vmem:[%s2174] ss:$8 sm:$0xf]
    %v2176 = vld [vmem:[%s2174] ss:$8 sm:$0xf0]
    %v2177 = vor.u32 %v2175, %v2176
    %s2178 = scalar_lea.vmem [#allocation6], 197
    %v2179 = vld [vmem:[%s2178] ss:$8 sm:$0xf]
    %v2180 = vld [vmem:[%s2178] ss:$8 sm:$0xf0]
    %v2181 = vor.u32 %v2179, %v2180
    %v2184 = vperm.slane %v2177, 0
    %v2185 = vperm.slane %v2177, 1
    %v2186 = vperm.slane %v2177, 2
    %v2187 = vperm.slane %v2177, 3
    %v2188 = vperm.slane %v2177, 4
    %v2189 = vperm.slane %v2177, 5
    %v2190 = vperm.slane %v2177, 6
    %v2191 = vperm.slane %v2177, 7
    %v2192 = vperm.slane %v2181, 0
    %v2193 = vperm.slane %v2181, 1
    %v2194 = vperm.slane %v2181, 2
    %v2195 = vperm.slane %v2181, 3
    %v2196 = vperm.slane %v2181, 4
    %v2197 = vperm.slane %v2181, 5
    %v2198 = vperm.slane %v2181, 6
    %v2199 = vperm.slane %v2181, 7
    %v2216 = vmul.f32 %v467, %v2184
    %v2217 = vmul.f32 %v468, %v2185
    %v2218 = vmul.f32 %v469, %v2186
    %v2219 = vmul.f32 %v470, %v2187
    %v2220 = vmul.f32 %v471, %v2188
    %v2221 = vmul.f32 %v472, %v2189
    %v2222 = vmul.f32 %v473, %v2190
    %v2223 = vmul.f32 %v474, %v2191
    %v2224 = vmul.f32 %v475, %v2192
    %v2225 = vmul.f32 %v476, %v2193
    %v2226 = vmul.f32 %v477, %v2194
    %v2227 = vmul.f32 %v478, %v2195
    %v2228 = vmul.f32 %v479, %v2196
    %v2229 = vmul.f32 %v480, %v2197
    %v2230 = vmul.f32 %v481, %v2198
    %v2231 = vmul.f32 %v482, %v2199
    %v2248 = vrot.slane %v2216, 4
    %v2249 = vrot.slane %v2217, 4
    %v2250 = vrot.slane %v2218, 4
    %v2251 = vrot.slane %v2219, 4
    %v2252 = vrot.slane %v2220, 4
    %v2253 = vrot.slane %v2221, 4
    %v2254 = vrot.slane %v2222, 4
    %v2255 = vrot.slane %v2223, 4
    %v2256 = vrot.slane %v2224, 4
    %v2257 = vrot.slane %v2225, 4
    %v2258 = vrot.slane %v2226, 4
    %v2259 = vrot.slane %v2227, 4
    %v2260 = vrot.slane %v2228, 4
    %v2261 = vrot.slane %v2229, 4
    %v2262 = vrot.slane %v2230, 4
    %v2263 = vrot.slane %v2231, 4
    %2280 = vst [vmem:[#allocation2 + $0x300] sm:$0xf0] %v2248
    %2281 = vst [vmem:[#allocation2 + $0x308] sm:$0xf0] %v2249
    %2282 = vst [vmem:[#allocation2 + $0x310] sm:$0xf0] %v2250
    %2283 = vst [vmem:[#allocation2 + $0x318] sm:$0xf0] %v2251
    %2284 = vst [vmem:[#allocation2 + $0x320] sm:$0xf0] %v2252
    %2285 = vst [vmem:[#allocation2 + $0x328] sm:$0xf0] %v2253
    %2286 = vst [vmem:[#allocation2 + $0x330] sm:$0xf0] %v2254
    %2287 = vst [vmem:[#allocation2 + $0x338] sm:$0xf0] %v2255
    %2288 = vst [vmem:[#allocation2 + $0x340] sm:$0xf0] %v2256
    %2289 = vst [vmem:[#allocation2 + $0x348] sm:$0xf0] %v2257
    %2290 = vst [vmem:[#allocation2 + $0x350] sm:$0xf0] %v2258
    %2291 = vst [vmem:[#allocation2 + $0x358] sm:$0xf0] %v2259
    %2292 = vst [vmem:[#allocation2 + $0x360] sm:$0xf0] %v2260
    %2293 = vst [vmem:[#allocation2 + $0x368] sm:$0xf0] %v2261
    %2294 = vst [vmem:[#allocation2 + $0x370] sm:$0xf0] %v2262
    %2295 = vst [vmem:[#allocation2 + $0x378] sm:$0xf0] %v2263
    %s2296 = scalar_lea.vmem [#allocation6], 134
    %v2297 = vld [vmem:[%s2296] ss:$8 sm:$0xf]
    %v2298 = vld [vmem:[%s2296] ss:$8 sm:$0xf0]
    %v2299 = vor.u32 %v2297, %v2298
    %s2300 = scalar_lea.vmem [#allocation6], 198
    %v2301 = vld [vmem:[%s2300] ss:$8 sm:$0xf]
    %v2302 = vld [vmem:[%s2300] ss:$8 sm:$0xf0]
    %v2303 = vor.u32 %v2301, %v2302
    %v2306 = vperm.slane %v2299, 0
    %v2307 = vperm.slane %v2299, 1
    %v2308 = vperm.slane %v2299, 2
    %v2309 = vperm.slane %v2299, 3
    %v2310 = vperm.slane %v2299, 4
    %v2311 = vperm.slane %v2299, 5
    %v2312 = vperm.slane %v2299, 6
    %v2313 = vperm.slane %v2299, 7
    %v2314 = vperm.slane %v2303, 0
    %v2315 = vperm.slane %v2303, 1
    %v2316 = vperm.slane %v2303, 2
    %v2317 = vperm.slane %v2303, 3
    %v2318 = vperm.slane %v2303, 4
    %v2319 = vperm.slane %v2303, 5
    %v2320 = vperm.slane %v2303, 6
    %v2321 = vperm.slane %v2303, 7
    %v2338 = vmul.f32 %v1241, %v2306
    %v2339 = vmul.f32 %v1240, %v2307
    %v2340 = vmul.f32 %v1239, %v2308
    %v2341 = vmul.f32 %v1238, %v2309
    %v2342 = vmul.f32 %v1237, %v2310
    %v2343 = vmul.f32 %v1236, %v2311
    %v2344 = vmul.f32 %v1235, %v2312
    %v2345 = vmul.f32 %v1234, %v2313
    %v2346 = vmul.f32 %v1233, %v2314
    %v2347 = vmul.f32 %v1232, %v2315
    %v2348 = vmul.f32 %v1231, %v2316
    %v2349 = vmul.f32 %v1230, %v2317
    %v2350 = vmul.f32 %v1229, %v2318
    %v2351 = vmul.f32 %v1228, %v2319
    %v2352 = vmul.f32 %v1227, %v2320
    %v2353 = vmul.f32 %v1242, %v2321
    %2354 = vst [vmem:[#allocation2 + $0x380] sm:$0xf] %v2338
    %2355 = vst [vmem:[#allocation2 + $0x388] sm:$0xf] %v2339
    %2356 = vst [vmem:[#allocation2 + $0x390] sm:$0xf] %v2340
    %2357 = vst [vmem:[#allocation2 + $0x398] sm:$0xf] %v2341
    %2358 = vst [vmem:[#allocation2 + $0x3a0] sm:$0xf] %v2342
    %2359 = vst [vmem:[#allocation2 + $0x3a8] sm:$0xf] %v2343
    %2360 = vst [vmem:[#allocation2 + $0x3b0] sm:$0xf] %v2344
    %2361 = vst [vmem:[#allocation2 + $0x3b8] sm:$0xf] %v2345
    %2362 = vst [vmem:[#allocation2 + $0x3c0] sm:$0xf] %v2346
    %2363 = vst [vmem:[#allocation2 + $0x3c8] sm:$0xf] %v2347
    %2364 = vst [vmem:[#allocation2 + $0x3d0] sm:$0xf] %v2348
    %2365 = vst [vmem:[#allocation2 + $0x3d8] sm:$0xf] %v2349
    %2366 = vst [vmem:[#allocation2 + $0x3e0] sm:$0xf] %v2350
    %2367 = vst [vmem:[#allocation2 + $0x3e8] sm:$0xf] %v2351
    %2368 = vst [vmem:[#allocation2 + $0x3f0] sm:$0xf] %v2352
    %2369 = vst [vmem:[#allocation2 + $0x3f8] sm:$0xf] %v2353
    %s2370 = scalar_lea.vmem [#allocation6], 135
    %v2371 = vld [vmem:[%s2370] ss:$8 sm:$0xf]
    %v2372 = vld [vmem:[%s2370] ss:$8 sm:$0xf0]
    %v2373 = vor.u32 %v2371, %v2372
    %s2374 = scalar_lea.vmem [#allocation6], 199
    %v2375 = vld [vmem:[%s2374] ss:$8 sm:$0xf]
    %v2376 = vld [vmem:[%s2374] ss:$8 sm:$0xf0]
    %v2377 = vor.u32 %v2375, %v2376
    %v2380 = vperm.slane %v2373, 0
    %v2381 = vperm.slane %v2373, 1
    %v2382 = vperm.slane %v2373, 2
    %v2383 = vperm.slane %v2373, 3
    %v2384 = vperm.slane %v2373, 4
    %v2385 = vperm.slane %v2373, 5
    %v2386 = vperm.slane %v2373, 6
    %v2387 = vperm.slane %v2373, 7
    %v2388 = vperm.slane %v2377, 0
    %v2389 = vperm.slane %v2377, 1
    %v2390 = vperm.slane %v2377, 2
    %v2391 = vperm.slane %v2377, 3
    %v2392 = vperm.slane %v2377, 4
    %v2393 = vperm.slane %v2377, 5
    %v2394 = vperm.slane %v2377, 6
    %v2395 = vperm.slane %v2377, 7
    %v2412 = vmul.f32 %v1412, %v2380
    %v2413 = vmul.f32 %v1411, %v2381
    %v2414 = vmul.f32 %v1410, %v2382
    %v2415 = vmul.f32 %v1409, %v2383
    %v2416 = vmul.f32 %v1408, %v2384
    %v2417 = vmul.f32 %v1407, %v2385
    %v2418 = vmul.f32 %v1406, %v2386
    %v2419 = vmul.f32 %v1405, %v2387
    %v2420 = vmul.f32 %v1404, %v2388
    %v2421 = vmul.f32 %v1403, %v2389
    %v2422 = vmul.f32 %v1402, %v2390
    %v2423 = vmul.f32 %v1401, %v2391
    %v2424 = vmul.f32 %v1400, %v2392
    %v2425 = vmul.f32 %v1399, %v2393
    %v2426 = vmul.f32 %v1398, %v2394
    %v2427 = vmul.f32 %v1413, %v2395
    %v2444 = vrot.slane %v2412, 4
    %v2445 = vrot.slane %v2413, 4
    %v2446 = vrot.slane %v2414, 4
    %v2447 = vrot.slane %v2415, 4
    %v2448 = vrot.slane %v2416, 4
    %v2449 = vrot.slane %v2417, 4
    %v2450 = vrot.slane %v2418, 4
    %v2451 = vrot.slane %v2419, 4
    %v2452 = vrot.slane %v2420, 4
    %v2453 = vrot.slane %v2421, 4
    %v2454 = vrot.slane %v2422, 4
    %v2455 = vrot.slane %v2423, 4
    %v2456 = vrot.slane %v2424, 4
    %v2457 = vrot.slane %v2425, 4
    %v2458 = vrot.slane %v2426, 4
    %v2459 = vrot.slane %v2427, 4
    %2476 = vst [vmem:[#allocation2 + $0x380] sm:$0xf0] %v2444
    %2477 = vst [vmem:[#allocation2 + $0x388] sm:$0xf0] %v2445
    %2478 = vst [vmem:[#allocation2 + $0x390] sm:$0xf0] %v2446
    %2479 = vst [vmem:[#allocation2 + $0x398] sm:$0xf0] %v2447
    %2480 = vst [vmem:[#allocation2 + $0x3a0] sm:$0xf0] %v2448
    %2481 = vst [vmem:[#allocation2 + $0x3a8] sm:$0xf0] %v2449
    %2482 = vst [vmem:[#allocation2 + $0x3b0] sm:$0xf0] %v2450
    %2483 = vst [vmem:[#allocation2 + $0x3b8] sm:$0xf0] %v2451
    %2484 = vst [vmem:[#allocation2 + $0x3c0] sm:$0xf0] %v2452
    %2485 = vst [vmem:[#allocation2 + $0x3c8] sm:$0xf0] %v2453
    %2486 = vst [vmem:[#allocation2 + $0x3d0] sm:$0xf0] %v2454
    %2487 = vst [vmem:[#allocation2 + $0x3d8] sm:$0xf0] %v2455
    %2488 = vst [vmem:[#allocation2 + $0x3e0] sm:$0xf0] %v2456
    %2489 = vst [vmem:[#allocation2 + $0x3e8] sm:$0xf0] %v2457
    %2490 = vst [vmem:[#allocation2 + $0x3f0] sm:$0xf0] %v2458
    %2491 = vst [vmem:[#allocation2 + $0x3f8] sm:$0xf0] %v2459
    %s2492 = scalar_lea.vmem [#allocation6], 256
    %v2493 = vld [vmem:[%s2492] ss:$8 sm:$0xf]
    %v2494 = vld [vmem:[%s2492] ss:$8 sm:$0xf0]
    %v2495 = vor.u32 %v2493, %v2494
    %s2496 = scalar_lea.vmem [#allocation6], 320
    %v2497 = vld [vmem:[%s2496] ss:$8 sm:$0xf]
    %v2498 = vld [vmem:[%s2496] ss:$8 sm:$0xf0]
    %v2499 = vor.u32 %v2497, %v2498
    %v2502 = vperm.slane %v2495, 0
    %v2503 = vperm.slane %v2495, 1
    %v2504 = vperm.slane %v2495, 2
    %v2505 = vperm.slane %v2495, 3
    %v2506 = vperm.slane %v2495, 4
    %v2507 = vperm.slane %v2495, 5
    %v2508 = vperm.slane %v2495, 6
    %v2509 = vperm.slane %v2495, 7
    %v2510 = vperm.slane %v2499, 0
    %v2511 = vperm.slane %v2499, 1
    %v2512 = vperm.slane %v2499, 2
    %v2513 = vperm.slane %v2499, 3
    %v2514 = vperm.slane %v2499, 4
    %v2515 = vperm.slane %v2499, 5
    %v2516 = vperm.slane %v2499, 6
    %v2517 = vperm.slane %v2499, 7
    %v2534 = vmul.f32 %v1535, %v2502
    %v2535 = vmul.f32 %v1534, %v2503
    %v2536 = vmul.f32 %v1533, %v2504
    %v2537 = vmul.f32 %v1532, %v2505
    %v2538 = vmul.f32 %v1531, %v2506
    %v2539 = vmul.f32 %v1530, %v2507
    %v2540 = vmul.f32 %v1529, %v2508
    %v2541 = vmul.f32 %v1528, %v2509
    %v2542 = vmul.f32 %v1527, %v2510
    %v2543 = vmul.f32 %v1526, %v2511
    %v2544 = vmul.f32 %v1525, %v2512
    %v2545 = vmul.f32 %v1524, %v2513
    %v2546 = vmul.f32 %v1523, %v2514
    %v2547 = vmul.f32 %v1522, %v2515
    %v2548 = vmul.f32 %v1521, %v2516
    %v2549 = vmul.f32 %v1536, %v2517
    %2550 = vst [vmem:[#allocation2 + $0x400] sm:$0xf] %v2534
    %2551 = vst [vmem:[#allocation2 + $0x408] sm:$0xf] %v2535
    %2552 = vst [vmem:[#allocation2 + $0x410] sm:$0xf] %v2536
    %2553 = vst [vmem:[#allocation2 + $0x418] sm:$0xf] %v2537
    %2554 = vst [vmem:[#allocation2 + $0x420] sm:$0xf] %v2538
    %2555 = vst [vmem:[#allocation2 + $0x428] sm:$0xf] %v2539
    %2556 = vst [vmem:[#allocation2 + $0x430] sm:$0xf] %v2540
    %2557 = vst [vmem:[#allocation2 + $0x438] sm:$0xf] %v2541
    %2558 = vst [vmem:[#allocation2 + $0x440] sm:$0xf] %v2542
    %2559 = vst [vmem:[#allocation2 + $0x448] sm:$0xf] %v2543
    %2560 = vst [vmem:[#allocation2 + $0x450] sm:$0xf] %v2544
    %2561 = vst [vmem:[#allocation2 + $0x458] sm:$0xf] %v2545
    %2562 = vst [vmem:[#allocation2 + $0x460] sm:$0xf] %v2546
    %2563 = vst [vmem:[#allocation2 + $0x468] sm:$0xf] %v2547
    %2564 = vst [vmem:[#allocation2 + $0x470] sm:$0xf] %v2548
    %2565 = vst [vmem:[#allocation2 + $0x478] sm:$0xf] %v2549
    %s2566 = scalar_lea.vmem [#allocation6], 257
    %v2567 = vld [vmem:[%s2566] ss:$8 sm:$0xf]
    %v2568 = vld [vmem:[%s2566] ss:$8 sm:$0xf0]
    %v2569 = vor.u32 %v2567, %v2568
    %s2570 = scalar_lea.vmem [#allocation6], 321
    %v2571 = vld [vmem:[%s2570] ss:$8 sm:$0xf]
    %v2572 = vld [vmem:[%s2570] ss:$8 sm:$0xf0]
    %v2573 = vor.u32 %v2571, %v2572
    %v2576 = vperm.slane %v2569, 0
    %v2577 = vperm.slane %v2569, 1
    %v2578 = vperm.slane %v2569, 2
    %v2579 = vperm.slane %v2569, 3
    %v2580 = vperm.slane %v2569, 4
    %v2581 = vperm.slane %v2569, 5
    %v2582 = vperm.slane %v2569, 6
    %v2583 = vperm.slane %v2569, 7
    %v2584 = vperm.slane %v2573, 0
    %v2585 = vperm.slane %v2573, 1
    %v2586 = vperm.slane %v2573, 2
    %v2587 = vperm.slane %v2573, 3
    %v2588 = vperm.slane %v2573, 4
    %v2589 = vperm.slane %v2573, 5
    %v2590 = vperm.slane %v2573, 6
    %v2591 = vperm.slane %v2573, 7
    %v2608 = vmul.f32 %v1706, %v2576
    %v2609 = vmul.f32 %v1705, %v2577
    %v2610 = vmul.f32 %v1704, %v2578
    %v2611 = vmul.f32 %v1703, %v2579
    %v2612 = vmul.f32 %v1702, %v2580
    %v2613 = vmul.f32 %v1701, %v2581
    %v2614 = vmul.f32 %v1700, %v2582
    %v2615 = vmul.f32 %v1699, %v2583
    %v2616 = vmul.f32 %v1698, %v2584
    %v2617 = vmul.f32 %v1697, %v2585
    %v2618 = vmul.f32 %v1696, %v2586
    %v2619 = vmul.f32 %v1695, %v2587
    %v2620 = vmul.f32 %v1694, %v2588
    %v2621 = vmul.f32 %v1693, %v2589
    %v2622 = vmul.f32 %v1692, %v2590
    %v2623 = vmul.f32 %v1707, %v2591
    %v2640 = vrot.slane %v2608, 4
    %v2641 = vrot.slane %v2609, 4
    %v2642 = vrot.slane %v2610, 4
    %v2643 = vrot.slane %v2611, 4
    %v2644 = vrot.slane %v2612, 4
    %v2645 = vrot.slane %v2613, 4
    %v2646 = vrot.slane %v2614, 4
    %v2647 = vrot.slane %v2615, 4
    %v2648 = vrot.slane %v2616, 4
    %v2649 = vrot.slane %v2617, 4
    %v2650 = vrot.slane %v2618, 4
    %v2651 = vrot.slane %v2619, 4
    %v2652 = vrot.slane %v2620, 4
    %v2653 = vrot.slane %v2621, 4
    %v2654 = vrot.slane %v2622, 4
    %v2655 = vrot.slane %v2623, 4
    %2672 = vst [vmem:[#allocation2 + $0x400] sm:$0xf0] %v2640
    %2673 = vst [vmem:[#allocation2 + $0x408] sm:$0xf0] %v2641
    %2674 = vst [vmem:[#allocation2 + $0x410] sm:$0xf0] %v2642
    %2675 = vst [vmem:[#allocation2 + $0x418] sm:$0xf0] %v2643
    %2676 = vst [vmem:[#allocation2 + $0x420] sm:$0xf0] %v2644
    %2677 = vst [vmem:[#allocation2 + $0x428] sm:$0xf0] %v2645
    %2678 = vst [vmem:[#allocation2 + $0x430] sm:$0xf0] %v2646
    %2679 = vst [vmem:[#allocation2 + $0x438] sm:$0xf0] %v2647
    %2680 = vst [vmem:[#allocation2 + $0x440] sm:$0xf0] %v2648
    %2681 = vst [vmem:[#allocation2 + $0x448] sm:$0xf0] %v2649
    %2682 = vst [vmem:[#allocation2 + $0x450] sm:$0xf0] %v2650
    %2683 = vst [vmem:[#allocation2 + $0x458] sm:$0xf0] %v2651
    %2684 = vst [vmem:[#allocation2 + $0x460] sm:$0xf0] %v2652
    %2685 = vst [vmem:[#allocation2 + $0x468] sm:$0xf0] %v2653
    %2686 = vst [vmem:[#allocation2 + $0x470] sm:$0xf0] %v2654
    %2687 = vst [vmem:[#allocation2 + $0x478] sm:$0xf0] %v2655
    %s2688 = scalar_lea.vmem [#allocation6], 258
    %v2689 = vld [vmem:[%s2688] ss:$8 sm:$0xf]
    %v2690 = vld [vmem:[%s2688] ss:$8 sm:$0xf0]
    %v2691 = vor.u32 %v2689, %v2690
    %s2692 = scalar_lea.vmem [#allocation6], 322
    %v2693 = vld [vmem:[%s2692] ss:$8 sm:$0xf]
    %v2694 = vld [vmem:[%s2692] ss:$8 sm:$0xf0]
    %v2695 = vor.u32 %v2693, %v2694
    %v2698 = vperm.slane %v2691, 0
    %v2699 = vperm.slane %v2691, 1
    %v2700 = vperm.slane %v2691, 2
    %v2701 = vperm.slane %v2691, 3
    %v2702 = vperm.slane %v2691, 4
    %v2703 = vperm.slane %v2691, 5
    %v2704 = vperm.slane %v2691, 6
    %v2705 = vperm.slane %v2691, 7
    %v2706 = vperm.slane %v2695, 0
    %v2707 = vperm.slane %v2695, 1
    %v2708 = vperm.slane %v2695, 2
    %v2709 = vperm.slane %v2695, 3
    %v2710 = vperm.slane %v2695, 4
    %v2711 = vperm.slane %v2695, 5
    %v2712 = vperm.slane %v2695, 6
    %v2713 = vperm.slane %v2695, 7
    %v2730 = vmul.f32 %v579, %v2698
    %v2731 = vmul.f32 %v578, %v2699
    %v2732 = vmul.f32 %v577, %v2700
    %v2733 = vmul.f32 %v576, %v2701
    %v2734 = vmul.f32 %v575, %v2702
    %v2735 = vmul.f32 %v574, %v2703
    %v2736 = vmul.f32 %v573, %v2704
    %v2737 = vmul.f32 %v572, %v2705
    %v2738 = vmul.f32 %v571, %v2706
    %v2739 = vmul.f32 %v570, %v2707
    %v2740 = vmul.f32 %v569, %v2708
    %v2741 = vmul.f32 %v568, %v2709
    %v2742 = vmul.f32 %v567, %v2710
    %v2743 = vmul.f32 %v566, %v2711
    %v2744 = vmul.f32 %v581, %v2712
    %v2745 = vmul.f32 %v580, %v2713
    %2746 = vst [vmem:[#allocation2 + $0x480] sm:$0xf] %v2730
    %2747 = vst [vmem:[#allocation2 + $0x488] sm:$0xf] %v2731
    %2748 = vst [vmem:[#allocation2 + $0x490] sm:$0xf] %v2732
    %2749 = vst [vmem:[#allocation2 + $0x498] sm:$0xf] %v2733
    %2750 = vst [vmem:[#allocation2 + $0x4a0] sm:$0xf] %v2734
    %2751 = vst [vmem:[#allocation2 + $0x4a8] sm:$0xf] %v2735
    %2752 = vst [vmem:[#allocation2 + $0x4b0] sm:$0xf] %v2736
    %2753 = vst [vmem:[#allocation2 + $0x4b8] sm:$0xf] %v2737
    %2754 = vst [vmem:[#allocation2 + $0x4c0] sm:$0xf] %v2738
    %2755 = vst [vmem:[#allocation2 + $0x4c8] sm:$0xf] %v2739
    %2756 = vst [vmem:[#allocation2 + $0x4d0] sm:$0xf] %v2740
    %2757 = vst [vmem:[#allocation2 + $0x4d8] sm:$0xf] %v2741
    %2758 = vst [vmem:[#allocation2 + $0x4e0] sm:$0xf] %v2742
    %2759 = vst [vmem:[#allocation2 + $0x4e8] sm:$0xf] %v2743
    %2760 = vst [vmem:[#allocation2 + $0x4f0] sm:$0xf] %v2744
    %2761 = vst [vmem:[#allocation2 + $0x4f8] sm:$0xf] %v2745
    %s2762 = scalar_lea.vmem [#allocation6], 259
    %v2763 = vld [vmem:[%s2762] ss:$8 sm:$0xf]
    %v2764 = vld [vmem:[%s2762] ss:$8 sm:$0xf0]
    %v2765 = vor.u32 %v2763, %v2764
    %s2766 = scalar_lea.vmem [#allocation6], 323
    %v2767 = vld [vmem:[%s2766] ss:$8 sm:$0xf]
    %v2768 = vld [vmem:[%s2766] ss:$8 sm:$0xf0]
    %v2769 = vor.u32 %v2767, %v2768
    %v2772 = vperm.slane %v2765, 0
    %v2773 = vperm.slane %v2765, 1
    %v2774 = vperm.slane %v2765, 2
    %v2775 = vperm.slane %v2765, 3
    %v2776 = vperm.slane %v2765, 4
    %v2777 = vperm.slane %v2765, 5
    %v2778 = vperm.slane %v2765, 6
    %v2779 = vperm.slane %v2765, 7
    %v2780 = vperm.slane %v2769, 0
    %v2781 = vperm.slane %v2769, 1
    %v2782 = vperm.slane %v2769, 2
    %v2783 = vperm.slane %v2769, 3
    %v2784 = vperm.slane %v2769, 4
    %v2785 = vperm.slane %v2769, 5
    %v2786 = vperm.slane %v2769, 6
    %v2787 = vperm.slane %v2769, 7
    %v2804 = vmul.f32 %v701, %v2772
    %v2805 = vmul.f32 %v700, %v2773
    %v2806 = vmul.f32 %v699, %v2774
    %v2807 = vmul.f32 %v698, %v2775
    %v2808 = vmul.f32 %v697, %v2776
    %v2809 = vmul.f32 %v696, %v2777
    %v2810 = vmul.f32 %v695, %v2778
    %v2811 = vmul.f32 %v694, %v2779
    %v2812 = vmul.f32 %v693, %v2780
    %v2813 = vmul.f32 %v692, %v2781
    %v2814 = vmul.f32 %v691, %v2782
    %v2815 = vmul.f32 %v690, %v2783
    %v2816 = vmul.f32 %v689, %v2784
    %v2817 = vmul.f32 %v688, %v2785
    %v2818 = vmul.f32 %v703, %v2786
    %v2819 = vmul.f32 %v702, %v2787
    %v2836 = vrot.slane %v2804, 4
    %v2837 = vrot.slane %v2805, 4
    %v2838 = vrot.slane %v2806, 4
    %v2839 = vrot.slane %v2807, 4
    %v2840 = vrot.slane %v2808, 4
    %v2841 = vrot.slane %v2809, 4
    %v2842 = vrot.slane %v2810, 4
    %v2843 = vrot.slane %v2811, 4
    %v2844 = vrot.slane %v2812, 4
    %v2845 = vrot.slane %v2813, 4
    %v2846 = vrot.slane %v2814, 4
    %v2847 = vrot.slane %v2815, 4
    %v2848 = vrot.slane %v2816, 4
    %v2849 = vrot.slane %v2817, 4
    %v2850 = vrot.slane %v2818, 4
    %v2851 = vrot.slane %v2819, 4
    %2868 = vst [vmem:[#allocation2 + $0x480] sm:$0xf0] %v2836
    %2869 = vst [vmem:[#allocation2 + $0x488] sm:$0xf0] %v2837
    %2870 = vst [vmem:[#allocation2 + $0x490] sm:$0xf0] %v2838
    %2871 = vst [vmem:[#allocation2 + $0x498] sm:$0xf0] %v2839
    %2872 = vst [vmem:[#allocation2 + $0x4a0] sm:$0xf0] %v2840
    %2873 = vst [vmem:[#allocation2 + $0x4a8] sm:$0xf0] %v2841
    %2874 = vst [vmem:[#allocation2 + $0x4b0] sm:$0xf0] %v2842
    %2875 = vst [vmem:[#allocation2 + $0x4b8] sm:$0xf0] %v2843
    %2876 = vst [vmem:[#allocation2 + $0x4c0] sm:$0xf0] %v2844
    %2877 = vst [vmem:[#allocation2 + $0x4c8] sm:$0xf0] %v2845
    %2878 = vst [vmem:[#allocation2 + $0x4d0] sm:$0xf0] %v2846
    %2879 = vst [vmem:[#allocation2 + $0x4d8] sm:$0xf0] %v2847
    %2880 = vst [vmem:[#allocation2 + $0x4e0] sm:$0xf0] %v2848
    %2881 = vst [vmem:[#allocation2 + $0x4e8] sm:$0xf0] %v2849
    %2882 = vst [vmem:[#allocation2 + $0x4f0] sm:$0xf0] %v2850
    %2883 = vst [vmem:[#allocation2 + $0x4f8] sm:$0xf0] %v2851
    %s2884 = scalar_lea.vmem [#allocation6], 260
    %v2885 = vld [vmem:[%s2884] ss:$8 sm:$0xf]
    %v2886 = vld [vmem:[%s2884] ss:$8 sm:$0xf0]
    %v2887 = vor.u32 %v2885, %v2886
    %s2888 = scalar_lea.vmem [#allocation6], 324
    %v2889 = vld [vmem:[%s2888] ss:$8 sm:$0xf]
    %v2890 = vld [vmem:[%s2888] ss:$8 sm:$0xf0]
    %v2891 = vor.u32 %v2889, %v2890
    %v2894 = vperm.slane %v2887, 0
    %v2895 = vperm.slane %v2887, 1
    %v2896 = vperm.slane %v2887, 2
    %v2897 = vperm.slane %v2887, 3
    %v2898 = vperm.slane %v2887, 4
    %v2899 = vperm.slane %v2887, 5
    %v2900 = vperm.slane %v2887, 6
    %v2901 = vperm.slane %v2887, 7
    %v2902 = vperm.slane %v2891, 0
    %v2903 = vperm.slane %v2891, 1
    %v2904 = vperm.slane %v2891, 2
    %v2905 = vperm.slane %v2891, 3
    %v2906 = vperm.slane %v2891, 4
    %v2907 = vperm.slane %v2891, 5
    %v2908 = vperm.slane %v2891, 6
    %v2909 = vperm.slane %v2891, 7
    %v2926 = vmul.f32 %v872, %v2894
    %v2927 = vmul.f32 %v871, %v2895
    %v2928 = vmul.f32 %v870, %v2896
    %v2929 = vmul.f32 %v869, %v2897
    %v2930 = vmul.f32 %v868, %v2898
    %v2931 = vmul.f32 %v867, %v2899
    %v2932 = vmul.f32 %v866, %v2900
    %v2933 = vmul.f32 %v865, %v2901
    %v2934 = vmul.f32 %v864, %v2902
    %v2935 = vmul.f32 %v863, %v2903
    %v2936 = vmul.f32 %v862, %v2904
    %v2937 = vmul.f32 %v861, %v2905
    %v2938 = vmul.f32 %v860, %v2906
    %v2939 = vmul.f32 %v859, %v2907
    %v2940 = vmul.f32 %v874, %v2908
    %v2941 = vmul.f32 %v873, %v2909
    %2942 = vst [vmem:[#allocation2 + $0x500] sm:$0xf] %v2926
    %2943 = vst [vmem:[#allocation2 + $0x508] sm:$0xf] %v2927
    %2944 = vst [vmem:[#allocation2 + $0x510] sm:$0xf] %v2928
    %2945 = vst [vmem:[#allocation2 + $0x518] sm:$0xf] %v2929
    %2946 = vst [vmem:[#allocation2 + $0x520] sm:$0xf] %v2930
    %2947 = vst [vmem:[#allocation2 + $0x528] sm:$0xf] %v2931
    %2948 = vst [vmem:[#allocation2 + $0x530] sm:$0xf] %v2932
    %2949 = vst [vmem:[#allocation2 + $0x538] sm:$0xf] %v2933
    %2950 = vst [vmem:[#allocation2 + $0x540] sm:$0xf] %v2934
    %2951 = vst [vmem:[#allocation2 + $0x548] sm:$0xf] %v2935
    %2952 = vst [vmem:[#allocation2 + $0x550] sm:$0xf] %v2936
    %2953 = vst [vmem:[#allocation2 + $0x558] sm:$0xf] %v2937
    %2954 = vst [vmem:[#allocation2 + $0x560] sm:$0xf] %v2938
    %2955 = vst [vmem:[#allocation2 + $0x568] sm:$0xf] %v2939
    %2956 = vst [vmem:[#allocation2 + $0x570] sm:$0xf] %v2940
    %2957 = vst [vmem:[#allocation2 + $0x578] sm:$0xf] %v2941
    %s2958 = scalar_lea.vmem [#allocation6], 261
    %v2959 = vld [vmem:[%s2958] ss:$8 sm:$0xf]
    %v2960 = vld [vmem:[%s2958] ss:$8 sm:$0xf0]
    %v2961 = vor.u32 %v2959, %v2960
    %s2962 = scalar_lea.vmem [#allocation6], 325
    %v2963 = vld [vmem:[%s2962] ss:$8 sm:$0xf]
    %v2964 = vld [vmem:[%s2962] ss:$8 sm:$0xf0]
    %v2965 = vor.u32 %v2963, %v2964
    %v2968 = vperm.slane %v2961, 0
    %v2969 = vperm.slane %v2961, 1
    %v2970 = vperm.slane %v2961, 2
    %v2971 = vperm.slane %v2961, 3
    %v2972 = vperm.slane %v2961, 4
    %v2973 = vperm.slane %v2961, 5
    %v2974 = vperm.slane %v2961, 6
    %v2975 = vperm.slane %v2961, 7
    %v2976 = vperm.slane %v2965, 0
    %v2977 = vperm.slane %v2965, 1
    %v2978 = vperm.slane %v2965, 2
    %v2979 = vperm.slane %v2965, 3
    %v2980 = vperm.slane %v2965, 4
    %v2981 = vperm.slane %v2965, 5
    %v2982 = vperm.slane %v2965, 6
    %v2983 = vperm.slane %v2965, 7
    %v3000 = vmul.f32 %v995, %v2968
    %v3001 = vmul.f32 %v994, %v2969
    %v3002 = vmul.f32 %v993, %v2970
    %v3003 = vmul.f32 %v992, %v2971
    %v3004 = vmul.f32 %v991, %v2972
    %v3005 = vmul.f32 %v990, %v2973
    %v3006 = vmul.f32 %v989, %v2974
    %v3007 = vmul.f32 %v988, %v2975
    %v3008 = vmul.f32 %v987, %v2976
    %v3009 = vmul.f32 %v986, %v2977
    %v3010 = vmul.f32 %v985, %v2978
    %v3011 = vmul.f32 %v984, %v2979
    %v3012 = vmul.f32 %v983, %v2980
    %v3013 = vmul.f32 %v982, %v2981
    %v3014 = vmul.f32 %v997, %v2982
    %v3015 = vmul.f32 %v996, %v2983
    %v3032 = vrot.slane %v3000, 4
    %v3033 = vrot.slane %v3001, 4
    %v3034 = vrot.slane %v3002, 4
    %v3035 = vrot.slane %v3003, 4
    %v3036 = vrot.slane %v3004, 4
    %v3037 = vrot.slane %v3005, 4
    %v3038 = vrot.slane %v3006, 4
    %v3039 = vrot.slane %v3007, 4
    %v3040 = vrot.slane %v3008, 4
    %v3041 = vrot.slane %v3009, 4
    %v3042 = vrot.slane %v3010, 4
    %v3043 = vrot.slane %v3011, 4
    %v3044 = vrot.slane %v3012, 4
    %v3045 = vrot.slane %v3013, 4
    %v3046 = vrot.slane %v3014, 4
    %v3047 = vrot.slane %v3015, 4
    %3064 = vst [vmem:[#allocation2 + $0x500] sm:$0xf0] %v3032
    %3065 = vst [vmem:[#allocation2 + $0x508] sm:$0xf0] %v3033
    %3066 = vst [vmem:[#allocation2 + $0x510] sm:$0xf0] %v3034
    %3067 = vst [vmem:[#allocation2 + $0x518] sm:$0xf0] %v3035
    %3068 = vst [vmem:[#allocation2 + $0x520] sm:$0xf0] %v3036
    %3069 = vst [vmem:[#allocation2 + $0x528] sm:$0xf0] %v3037
    %3070 = vst [vmem:[#allocation2 + $0x530] sm:$0xf0] %v3038
    %3071 = vst [vmem:[#allocation2 + $0x538] sm:$0xf0] %v3039
    %3072 = vst [vmem:[#allocation2 + $0x540] sm:$0xf0] %v3040
    %3073 = vst [vmem:[#allocation2 + $0x548] sm:$0xf0] %v3041
    %3074 = vst [vmem:[#allocation2 + $0x550] sm:$0xf0] %v3042
    %3075 = vst [vmem:[#allocation2 + $0x558] sm:$0xf0] %v3043
    %3076 = vst [vmem:[#allocation2 + $0x560] sm:$0xf0] %v3044
    %3077 = vst [vmem:[#allocation2 + $0x568] sm:$0xf0] %v3045
    %3078 = vst [vmem:[#allocation2 + $0x570] sm:$0xf0] %v3046
    %3079 = vst [vmem:[#allocation2 + $0x578] sm:$0xf0] %v3047
    %s3080 = scalar_lea.vmem [#allocation6], 262
    %v3081 = vld [vmem:[%s3080] ss:$8 sm:$0xf]
    %v3082 = vld [vmem:[%s3080] ss:$8 sm:$0xf0]
    %v3083 = vor.u32 %v3081, %v3082
    %s3084 = scalar_lea.vmem [#allocation6], 326
    %v3085 = vld [vmem:[%s3084] ss:$8 sm:$0xf]
    %v3086 = vld [vmem:[%s3084] ss:$8 sm:$0xf0]
    %v3087 = vor.u32 %v3085, %v3086
    %v3090 = vperm.slane %v3083, 0
    %v3091 = vperm.slane %v3083, 1
    %v3092 = vperm.slane %v3083, 2
    %v3093 = vperm.slane %v3083, 3
    %v3094 = vperm.slane %v3083, 4
    %v3095 = vperm.slane %v3083, 5
    %v3096 = vperm.slane %v3083, 6
    %v3097 = vperm.slane %v3083, 7
    %v3098 = vperm.slane %v3087, 0
    %v3099 = vperm.slane %v3087, 1
    %v3100 = vperm.slane %v3087, 2
    %v3101 = vperm.slane %v3087, 3
    %v3102 = vperm.slane %v3087, 4
    %v3103 = vperm.slane %v3087, 5
    %v3104 = vperm.slane %v3087, 6
    %v3105 = vperm.slane %v3087, 7
    %v3122 = vmul.f32 %v469, %v3090
    %v3123 = vmul.f32 %v470, %v3091
    %v3124 = vmul.f32 %v471, %v3092
    %v3125 = vmul.f32 %v472, %v3093
    %v3126 = vmul.f32 %v473, %v3094
    %v3127 = vmul.f32 %v474, %v3095
    %v3128 = vmul.f32 %v475, %v3096
    %v3129 = vmul.f32 %v476, %v3097
    %v3130 = vmul.f32 %v477, %v3098
    %v3131 = vmul.f32 %v478, %v3099
    %v3132 = vmul.f32 %v479, %v3100
    %v3133 = vmul.f32 %v480, %v3101
    %v3134 = vmul.f32 %v481, %v3102
    %v3135 = vmul.f32 %v482, %v3103
    %v3136 = vmul.f32 %v467, %v3104
    %v3137 = vmul.f32 %v468, %v3105
    %3138 = vst [vmem:[#allocation2 + $0x580] sm:$0xf] %v3122
    %3139 = vst [vmem:[#allocation2 + $0x588] sm:$0xf] %v3123
    %3140 = vst [vmem:[#allocation2 + $0x590] sm:$0xf] %v3124
    %3141 = vst [vmem:[#allocation2 + $0x598] sm:$0xf] %v3125
    %3142 = vst [vmem:[#allocation2 + $0x5a0] sm:$0xf] %v3126
    %3143 = vst [vmem:[#allocation2 + $0x5a8] sm:$0xf] %v3127
    %3144 = vst [vmem:[#allocation2 + $0x5b0] sm:$0xf] %v3128
    %3145 = vst [vmem:[#allocation2 + $0x5b8] sm:$0xf] %v3129
    %3146 = vst [vmem:[#allocation2 + $0x5c0] sm:$0xf] %v3130
    %3147 = vst [vmem:[#allocation2 + $0x5c8] sm:$0xf] %v3131
    %3148 = vst [vmem:[#allocation2 + $0x5d0] sm:$0xf] %v3132
    %3149 = vst [vmem:[#allocation2 + $0x5d8] sm:$0xf] %v3133
    %3150 = vst [vmem:[#allocation2 + $0x5e0] sm:$0xf] %v3134
    %3151 = vst [vmem:[#allocation2 + $0x5e8] sm:$0xf] %v3135
    %3152 = vst [vmem:[#allocation2 + $0x5f0] sm:$0xf] %v3136
    %3153 = vst [vmem:[#allocation2 + $0x5f8] sm:$0xf] %v3137
    %s3154 = scalar_lea.vmem [#allocation6], 263
    %v3155 = vld [vmem:[%s3154] ss:$8 sm:$0xf]
    %v3156 = vld [vmem:[%s3154] ss:$8 sm:$0xf0]
    %v3157 = vor.u32 %v3155, %v3156
    %s3158 = scalar_lea.vmem [#allocation6], 327
    %v3159 = vld [vmem:[%s3158] ss:$8 sm:$0xf]
    %v3160 = vld [vmem:[%s3158] ss:$8 sm:$0xf0]
    %v3161 = vor.u32 %v3159, %v3160
    %v3164 = vperm.slane %v3157, 0
    %v3165 = vperm.slane %v3157, 1
    %v3166 = vperm.slane %v3157, 2
    %v3167 = vperm.slane %v3157, 3
    %v3168 = vperm.slane %v3157, 4
    %v3169 = vperm.slane %v3157, 5
    %v3170 = vperm.slane %v3157, 6
    %v3171 = vperm.slane %v3157, 7
    %v3172 = vperm.slane %v3161, 0
    %v3173 = vperm.slane %v3161, 1
    %v3174 = vperm.slane %v3161, 2
    %v3175 = vperm.slane %v3161, 3
    %v3176 = vperm.slane %v3161, 4
    %v3177 = vperm.slane %v3161, 5
    %v3178 = vperm.slane %v3161, 6
    %v3179 = vperm.slane %v3161, 7
    %v3196 = vmul.f32 %v1239, %v3164
    %v3197 = vmul.f32 %v1238, %v3165
    %v3198 = vmul.f32 %v1237, %v3166
    %v3199 = vmul.f32 %v1236, %v3167
    %v3200 = vmul.f32 %v1235, %v3168
    %v3201 = vmul.f32 %v1234, %v3169
    %v3202 = vmul.f32 %v1233, %v3170
    %v3203 = vmul.f32 %v1232, %v3171
    %v3204 = vmul.f32 %v1231, %v3172
    %v3205 = vmul.f32 %v1230, %v3173
    %v3206 = vmul.f32 %v1229, %v3174
    %v3207 = vmul.f32 %v1228, %v3175
    %v3208 = vmul.f32 %v1227, %v3176
    %v3209 = vmul.f32 %v1242, %v3177
    %v3210 = vmul.f32 %v1241, %v3178
    %v3211 = vmul.f32 %v1240, %v3179
    %v3228 = vrot.slane %v3196, 4
    %v3229 = vrot.slane %v3197, 4
    %v3230 = vrot.slane %v3198, 4
    %v3231 = vrot.slane %v3199, 4
    %v3232 = vrot.slane %v3200, 4
    %v3233 = vrot.slane %v3201, 4
    %v3234 = vrot.slane %v3202, 4
    %v3235 = vrot.slane %v3203, 4
    %v3236 = vrot.slane %v3204, 4
    %v3237 = vrot.slane %v3205, 4
    %v3238 = vrot.slane %v3206, 4
    %v3239 = vrot.slane %v3207, 4
    %v3240 = vrot.slane %v3208, 4
    %v3241 = vrot.slane %v3209, 4
    %v3242 = vrot.slane %v3210, 4
    %v3243 = vrot.slane %v3211, 4
    %3260 = vst [vmem:[#allocation2 + $0x580] sm:$0xf0] %v3228
    %3261 = vst [vmem:[#allocation2 + $0x588] sm:$0xf0] %v3229
    %3262 = vst [vmem:[#allocation2 + $0x590] sm:$0xf0] %v3230
    %3263 = vst [vmem:[#allocation2 + $0x598] sm:$0xf0] %v3231
    %3264 = vst [vmem:[#allocation2 + $0x5a0] sm:$0xf0] %v3232
    %3265 = vst [vmem:[#allocation2 + $0x5a8] sm:$0xf0] %v3233
    %3266 = vst [vmem:[#allocation2 + $0x5b0] sm:$0xf0] %v3234
    %3267 = vst [vmem:[#allocation2 + $0x5b8] sm:$0xf0] %v3235
    %3268 = vst [vmem:[#allocation2 + $0x5c0] sm:$0xf0] %v3236
    %3269 = vst [vmem:[#allocation2 + $0x5c8] sm:$0xf0] %v3237
    %3270 = vst [vmem:[#allocation2 + $0x5d0] sm:$0xf0] %v3238
    %3271 = vst [vmem:[#allocation2 + $0x5d8] sm:$0xf0] %v3239
    %3272 = vst [vmem:[#allocation2 + $0x5e0] sm:$0xf0] %v3240
    %3273 = vst [vmem:[#allocation2 + $0x5e8] sm:$0xf0] %v3241
    %3274 = vst [vmem:[#allocation2 + $0x5f0] sm:$0xf0] %v3242
    %3275 = vst [vmem:[#allocation2 + $0x5f8] sm:$0xf0] %v3243
    %s3276 = scalar_lea.vmem [#allocation6], 384
    %v3277 = vld [vmem:[%s3276] ss:$8 sm:$0xf]
    %v3278 = vld [vmem:[%s3276] ss:$8 sm:$0xf0]
    %v3279 = vor.u32 %v3277, %v3278
    %s3280 = scalar_lea.vmem [#allocation6], 448
    %v3281 = vld [vmem:[%s3280] ss:$8 sm:$0xf]
    %v3282 = vld [vmem:[%s3280] ss:$8 sm:$0xf0]
    %v3283 = vor.u32 %v3281, %v3282
    %v3286 = vperm.slane %v3279, 0
    %v3287 = vperm.slane %v3279, 1
    %v3288 = vperm.slane %v3279, 2
    %v3289 = vperm.slane %v3279, 3
    %v3290 = vperm.slane %v3279, 4
    %v3291 = vperm.slane %v3279, 5
    %v3292 = vperm.slane %v3279, 6
    %v3293 = vperm.slane %v3279, 7
    %v3294 = vperm.slane %v3283, 0
    %v3295 = vperm.slane %v3283, 1
    %v3296 = vperm.slane %v3283, 2
    %v3297 = vperm.slane %v3283, 3
    %v3298 = vperm.slane %v3283, 4
    %v3299 = vperm.slane %v3283, 5
    %v3300 = vperm.slane %v3283, 6
    %v3301 = vperm.slane %v3283, 7
    %v3318 = vmul.f32 %v1410, %v3286
    %v3319 = vmul.f32 %v1409, %v3287
    %v3320 = vmul.f32 %v1408, %v3288
    %v3321 = vmul.f32 %v1407, %v3289
    %v3322 = vmul.f32 %v1406, %v3290
    %v3323 = vmul.f32 %v1405, %v3291
    %v3324 = vmul.f32 %v1404, %v3292
    %v3325 = vmul.f32 %v1403, %v3293
    %v3326 = vmul.f32 %v1402, %v3294
    %v3327 = vmul.f32 %v1401, %v3295
    %v3328 = vmul.f32 %v1400, %v3296
    %v3329 = vmul.f32 %v1399, %v3297
    %v3330 = vmul.f32 %v1398, %v3298
    %v3331 = vmul.f32 %v1413, %v3299
    %v3332 = vmul.f32 %v1412, %v3300
    %v3333 = vmul.f32 %v1411, %v3301
    %3334 = vst [vmem:[#allocation2 + $0x600] sm:$0xf] %v3318
    %3335 = vst [vmem:[#allocation2 + $0x608] sm:$0xf] %v3319
    %3336 = vst [vmem:[#allocation2 + $0x610] sm:$0xf] %v3320
    %3337 = vst [vmem:[#allocation2 + $0x618] sm:$0xf] %v3321
    %3338 = vst [vmem:[#allocation2 + $0x620] sm:$0xf] %v3322
    %3339 = vst [vmem:[#allocation2 + $0x628] sm:$0xf] %v3323
    %3340 = vst [vmem:[#allocation2 + $0x630] sm:$0xf] %v3324
    %3341 = vst [vmem:[#allocation2 + $0x638] sm:$0xf] %v3325
    %3342 = vst [vmem:[#allocation2 + $0x640] sm:$0xf] %v3326
    %3343 = vst [vmem:[#allocation2 + $0x648] sm:$0xf] %v3327
    %3344 = vst [vmem:[#allocation2 + $0x650] sm:$0xf] %v3328
    %3345 = vst [vmem:[#allocation2 + $0x658] sm:$0xf] %v3329
    %3346 = vst [vmem:[#allocation2 + $0x660] sm:$0xf] %v3330
    %3347 = vst [vmem:[#allocation2 + $0x668] sm:$0xf] %v3331
    %3348 = vst [vmem:[#allocation2 + $0x670] sm:$0xf] %v3332
    %3349 = vst [vmem:[#allocation2 + $0x678] sm:$0xf] %v3333
    %s3350 = scalar_lea.vmem [#allocation6], 385
    %v3351 = vld [vmem:[%s3350] ss:$8 sm:$0xf]
    %v3352 = vld [vmem:[%s3350] ss:$8 sm:$0xf0]
    %v3353 = vor.u32 %v3351, %v3352
    %s3354 = scalar_lea.vmem [#allocation6], 449
    %v3355 = vld [vmem:[%s3354] ss:$8 sm:$0xf]
    %v3356 = vld [vmem:[%s3354] ss:$8 sm:$0xf0]
    %v3357 = vor.u32 %v3355, %v3356
    %v3360 = vperm.slane %v3353, 0
    %v3361 = vperm.slane %v3353, 1
    %v3362 = vperm.slane %v3353, 2
    %v3363 = vperm.slane %v3353, 3
    %v3364 = vperm.slane %v3353, 4
    %v3365 = vperm.slane %v3353, 5
    %v3366 = vperm.slane %v3353, 6
    %v3367 = vperm.slane %v3353, 7
    %v3368 = vperm.slane %v3357, 0
    %v3369 = vperm.slane %v3357, 1
    %v3370 = vperm.slane %v3357, 2
    %v3371 = vperm.slane %v3357, 3
    %v3372 = vperm.slane %v3357, 4
    %v3373 = vperm.slane %v3357, 5
    %v3374 = vperm.slane %v3357, 6
    %v3375 = vperm.slane %v3357, 7
    %v3392 = vmul.f32 %v1533, %v3360
    %v3393 = vmul.f32 %v1532, %v3361
    %v3394 = vmul.f32 %v1531, %v3362
    %v3395 = vmul.f32 %v1530, %v3363
    %v3396 = vmul.f32 %v1529, %v3364
    %v3397 = vmul.f32 %v1528, %v3365
    %v3398 = vmul.f32 %v1527, %v3366
    %v3399 = vmul.f32 %v1526, %v3367
    %v3400 = vmul.f32 %v1525, %v3368
    %v3401 = vmul.f32 %v1524, %v3369
    %v3402 = vmul.f32 %v1523, %v3370
    %v3403 = vmul.f32 %v1522, %v3371
    %v3404 = vmul.f32 %v1521, %v3372
    %v3405 = vmul.f32 %v1536, %v3373
    %v3406 = vmul.f32 %v1535, %v3374
    %v3407 = vmul.f32 %v1534, %v3375
    %v3424 = vrot.slane %v3392, 4
    %v3425 = vrot.slane %v3393, 4
    %v3426 = vrot.slane %v3394, 4
    %v3427 = vrot.slane %v3395, 4
    %v3428 = vrot.slane %v3396, 4
    %v3429 = vrot.slane %v3397, 4
    %v3430 = vrot.slane %v3398, 4
    %v3431 = vrot.slane %v3399, 4
    %v3432 = vrot.slane %v3400, 4
    %v3433 = vrot.slane %v3401, 4
    %v3434 = vrot.slane %v3402, 4
    %v3435 = vrot.slane %v3403, 4
    %v3436 = vrot.slane %v3404, 4
    %v3437 = vrot.slane %v3405, 4
    %v3438 = vrot.slane %v3406, 4
    %v3439 = vrot.slane %v3407, 4
    %3456 = vst [vmem:[#allocation2 + $0x600] sm:$0xf0] %v3424
    %3457 = vst [vmem:[#allocation2 + $0x608] sm:$0xf0] %v3425
    %3458 = vst [vmem:[#allocation2 + $0x610] sm:$0xf0] %v3426
    %3459 = vst [vmem:[#allocation2 + $0x618] sm:$0xf0] %v3427
    %3460 = vst [vmem:[#allocation2 + $0x620] sm:$0xf0] %v3428
    %3461 = vst [vmem:[#allocation2 + $0x628] sm:$0xf0] %v3429
    %3462 = vst [vmem:[#allocation2 + $0x630] sm:$0xf0] %v3430
    %3463 = vst [vmem:[#allocation2 + $0x638] sm:$0xf0] %v3431
    %3464 = vst [vmem:[#allocation2 + $0x640] sm:$0xf0] %v3432
    %3465 = vst [vmem:[#allocation2 + $0x648] sm:$0xf0] %v3433
    %3466 = vst [vmem:[#allocation2 + $0x650] sm:$0xf0] %v3434
    %3467 = vst [vmem:[#allocation2 + $0x658] sm:$0xf0] %v3435
    %3468 = vst [vmem:[#allocation2 + $0x660] sm:$0xf0] %v3436
    %3469 = vst [vmem:[#allocation2 + $0x668] sm:$0xf0] %v3437
    %3470 = vst [vmem:[#allocation2 + $0x670] sm:$0xf0] %v3438
    %3471 = vst [vmem:[#allocation2 + $0x678] sm:$0xf0] %v3439
    %s3472 = scalar_lea.vmem [#allocation6], 386
    %v3473 = vld [vmem:[%s3472] ss:$8 sm:$0xf]
    %v3474 = vld [vmem:[%s3472] ss:$8 sm:$0xf0]
    %v3475 = vor.u32 %v3473, %v3474
    %s3476 = scalar_lea.vmem [#allocation6], 450
    %v3477 = vld [vmem:[%s3476] ss:$8 sm:$0xf]
    %v3478 = vld [vmem:[%s3476] ss:$8 sm:$0xf0]
    %v3479 = vor.u32 %v3477, %v3478
    %v3482 = vperm.slane %v3475, 0
    %v3483 = vperm.slane %v3475, 1
    %v3484 = vperm.slane %v3475, 2
    %v3485 = vperm.slane %v3475, 3
    %v3486 = vperm.slane %v3475, 4
    %v3487 = vperm.slane %v3475, 5
    %v3488 = vperm.slane %v3475, 6
    %v3489 = vperm.slane %v3475, 7
    %v3490 = vperm.slane %v3479, 0
    %v3491 = vperm.slane %v3479, 1
    %v3492 = vperm.slane %v3479, 2
    %v3493 = vperm.slane %v3479, 3
    %v3494 = vperm.slane %v3479, 4
    %v3495 = vperm.slane %v3479, 5
    %v3496 = vperm.slane %v3479, 6
    %v3497 = vperm.slane %v3479, 7
    %v3514 = vmul.f32 %v1704, %v3482
    %v3515 = vmul.f32 %v1703, %v3483
    %v3516 = vmul.f32 %v1702, %v3484
    %v3517 = vmul.f32 %v1701, %v3485
    %v3518 = vmul.f32 %v1700, %v3486
    %v3519 = vmul.f32 %v1699, %v3487
    %v3520 = vmul.f32 %v1698, %v3488
    %v3521 = vmul.f32 %v1697, %v3489
    %v3522 = vmul.f32 %v1696, %v3490
    %v3523 = vmul.f32 %v1695, %v3491
    %v3524 = vmul.f32 %v1694, %v3492
    %v3525 = vmul.f32 %v1693, %v3493
    %v3526 = vmul.f32 %v1692, %v3494
    %v3527 = vmul.f32 %v1707, %v3495
    %v3528 = vmul.f32 %v1706, %v3496
    %v3529 = vmul.f32 %v1705, %v3497
    %3530 = vst [vmem:[#allocation2 + $0x680] sm:$0xf] %v3514
    %3531 = vst [vmem:[#allocation2 + $0x688] sm:$0xf] %v3515
    %3532 = vst [vmem:[#allocation2 + $0x690] sm:$0xf] %v3516
    %3533 = vst [vmem:[#allocation2 + $0x698] sm:$0xf] %v3517
    %3534 = vst [vmem:[#allocation2 + $0x6a0] sm:$0xf] %v3518
    %3535 = vst [vmem:[#allocation2 + $0x6a8] sm:$0xf] %v3519
    %3536 = vst [vmem:[#allocation2 + $0x6b0] sm:$0xf] %v3520
    %3537 = vst [vmem:[#allocation2 + $0x6b8] sm:$0xf] %v3521
    %3538 = vst [vmem:[#allocation2 + $0x6c0] sm:$0xf] %v3522
    %3539 = vst [vmem:[#allocation2 + $0x6c8] sm:$0xf] %v3523
    %3540 = vst [vmem:[#allocation2 + $0x6d0] sm:$0xf] %v3524
    %3541 = vst [vmem:[#allocation2 + $0x6d8] sm:$0xf] %v3525
    %3542 = vst [vmem:[#allocation2 + $0x6e0] sm:$0xf] %v3526
    %3543 = vst [vmem:[#allocation2 + $0x6e8] sm:$0xf] %v3527
    %3544 = vst [vmem:[#allocation2 + $0x6f0] sm:$0xf] %v3528
    %3545 = vst [vmem:[#allocation2 + $0x6f8] sm:$0xf] %v3529
    %v3546 = vld [vmem:[%s4] sm:$0xf]
    %v3547 = vld [vmem:[#allocation2] sm:$0xff]
    %v3548 = vld [vmem:[#allocation2 + $0x8] sm:$0xff]
    %v3549 = vld [vmem:[#allocation2 + $0x10] sm:$0xff]
    %v3550 = vld [vmem:[#allocation2 + $0x18] sm:$0xff]
    %v3551 = vld [vmem:[#allocation2 + $0x20] sm:$0xff]
    %v3552 = vld [vmem:[#allocation2 + $0x28] sm:$0xff]
    %v3553 = vld [vmem:[#allocation2 + $0x30] sm:$0xff]
    %v3554 = vld [vmem:[#allocation2 + $0x38] sm:$0xff]
    %v3555 = vld [vmem:[#allocation2 + $0x40] sm:$0xff]
    %v3556 = vld [vmem:[#allocation2 + $0x48] sm:$0xff]
    %v3557 = vld [vmem:[#allocation2 + $0x50] sm:$0xff]
    %v3558 = vld [vmem:[#allocation2 + $0x58] sm:$0xff]
    %v3559 = vld [vmem:[#allocation2 + $0x60] sm:$0xff]
    %v3560 = vld [vmem:[#allocation2 + $0x68] sm:$0xff]
    %v3561 = vld [vmem:[#allocation2 + $0x70] sm:$0xff]
    %v3562 = vld [vmem:[#allocation2 + $0x78] sm:$0xff]
    %v3563 = vld [vmem:[#allocation2 + $0x80] sm:$0xff]
    %v3564 = vld [vmem:[#allocation2 + $0x88] sm:$0xff]
    %v3565 = vld [vmem:[#allocation2 + $0x90] sm:$0xff]
    %v3566 = vld [vmem:[#allocation2 + $0x98] sm:$0xff]
    %v3567 = vld [vmem:[#allocation2 + $0xa0] sm:$0xff]
    %v3568 = vld [vmem:[#allocation2 + $0xa8] sm:$0xff]
    %v3569 = vld [vmem:[#allocation2 + $0xb0] sm:$0xff]
    %v3570 = vld [vmem:[#allocation2 + $0xb8] sm:$0xff]
    %v3571 = vld [vmem:[#allocation2 + $0xc0] sm:$0xff]
    %v3572 = vld [vmem:[#allocation2 + $0xc8] sm:$0xff]
    %v3573 = vld [vmem:[#allocation2 + $0xd0] sm:$0xff]
    %v3574 = vld [vmem:[#allocation2 + $0xd8] sm:$0xff]
    %v3575 = vld [vmem:[#allocation2 + $0xe0] sm:$0xff]
    %v3576 = vld [vmem:[#allocation2 + $0xe8] sm:$0xff]
    %v3577 = vld [vmem:[#allocation2 + $0xf0] sm:$0xff]
    %v3578 = vld [vmem:[#allocation2 + $0xf8] sm:$0xff]
    %v3579 = vld [vmem:[#allocation2 + $0x100] sm:$0xff]
    %v3580 = vld [vmem:[#allocation2 + $0x108] sm:$0xff]
    %v3581 = vld [vmem:[#allocation2 + $0x110] sm:$0xff]
    %v3582 = vld [vmem:[#allocation2 + $0x118] sm:$0xff]
    %v3583 = vld [vmem:[#allocation2 + $0x120] sm:$0xff]
    %v3584 = vld [vmem:[#allocation2 + $0x128] sm:$0xff]
    %v3585 = vld [vmem:[#allocation2 + $0x130] sm:$0xff]
    %v3586 = vld [vmem:[#allocation2 + $0x138] sm:$0xff]
    %v3587 = vld [vmem:[#allocation2 + $0x140] sm:$0xff]
    %v3588 = vld [vmem:[#allocation2 + $0x148] sm:$0xff]
    %v3589 = vld [vmem:[#allocation2 + $0x150] sm:$0xff]
    %v3590 = vld [vmem:[#allocation2 + $0x158] sm:$0xff]
    %v3591 = vld [vmem:[#allocation2 + $0x160] sm:$0xff]
    %v3592 = vld [vmem:[#allocation2 + $0x168] sm:$0xff]
    %v3593 = vld [vmem:[#allocation2 + $0x170] sm:$0xff]
    %v3594 = vld [vmem:[#allocation2 + $0x178] sm:$0xff]
    %v3595 = vld [vmem:[#allocation2 + $0x180] sm:$0xff]
    %v3596 = vld [vmem:[#allocation2 + $0x188] sm:$0xff]
    %v3597 = vld [vmem:[#allocation2 + $0x190] sm:$0xff]
    %v3598 = vld [vmem:[#allocation2 + $0x198] sm:$0xff]
    %v3599 = vld [vmem:[#allocation2 + $0x1a0] sm:$0xff]
    %v3600 = vld [vmem:[#allocation2 + $0x1a8] sm:$0xff]
    %v3601 = vld [vmem:[#allocation2 + $0x1b0] sm:$0xff]
    %v3602 = vld [vmem:[#allocation2 + $0x1b8] sm:$0xff]
    %v3603 = vld [vmem:[#allocation2 + $0x1c0] sm:$0xff]
    %v3604 = vld [vmem:[#allocation2 + $0x1c8] sm:$0xff]
    %v3605 = vld [vmem:[#allocation2 + $0x1d0] sm:$0xff]
    %v3606 = vld [vmem:[#allocation2 + $0x1d8] sm:$0xff]
    %v3607 = vld [vmem:[#allocation2 + $0x1e0] sm:$0xff]
    %v3608 = vld [vmem:[#allocation2 + $0x1e8] sm:$0xff]
    %v3609 = vld [vmem:[#allocation2 + $0x1f0] sm:$0xff]
    %v3610 = vld [vmem:[#allocation2 + $0x1f8] sm:$0xff]
    %v3611 = vld [vmem:[#allocation2 + $0x200] sm:$0xff]
    %v3612 = vld [vmem:[#allocation2 + $0x208] sm:$0xff]
    %v3613 = vld [vmem:[#allocation2 + $0x210] sm:$0xff]
    %v3614 = vld [vmem:[#allocation2 + $0x218] sm:$0xff]
    %v3615 = vld [vmem:[#allocation2 + $0x220] sm:$0xff]
    %v3616 = vld [vmem:[#allocation2 + $0x228] sm:$0xff]
    %v3617 = vld [vmem:[#allocation2 + $0x230] sm:$0xff]
    %v3618 = vld [vmem:[#allocation2 + $0x238] sm:$0xff]
    %v3619 = vld [vmem:[#allocation2 + $0x240] sm:$0xff]
    %v3620 = vld [vmem:[#allocation2 + $0x248] sm:$0xff]
    %v3621 = vld [vmem:[#allocation2 + $0x250] sm:$0xff]
    %v3622 = vld [vmem:[#allocation2 + $0x258] sm:$0xff]
    %v3623 = vld [vmem:[#allocation2 + $0x260] sm:$0xff]
    %v3624 = vld [vmem:[#allocation2 + $0x268] sm:$0xff]
    %v3625 = vld [vmem:[#allocation2 + $0x270] sm:$0xff]
    %v3626 = vld [vmem:[#allocation2 + $0x278] sm:$0xff]
    %v3627 = vld [vmem:[#allocation2 + $0x280] sm:$0xff]
    %v3628 = vld [vmem:[#allocation2 + $0x288] sm:$0xff]
    %v3629 = vld [vmem:[#allocation2 + $0x290] sm:$0xff]
    %v3630 = vld [vmem:[#allocation2 + $0x298] sm:$0xff]
    %v3631 = vld [vmem:[#allocation2 + $0x2a0] sm:$0xff]
    %v3632 = vld [vmem:[#allocation2 + $0x2a8] sm:$0xff]
    %v3633 = vld [vmem:[#allocation2 + $0x2b0] sm:$0xff]
    %v3634 = vld [vmem:[#allocation2 + $0x2b8] sm:$0xff]
    %v3635 = vld [vmem:[#allocation2 + $0x2c0] sm:$0xff]
    %v3636 = vld [vmem:[#allocation2 + $0x2c8] sm:$0xff]
    %v3637 = vld [vmem:[#allocation2 + $0x2d0] sm:$0xff]
    %v3638 = vld [vmem:[#allocation2 + $0x2d8] sm:$0xff]
    %v3639 = vld [vmem:[#allocation2 + $0x2e0] sm:$0xff]
    %v3640 = vld [vmem:[#allocation2 + $0x2e8] sm:$0xff]
    %v3641 = vld [vmem:[#allocation2 + $0x2f0] sm:$0xff]
    %v3642 = vld [vmem:[#allocation2 + $0x2f8] sm:$0xff]
    %v3643 = vld [vmem:[#allocation2 + $0x300] sm:$0xff]
    %v3644 = vld [vmem:[#allocation2 + $0x308] sm:$0xff]
    %v3645 = vld [vmem:[#allocation2 + $0x310] sm:$0xff]
    %v3646 = vld [vmem:[#allocation2 + $0x318] sm:$0xff]
    %v3647 = vld [vmem:[#allocation2 + $0x320] sm:$0xff]
    %v3648 = vld [vmem:[#allocation2 + $0x328] sm:$0xff]
    %v3649 = vld [vmem:[#allocation2 + $0x330] sm:$0xff]
    %v3650 = vld [vmem:[#allocation2 + $0x338] sm:$0xff]
    %v3651 = vld [vmem:[#allocation2 + $0x340] sm:$0xff]
    %v3652 = vld [vmem:[#allocation2 + $0x348] sm:$0xff]
    %v3653 = vld [vmem:[#allocation2 + $0x350] sm:$0xff]
    %v3654 = vld [vmem:[#allocation2 + $0x358] sm:$0xff]
    %v3655 = vld [vmem:[#allocation2 + $0x360] sm:$0xff]
    %v3656 = vld [vmem:[#allocation2 + $0x368] sm:$0xff]
    %v3657 = vld [vmem:[#allocation2 + $0x370] sm:$0xff]
    %v3658 = vld [vmem:[#allocation2 + $0x378] sm:$0xff]
    %v3659 = vld [vmem:[#allocation2 + $0x380] sm:$0xff]
    %v3660 = vld [vmem:[#allocation2 + $0x388] sm:$0xff]
    %v3661 = vld [vmem:[#allocation2 + $0x390] sm:$0xff]
    %v3662 = vld [vmem:[#allocation2 + $0x398] sm:$0xff]
    %v3663 = vld [vmem:[#allocation2 + $0x3a0] sm:$0xff]
    %v3664 = vld [vmem:[#allocation2 + $0x3a8] sm:$0xff]
    %v3665 = vld [vmem:[#allocation2 + $0x3b0] sm:$0xff]
    %v3666 = vld [vmem:[#allocation2 + $0x3b8] sm:$0xff]
    %v3667 = vld [vmem:[#allocation2 + $0x3c0] sm:$0xff]
    %v3668 = vld [vmem:[#allocation2 + $0x3c8] sm:$0xff]
    %v3669 = vld [vmem:[#allocation2 + $0x3d0] sm:$0xff]
    %v3670 = vld [vmem:[#allocation2 + $0x3d8] sm:$0xff]
    %v3671 = vld [vmem:[#allocation2 + $0x3e0] sm:$0xff]
    %v3672 = vld [vmem:[#allocation2 + $0x3e8] sm:$0xff]
    %v3673 = vld [vmem:[#allocation2 + $0x3f0] sm:$0xff]
    %v3674 = vld [vmem:[#allocation2 + $0x3f8] sm:$0xff]
    %v3675 = vld [vmem:[#allocation2 + $0x400] sm:$0xff]
    %v3676 = vld [vmem:[#allocation2 + $0x408] sm:$0xff]
    %v3677 = vld [vmem:[#allocation2 + $0x410] sm:$0xff]
    %v3678 = vld [vmem:[#allocation2 + $0x418] sm:$0xff]
    %v3679 = vld [vmem:[#allocation2 + $0x420] sm:$0xff]
    %v3680 = vld [vmem:[#allocation2 + $0x428] sm:$0xff]
    %v3681 = vld [vmem:[#allocation2 + $0x430] sm:$0xff]
    %v3682 = vld [vmem:[#allocation2 + $0x438] sm:$0xff]
    %v3683 = vld [vmem:[#allocation2 + $0x440] sm:$0xff]
    %v3684 = vld [vmem:[#allocation2 + $0x448] sm:$0xff]
    %v3685 = vld [vmem:[#allocation2 + $0x450] sm:$0xff]
    %v3686 = vld [vmem:[#allocation2 + $0x458] sm:$0xff]
    %v3687 = vld [vmem:[#allocation2 + $0x460] sm:$0xff]
    %v3688 = vld [vmem:[#allocation2 + $0x468] sm:$0xff]
    %v3689 = vld [vmem:[#allocation2 + $0x470] sm:$0xff]
    %v3690 = vld [vmem:[#allocation2 + $0x478] sm:$0xff]
    %v3691 = vld [vmem:[#allocation2 + $0x480] sm:$0xff]
    %v3692 = vld [vmem:[#allocation2 + $0x488] sm:$0xff]
    %v3693 = vld [vmem:[#allocation2 + $0x490] sm:$0xff]
    %v3694 = vld [vmem:[#allocation2 + $0x498] sm:$0xff]
    %v3695 = vld [vmem:[#allocation2 + $0x4a0] sm:$0xff]
    %v3696 = vld [vmem:[#allocation2 + $0x4a8] sm:$0xff]
    %v3697 = vld [vmem:[#allocation2 + $0x4b0] sm:$0xff]
    %v3698 = vld [vmem:[#allocation2 + $0x4b8] sm:$0xff]
    %v3699 = vld [vmem:[#allocation2 + $0x4c0] sm:$0xff]
    %v3700 = vld [vmem:[#allocation2 + $0x4c8] sm:$0xff]
    %v3701 = vld [vmem:[#allocation2 + $0x4d0] sm:$0xff]
    %v3702 = vld [vmem:[#allocation2 + $0x4d8] sm:$0xff]
    %v3703 = vld [vmem:[#allocation2 + $0x4e0] sm:$0xff]
    %v3704 = vld [vmem:[#allocation2 + $0x4e8] sm:$0xff]
    %v3705 = vld [vmem:[#allocation2 + $0x4f0] sm:$0xff]
    %v3706 = vld [vmem:[#allocation2 + $0x4f8] sm:$0xff]
    %v3707 = vld [vmem:[#allocation2 + $0x500] sm:$0xff]
    %v3708 = vld [vmem:[#allocation2 + $0x508] sm:$0xff]
    %v3709 = vld [vmem:[#allocation2 + $0x510] sm:$0xff]
    %v3710 = vld [vmem:[#allocation2 + $0x518] sm:$0xff]
    %v3711 = vld [vmem:[#allocation2 + $0x520] sm:$0xff]
    %v3712 = vld [vmem:[#allocation2 + $0x528] sm:$0xff]
    %v3713 = vld [vmem:[#allocation2 + $0x530] sm:$0xff]
    %v3714 = vld [vmem:[#allocation2 + $0x538] sm:$0xff]
    %v3715 = vld [vmem:[#allocation2 + $0x540] sm:$0xff]
    %v3716 = vld [vmem:[#allocation2 + $0x548] sm:$0xff]
    %v3717 = vld [vmem:[#allocation2 + $0x550] sm:$0xff]
    %v3718 = vld [vmem:[#allocation2 + $0x558] sm:$0xff]
    %v3719 = vld [vmem:[#allocation2 + $0x560] sm:$0xff]
    %v3720 = vld [vmem:[#allocation2 + $0x568] sm:$0xff]
    %v3721 = vld [vmem:[#allocation2 + $0x570] sm:$0xff]
    %v3722 = vld [vmem:[#allocation2 + $0x578] sm:$0xff]
    %v3723 = vld [vmem:[#allocation2 + $0x580] sm:$0xff]
    %v3724 = vld [vmem:[#allocation2 + $0x588] sm:$0xff]
    %v3725 = vld [vmem:[#allocation2 + $0x590] sm:$0xff]
    %v3726 = vld [vmem:[#allocation2 + $0x598] sm:$0xff]
    %v3727 = vld [vmem:[#allocation2 + $0x5a0] sm:$0xff]
    %v3728 = vld [vmem:[#allocation2 + $0x5a8] sm:$0xff]
    %v3729 = vld [vmem:[#allocation2 + $0x5b0] sm:$0xff]
    %v3730 = vld [vmem:[#allocation2 + $0x5b8] sm:$0xff]
    %v3731 = vld [vmem:[#allocation2 + $0x5c0] sm:$0xff]
    %v3732 = vld [vmem:[#allocation2 + $0x5c8] sm:$0xff]
    %v3733 = vld [vmem:[#allocation2 + $0x5d0] sm:$0xff]
    %v3734 = vld [vmem:[#allocation2 + $0x5d8] sm:$0xff]
    %v3735 = vld [vmem:[#allocation2 + $0x5e0] sm:$0xff]
    %v3736 = vld [vmem:[#allocation2 + $0x5e8] sm:$0xff]
    %v3737 = vld [vmem:[#allocation2 + $0x5f0] sm:$0xff]
    %v3738 = vld [vmem:[#allocation2 + $0x5f8] sm:$0xff]
    %v3739 = vld [vmem:[#allocation2 + $0x600] sm:$0xff]
    %v3740 = vld [vmem:[#allocation2 + $0x608] sm:$0xff]
    %v3741 = vld [vmem:[#allocation2 + $0x610] sm:$0xff]
    %v3742 = vld [vmem:[#allocation2 + $0x618] sm:$0xff]
    %v3743 = vld [vmem:[#allocation2 + $0x620] sm:$0xff]
    %v3744 = vld [vmem:[#allocation2 + $0x628] sm:$0xff]
    %v3745 = vld [vmem:[#allocation2 + $0x630] sm:$0xff]
    %v3746 = vld [vmem:[#allocation2 + $0x638] sm:$0xff]
    %v3747 = vld [vmem:[#allocation2 + $0x640] sm:$0xff]
    %v3748 = vld [vmem:[#allocation2 + $0x648] sm:$0xff]
    %v3749 = vld [vmem:[#allocation2 + $0x650] sm:$0xff]
    %v3750 = vld [vmem:[#allocation2 + $0x658] sm:$0xff]
    %v3751 = vld [vmem:[#allocation2 + $0x660] sm:$0xff]
    %v3752 = vld [vmem:[#allocation2 + $0x668] sm:$0xff]
    %v3753 = vld [vmem:[#allocation2 + $0x670] sm:$0xff]
    %v3754 = vld [vmem:[#allocation2 + $0x678] sm:$0xff]
    %v3755 = vld [vmem:[#allocation2 + $0x680] sm:$0xff]
    %v3756 = vld [vmem:[#allocation2 + $0x688] sm:$0xff]
    %v3757 = vld [vmem:[#allocation2 + $0x690] sm:$0xff]
    %v3758 = vld [vmem:[#allocation2 + $0x698] sm:$0xff]
    %v3759 = vld [vmem:[#allocation2 + $0x6a0] sm:$0xff]
    %v3760 = vld [vmem:[#allocation2 + $0x6a8] sm:$0xff]
    %v3761 = vld [vmem:[#allocation2 + $0x6b0] sm:$0xff]
    %v3762 = vld [vmem:[#allocation2 + $0x6b8] sm:$0xff]
    %v3763 = vld [vmem:[#allocation2 + $0x6c0] sm:$0xff]
    %v3764 = vld [vmem:[#allocation2 + $0x6c8] sm:$0xff]
    %v3765 = vld [vmem:[#allocation2 + $0x6d0] sm:$0xff]
    %v3766 = vld [vmem:[#allocation2 + $0x6d8] sm:$0xff]
    %v3767 = vld [vmem:[#allocation2 + $0x6e0] sm:$0xff]
    %v3768 = vld [vmem:[#allocation2 + $0x6e8] sm:$0xff]
    %v3769 = vld [vmem:[#allocation2 + $0x6f0] sm:$0xff]
    %v3770 = vld [vmem:[#allocation2 + $0x6f8] sm:$0xff]
    %v3771 = vld [vmem:[#allocation2 + $0x700] sm:$0xff]
    %v3772 = vld [vmem:[#allocation2 + $0x708] sm:$0xff]
    %v3773 = vld [vmem:[#allocation2 + $0x710] sm:$0xff]
    %v3774 = vld [vmem:[#allocation2 + $0x718] sm:$0xff]
    %v3775 = vld [vmem:[#allocation2 + $0x720] sm:$0xff]
    %v3776 = vld [vmem:[#allocation2 + $0x728] sm:$0xff]
    %v3777 = vld [vmem:[#allocation2 + $0x730] sm:$0xff]
    %v3778 = vld [vmem:[#allocation2 + $0x738] sm:$0xff]
    %v3779 = vld [vmem:[#allocation2 + $0x740] sm:$0xff]
    %v3780 = vld [vmem:[#allocation2 + $0x748] sm:$0xff]
    %v3781 = vld [vmem:[#allocation2 + $0x750] sm:$0xff]
    %v3782 = vld [vmem:[#allocation2 + $0x758] sm:$0xff]
    %v3783 = vld [vmem:[#allocation2 + $0x760] sm:$0xff]
    %v3784 = vld [vmem:[#allocation2 + $0x768] sm:$0xff]
    %v3785 = vld [vmem:[#allocation2 + $0x770] sm:$0xff]
    %v3786 = vld [vmem:[#allocation2 + $0x778] sm:$0xff]
    %v3787 = vld [vmem:[#allocation2 + $0x780] sm:$0xff]
    %v3788 = vld [vmem:[#allocation2 + $0x788] sm:$0xff]
    %v3789 = vld [vmem:[#allocation2 + $0x790] sm:$0xff]
    %v3790 = vld [vmem:[#allocation2 + $0x798] sm:$0xff]
    %v3791 = vld [vmem:[#allocation2 + $0x7a0] sm:$0xff]
    %v3792 = vld [vmem:[#allocation2 + $0x7a8] sm:$0xff]
    %v3793 = vld [vmem:[#allocation2 + $0x7b0] sm:$0xff]
    %v3794 = vld [vmem:[#allocation2 + $0x7b8] sm:$0xff]
    %v3795 = vld [vmem:[#allocation2 + $0x7c0] sm:$0xff]
    %v3796 = vld [vmem:[#allocation2 + $0x7c8] sm:$0xff]
    %v3797 = vld [vmem:[#allocation2 + $0x7d0] sm:$0xff]
    %v3798 = vld [vmem:[#allocation2 + $0x7d8] sm:$0xff]
    %v3799 = vld [vmem:[#allocation2 + $0x7e0] sm:$0xff]
    %v3800 = vld [vmem:[#allocation2 + $0x7e8] sm:$0xff]
    %v3801 = vld [vmem:[#allocation2 + $0x7f0] sm:$0xff]
    %v3802 = vld [vmem:[#allocation2 + $0x7f8] sm:$0xff]
    %v3803 = vld [vmem:[%s5] sm:$0xf]
    %3805 = vset.pattern.permute.xlu0 0
    %3806 = vperm.xlu0 %3805, %v3803
    %v3807 = vpop.permute.xlu0 %3806
    %3809 = vmatpush.msra.mxu0 %v3787
    %3810 = vmatpush.msra.mxu0 %v3771
    %3811 = vmatpush.msra.mxu0 %v3755
    %3812 = vmatpush.msra.mxu0 %v3739
    %3813 = vmatpush.msra.mxu0 %v3723
    %3814 = vmatpush.msra.mxu0 %v3707
    %3815 = vmatpush.msra.mxu0 %v3691
    %3816 = vmatpush.msra.mxu0 %v3675
    %3817 = vmatpush.msra.mxu0 %v3659
    %3818 = vmatpush.msra.mxu0 %v3643
    %3819 = vmatpush.msra.mxu0 %v3627
    %3820 = vmatpush.msra.mxu0 %v3611
    %3821 = vmatpush.msra.mxu0 %v3595
    %3822 = vmatpush.msra.mxu0 %v3579
    %3823 = vmatpush.msra.mxu0 %v3563
    %3824 = vmatpush.msra.mxu0 %v3547
    %3825 = vmatmul.f32.gmra.mxu0 %v3546
    %v3826 = vpop.f32.mrf.mxu0
    %v3827 = vadd.f32 %v3807, %v3826
    %3828 = vdwg.mxu0
    %3829 = vmatpush.msra.mxu0 %v3788
    %3830 = vmatpush.msra.mxu0 %v3772
    %3831 = vmatpush.msra.mxu0 %v3756
    %3832 = vmatpush.msra.mxu0 %v3740
    %3833 = vmatpush.msra.mxu0 %v3724
    %3834 = vmatpush.msra.mxu0 %v3708
    %3835 = vmatpush.msra.mxu0 %v3692
    %3836 = vmatpush.msra.mxu0 %v3676
    %3837 = vmatpush.msra.mxu0 %v3660
    %3838 = vmatpush.msra.mxu0 %v3644
    %3839 = vmatpush.msra.mxu0 %v3628
    %3840 = vmatpush.msra.mxu0 %v3612
    %3841 = vmatpush.msra.mxu0 %v3596
    %3842 = vmatpush.msra.mxu0 %v3580
    %3843 = vmatpush.msra.mxu0 %v3564
    %3844 = vmatpush.msra.mxu0 %v3548
    %3845 = vmatmul.f32.gmra.mxu0 %v3546
    %v3846 = vpop.f32.mrf.mxu0
    %v3847 = vadd.f32 %v3807, %v3846
    %3848 = vdwg.mxu0
    %3849 = vmatpush.msra.mxu0 %v3789
    %3850 = vmatpush.msra.mxu0 %v3773
    %3851 = vmatpush.msra.mxu0 %v3757
    %3852 = vmatpush.msra.mxu0 %v3741
    %3853 = vmatpush.msra.mxu0 %v3725
    %3854 = vmatpush.msra.mxu0 %v3709
    %3855 = vmatpush.msra.mxu0 %v3693
    %3856 = vmatpush.msra.mxu0 %v3677
    %3857 = vmatpush.msra.mxu0 %v3661
    %3858 = vmatpush.msra.mxu0 %v3645
    %3859 = vmatpush.msra.mxu0 %v3629
    %3860 = vmatpush.msra.mxu0 %v3613
    %3861 = vmatpush.msra.mxu0 %v3597
    %3862 = vmatpush.msra.mxu0 %v3581
    %3863 = vmatpush.msra.mxu0 %v3565
    %3864 = vmatpush.msra.mxu0 %v3549
    %3865 = vmatmul.f32.gmra.mxu0 %v3546
    %v3866 = vpop.f32.mrf.mxu0
    %v3867 = vadd.f32 %v3807, %v3866
    %3868 = vdwg.mxu0
    %3869 = vmatpush.msra.mxu0 %v3790
    %3870 = vmatpush.msra.mxu0 %v3774
    %3871 = vmatpush.msra.mxu0 %v3758
    %3872 = vmatpush.msra.mxu0 %v3742
    %3873 = vmatpush.msra.mxu0 %v3726
    %3874 = vmatpush.msra.mxu0 %v3710
    %3875 = vmatpush.msra.mxu0 %v3694
    %3876 = vmatpush.msra.mxu0 %v3678
    %3877 = vmatpush.msra.mxu0 %v3662
    %3878 = vmatpush.msra.mxu0 %v3646
    %3879 = vmatpush.msra.mxu0 %v3630
    %3880 = vmatpush.msra.mxu0 %v3614
    %3881 = vmatpush.msra.mxu0 %v3598
    %3882 = vmatpush.msra.mxu0 %v3582
    %3883 = vmatpush.msra.mxu0 %v3566
    %3884 = vmatpush.msra.mxu0 %v3550
    %3885 = vmatmul.f32.gmra.mxu0 %v3546
    %v3886 = vpop.f32.mrf.mxu0
    %v3887 = vadd.f32 %v3807, %v3886
    %3888 = vdwg.mxu0
    %3889 = vmatpush.msra.mxu0 %v3791
    %3890 = vmatpush.msra.mxu0 %v3775
    %3891 = vmatpush.msra.mxu0 %v3759
    %3892 = vmatpush.msra.mxu0 %v3743
    %3893 = vmatpush.msra.mxu0 %v3727
    %3894 = vmatpush.msra.mxu0 %v3711
    %3895 = vmatpush.msra.mxu0 %v3695
    %3896 = vmatpush.msra.mxu0 %v3679
    %3897 = vmatpush.msra.mxu0 %v3663
    %3898 = vmatpush.msra.mxu0 %v3647
    %3899 = vmatpush.msra.mxu0 %v3631
    %3900 = vmatpush.msra.mxu0 %v3615
    %3901 = vmatpush.msra.mxu0 %v3599
    %3902 = vmatpush.msra.mxu0 %v3583
    %3903 = vmatpush.msra.mxu0 %v3567
    %3904 = vmatpush.msra.mxu0 %v3551
    %3905 = vmatmul.f32.gmra.mxu0 %v3546
    %v3906 = vpop.f32.mrf.mxu0
    %v3907 = vadd.f32 %v3807, %v3906
    %3908 = vdwg.mxu0
    %3909 = vmatpush.msra.mxu0 %v3792
    %3910 = vmatpush.msra.mxu0 %v3776
    %3911 = vmatpush.msra.mxu0 %v3760
    %3912 = vmatpush.msra.mxu0 %v3744
    %3913 = vmatpush.msra.mxu0 %v3728
    %3914 = vmatpush.msra.mxu0 %v3712
    %3915 = vmatpush.msra.mxu0 %v3696
    %3916 = vmatpush.msra.mxu0 %v3680
    %3917 = vmatpush.msra.mxu0 %v3664
    %3918 = vmatpush.msra.mxu0 %v3648
    %3919 = vmatpush.msra.mxu0 %v3632
    %3920 = vmatpush.msra.mxu0 %v3616
    %3921 = vmatpush.msra.mxu0 %v3600
    %3922 = vmatpush.msra.mxu0 %v3584
    %3923 = vmatpush.msra.mxu0 %v3568
    %3924 = vmatpush.msra.mxu0 %v3552
    %3925 = vmatmul.f32.gmra.mxu0 %v3546
    %v3926 = vpop.f32.mrf.mxu0
    %v3927 = vadd.f32 %v3807, %v3926
    %3928 = vdwg.mxu0
    %3929 = vmatpush.msra.mxu0 %v3793
    %3930 = vmatpush.msra.mxu0 %v3777
    %3931 = vmatpush.msra.mxu0 %v3761
    %3932 = vmatpush.msra.mxu0 %v3745
    %3933 = vmatpush.msra.mxu0 %v3729
    %3934 = vmatpush.msra.mxu0 %v3713
    %3935 = vmatpush.msra.mxu0 %v3697
    %3936 = vmatpush.msra.mxu0 %v3681
    %3937 = vmatpush.msra.mxu0 %v3665
    %3938 = vmatpush.msra.mxu0 %v3649
    %3939 = vmatpush.msra.mxu0 %v3633
    %3940 = vmatpush.msra.mxu0 %v3617
    %3941 = vmatpush.msra.mxu0 %v3601
    %3942 = vmatpush.msra.mxu0 %v3585
    %3943 = vmatpush.msra.mxu0 %v3569
    %3944 = vmatpush.msra.mxu0 %v3553
    %3945 = vmatmul.f32.gmra.mxu0 %v3546
    %v3946 = vpop.f32.mrf.mxu0
    %v3947 = vadd.f32 %v3807, %v3946
    %3948 = vdwg.mxu0
    %3949 = vmatpush.msra.mxu0 %v3794
    %3950 = vmatpush.msra.mxu0 %v3778
    %3951 = vmatpush.msra.mxu0 %v3762
    %3952 = vmatpush.msra.mxu0 %v3746
    %3953 = vmatpush.msra.mxu0 %v3730
    %3954 = vmatpush.msra.mxu0 %v3714
    %3955 = vmatpush.msra.mxu0 %v3698
    %3956 = vmatpush.msra.mxu0 %v3682
    %3957 = vmatpush.msra.mxu0 %v3666
    %3958 = vmatpush.msra.mxu0 %v3650
    %3959 = vmatpush.msra.mxu0 %v3634
    %3960 = vmatpush.msra.mxu0 %v3618
    %3961 = vmatpush.msra.mxu0 %v3602
    %3962 = vmatpush.msra.mxu0 %v3586
    %3963 = vmatpush.msra.mxu0 %v3570
    %3964 = vmatpush.msra.mxu0 %v3554
    %3965 = vmatmul.f32.gmra.mxu0 %v3546
    %v3966 = vpop.f32.mrf.mxu0
    %v3967 = vadd.f32 %v3807, %v3966
    %3968 = vdwg.mxu0
    %3969 = vmatpush.msra.mxu0 %v3795
    %3970 = vmatpush.msra.mxu0 %v3779
    %3971 = vmatpush.msra.mxu0 %v3763
    %3972 = vmatpush.msra.mxu0 %v3747
    %3973 = vmatpush.msra.mxu0 %v3731
    %3974 = vmatpush.msra.mxu0 %v3715
    %3975 = vmatpush.msra.mxu0 %v3699
    %3976 = vmatpush.msra.mxu0 %v3683
    %3977 = vmatpush.msra.mxu0 %v3667
    %3978 = vmatpush.msra.mxu0 %v3651
    %3979 = vmatpush.msra.mxu0 %v3635
    %3980 = vmatpush.msra.mxu0 %v3619
    %3981 = vmatpush.msra.mxu0 %v3603
    %3982 = vmatpush.msra.mxu0 %v3587
    %3983 = vmatpush.msra.mxu0 %v3571
    %3984 = vmatpush.msra.mxu0 %v3555
    %3985 = vmatmul.f32.gmra.mxu0 %v3546
    %v3986 = vpop.f32.mrf.mxu0
    %v3987 = vadd.f32 %v3807, %v3986
    %3988 = vdwg.mxu0
    %3989 = vmatpush.msra.mxu0 %v3796
    %3990 = vmatpush.msra.mxu0 %v3780
    %3991 = vmatpush.msra.mxu0 %v3764
    %3992 = vmatpush.msra.mxu0 %v3748
    %3993 = vmatpush.msra.mxu0 %v3732
    %3994 = vmatpush.msra.mxu0 %v3716
    %3995 = vmatpush.msra.mxu0 %v3700
    %3996 = vmatpush.msra.mxu0 %v3684
    %3997 = vmatpush.msra.mxu0 %v3668
    %3998 = vmatpush.msra.mxu0 %v3652
    %3999 = vmatpush.msra.mxu0 %v3636
    %4000 = vmatpush.msra.mxu0 %v3620
    %4001 = vmatpush.msra.mxu0 %v3604
    %4002 = vmatpush.msra.mxu0 %v3588
    %4003 = vmatpush.msra.mxu0 %v3572
    %4004 = vmatpush.msra.mxu0 %v3556
    %4005 = vmatmul.f32.gmra.mxu0 %v3546
    %v4006 = vpop.f32.mrf.mxu0
    %v4007 = vadd.f32 %v3807, %v4006
    %4008 = vdwg.mxu0
    %4009 = vmatpush.msra.mxu0 %v3797
    %4010 = vmatpush.msra.mxu0 %v3781
    %4011 = vmatpush.msra.mxu0 %v3765
    %4012 = vmatpush.msra.mxu0 %v3749
    %4013 = vmatpush.msra.mxu0 %v3733
    %4014 = vmatpush.msra.mxu0 %v3717
    %4015 = vmatpush.msra.mxu0 %v3701
    %4016 = vmatpush.msra.mxu0 %v3685
    %4017 = vmatpush.msra.mxu0 %v3669
    %4018 = vmatpush.msra.mxu0 %v3653
    %4019 = vmatpush.msra.mxu0 %v3637
    %4020 = vmatpush.msra.mxu0 %v3621
    %4021 = vmatpush.msra.mxu0 %v3605
    %4022 = vmatpush.msra.mxu0 %v3589
    %4023 = vmatpush.msra.mxu0 %v3573
    %4024 = vmatpush.msra.mxu0 %v3557
    %4025 = vmatmul.f32.gmra.mxu0 %v3546
    %v4026 = vpop.f32.mrf.mxu0
    %v4027 = vadd.f32 %v3807, %v4026
    %4028 = vdwg.mxu0
    %4029 = vmatpush.msra.mxu0 %v3798
    %4030 = vmatpush.msra.mxu0 %v3782
    %4031 = vmatpush.msra.mxu0 %v3766
    %4032 = vmatpush.msra.mxu0 %v3750
    %4033 = vmatpush.msra.mxu0 %v3734
    %4034 = vmatpush.msra.mxu0 %v3718
    %4035 = vmatpush.msra.mxu0 %v3702
    %4036 = vmatpush.msra.mxu0 %v3686
    %4037 = vmatpush.msra.mxu0 %v3670
    %4038 = vmatpush.msra.mxu0 %v3654
    %4039 = vmatpush.msra.mxu0 %v3638
    %4040 = vmatpush.msra.mxu0 %v3622
    %4041 = vmatpush.msra.mxu0 %v3606
    %4042 = vmatpush.msra.mxu0 %v3590
    %4043 = vmatpush.msra.mxu0 %v3574
    %4044 = vmatpush.msra.mxu0 %v3558
    %4045 = vmatmul.f32.gmra.mxu0 %v3546
    %v4046 = vpop.f32.mrf.mxu0
    %v4047 = vadd.f32 %v3807, %v4046
    %4048 = vdwg.mxu0
    %4049 = vmatpush.msra.mxu0 %v3799
    %4050 = vmatpush.msra.mxu0 %v3783
    %4051 = vmatpush.msra.mxu0 %v3767
    %4052 = vmatpush.msra.mxu0 %v3751
    %4053 = vmatpush.msra.mxu0 %v3735
    %4054 = vmatpush.msra.mxu0 %v3719
    %4055 = vmatpush.msra.mxu0 %v3703
    %4056 = vmatpush.msra.mxu0 %v3687
    %4057 = vmatpush.msra.mxu0 %v3671
    %4058 = vmatpush.msra.mxu0 %v3655
    %4059 = vmatpush.msra.mxu0 %v3639
    %4060 = vmatpush.msra.mxu0 %v3623
    %4061 = vmatpush.msra.mxu0 %v3607
    %4062 = vmatpush.msra.mxu0 %v3591
    %4063 = vmatpush.msra.mxu0 %v3575
    %4064 = vmatpush.msra.mxu0 %v3559
    %4065 = vmatmul.f32.gmra.mxu0 %v3546
    %v4066 = vpop.f32.mrf.mxu0
    %v4067 = vadd.f32 %v3807, %v4066
    %4068 = vdwg.mxu0
    %4069 = vmatpush.msra.mxu0 %v3800
    %4070 = vmatpush.msra.mxu0 %v3784
    %4071 = vmatpush.msra.mxu0 %v3768
    %4072 = vmatpush.msra.mxu0 %v3752
    %4073 = vmatpush.msra.mxu0 %v3736
    %4074 = vmatpush.msra.mxu0 %v3720
    %4075 = vmatpush.msra.mxu0 %v3704
    %4076 = vmatpush.msra.mxu0 %v3688
    %4077 = vmatpush.msra.mxu0 %v3672
    %4078 = vmatpush.msra.mxu0 %v3656
    %4079 = vmatpush.msra.mxu0 %v3640
    %4080 = vmatpush.msra.mxu0 %v3624
    %4081 = vmatpush.msra.mxu0 %v3608
    %4082 = vmatpush.msra.mxu0 %v3592
    %4083 = vmatpush.msra.mxu0 %v3576
    %4084 = vmatpush.msra.mxu0 %v3560
    %4085 = vmatmul.f32.gmra.mxu0 %v3546
    %v4086 = vpop.f32.mrf.mxu0
    %v4087 = vadd.f32 %v3807, %v4086
    %4088 = vdwg.mxu0
    %4089 = vmatpush.msra.mxu0 %v3801
    %4090 = vmatpush.msra.mxu0 %v3785
    %4091 = vmatpush.msra.mxu0 %v3769
    %4092 = vmatpush.msra.mxu0 %v3753
    %4093 = vmatpush.msra.mxu0 %v3737
    %4094 = vmatpush.msra.mxu0 %v3721
    %4095 = vmatpush.msra.mxu0 %v3705
    %4096 = vmatpush.msra.mxu0 %v3689
    %4097 = vmatpush.msra.mxu0 %v3673
    %4098 = vmatpush.msra.mxu0 %v3657
    %4099 = vmatpush.msra.mxu0 %v3641
    %4100 = vmatpush.msra.mxu0 %v3625
    %4101 = vmatpush.msra.mxu0 %v3609
    %4102 = vmatpush.msra.mxu0 %v3593
    %4103 = vmatpush.msra.mxu0 %v3577
    %4104 = vmatpush.msra.mxu0 %v3561
    %4105 = vmatmul.f32.gmra.mxu0 %v3546
    %v4106 = vpop.f32.mrf.mxu0
    %v4107 = vadd.f32 %v3807, %v4106
    %4108 = vdwg.mxu0
    %4109 = vmatpush.msra.mxu0 %v3802
    %4110 = vmatpush.msra.mxu0 %v3786
    %4111 = vmatpush.msra.mxu0 %v3770
    %4112 = vmatpush.msra.mxu0 %v3754
    %4113 = vmatpush.msra.mxu0 %v3738
    %4114 = vmatpush.msra.mxu0 %v3722
    %4115 = vmatpush.msra.mxu0 %v3706
    %4116 = vmatpush.msra.mxu0 %v3690
    %4117 = vmatpush.msra.mxu0 %v3674
    %4118 = vmatpush.msra.mxu0 %v3658
    %4119 = vmatpush.msra.mxu0 %v3642
    %4120 = vmatpush.msra.mxu0 %v3626
    %4121 = vmatpush.msra.mxu0 %v3610
    %4122 = vmatpush.msra.mxu0 %v3594
    %4123 = vmatpush.msra.mxu0 %v3578
    %4124 = vmatpush.msra.mxu0 %v3562
    %4125 = vmatmul.f32.gmra.mxu0 %v3546
    %v4126 = vpop.f32.mrf.mxu0
    %v4127 = vadd.f32 %v3807, %v4126
    %4128 = vdwg.mxu0
    %v4129 = vmax.f32 %v3827, 0.0
    %v4130 = vmax.f32 %v3847, 0.0
    %v4131 = vmax.f32 %v3867, 0.0
    %v4132 = vmax.f32 %v3887, 0.0
    %v4133 = vmax.f32 %v3907, 0.0
    %v4134 = vmax.f32 %v3927, 0.0
    %v4135 = vmax.f32 %v3947, 0.0
    %v4136 = vmax.f32 %v3967, 0.0
    %v4137 = vmax.f32 %v3987, 0.0
    %v4138 = vmax.f32 %v4007, 0.0
    %v4139 = vmax.f32 %v4027, 0.0
    %v4140 = vmax.f32 %v4047, 0.0
    %v4141 = vmax.f32 %v4067, 0.0
    %v4142 = vmax.f32 %v4087, 0.0
    %v4143 = vmax.f32 %v4107, 0.0
    %v4144 = vmax.f32 %v4127, 0.0
    %s4145 = scalar_lea.vmem [#allocation1], 1
    %4146 = vst [vmem:[%s4145] ss:$2 sm:$0xff] %v60
    %s4147 = scalar_lea.vmem [#allocation1], 17
    %4148 = vst [vmem:[%s4147] ss:$2 sm:$0xff] %v61
    %s4149 = scalar_lea.vmem [#allocation1], 33
    %4150 = vst [vmem:[%s4149] ss:$2 sm:$0xff] %v62
    %s4151 = scalar_lea.vmem [#allocation1], 49
    %4152 = vst [vmem:[%s4151] ss:$2 sm:$0xff] %v63
    %v4153 = vld.sshfl [vmem:[#allocation1] sm:$0xff pattern:$0x75316420]
    %v4154 = vld.sshfl [vmem:[#allocation1 + $0x8] sm:$0xff pattern:$0x75316420]
    %v4155 = vld.sshfl [vmem:[#allocation1 + $0x10] sm:$0xff pattern:$0x75316420]
    %v4156 = vld.sshfl [vmem:[#allocation1 + $0x18] sm:$0xff pattern:$0x75316420]
    %v4157 = vld.sshfl [vmem:[#allocation1 + $0x20] sm:$0xff pattern:$0x75316420]
    %v4158 = vld.sshfl [vmem:[#allocation1 + $0x28] sm:$0xff pattern:$0x75316420]
    %v4159 = vld.sshfl [vmem:[#allocation1 + $0x30] sm:$0xff pattern:$0x75316420]
    %v4160 = vld.sshfl [vmem:[#allocation1 + $0x38] sm:$0xff pattern:$0x75316420]
    %4161 = vst [vmem:[%s4145] ss:$2 sm:$0xff] %v64
    %4162 = vst [vmem:[%s4147] ss:$2 sm:$0xff] %v65
    %4163 = vst [vmem:[%s4149] ss:$2 sm:$0xff] %v66
    %4164 = vst [vmem:[%s4151] ss:$2 sm:$0xff] %v67
    %v4165 = vld.sshfl [vmem:[#allocation1] sm:$0xff pattern:$0x75316420]
    %v4166 = vld.sshfl [vmem:[#allocation1 + $0x8] sm:$0xff pattern:$0x75316420]
    %v4167 = vld.sshfl [vmem:[#allocation1 + $0x10] sm:$0xff pattern:$0x75316420]
    %v4168 = vld.sshfl [vmem:[#allocation1 + $0x18] sm:$0xff pattern:$0x75316420]
    %v4169 = vld.sshfl [vmem:[#allocation1 + $0x20] sm:$0xff pattern:$0x75316420]
    %v4170 = vld.sshfl [vmem:[#allocation1 + $0x28] sm:$0xff pattern:$0x75316420]
    %v4171 = vld.sshfl [vmem:[#allocation1 + $0x30] sm:$0xff pattern:$0x75316420]
    %v4172 = vld.sshfl [vmem:[#allocation1 + $0x38] sm:$0xff pattern:$0x75316420]
    %v4189 = vsel %vm114, %v4129, %v4153
    %v4190 = vsel %vm114, %v4130, %v4154
    %v4191 = vsel %vm114, %v4131, %v4155
    %v4192 = vsel %vm114, %v4132, %v4156
    %v4193 = vsel %vm114, %v4133, %v4157
    %v4194 = vsel %vm114, %v4134, %v4158
    %v4195 = vsel %vm114, %v4135, %v4159
    %v4196 = vsel %vm114, %v4136, %v4160
    %v4197 = vsel %vm114, %v4137, %v4165
    %v4198 = vsel %vm114, %v4138, %v4166
    %v4199 = vsel %vm114, %v4139, %v4167
    %v4200 = vsel %vm114, %v4140, %v4168
    %v4201 = vsel %vm114, %v4141, %v4169
    %v4202 = vsel %vm114, %v4142, %v4170
    %v4203 = vsel %vm114, %v4143, %v4171
    %v4204 = vsel %vm114, %v4144, %v4172
    %v4205 = vld [vmem:[%s6] sm:$0xff]
    %v4206 = vld [vmem:[%s7] sm:$0xff]
    %4208 = vset.pattern.permute.xlu0 0
    %4209 = vperm.xlu0 %4208, %v4206
    %v4210 = vpop.permute.xlu0 %4209
    %vm4212 = vcmask 64512
    %v4214 = vsel %vm4212, %v4205, 0
    %4216 = vmatpush.msra.mxu0 0.0
    %4217 = vmatpush.msra.mxu0 0.0
    %4218 = vmatpush.msra.mxu0 0.0
    %4219 = vmatpush.msra.mxu0 0.0
    %4220 = vmatpush.msra.mxu0 0.0
    %4221 = vmatpush.msra.mxu0 0.0
    %4222 = vmatpush.msra.mxu0 0.0
    %4223 = vmatpush.msra.mxu0 0.0
    %4224 = vmatpush.msra.mxu0 0.0
    %4225 = vmatpush.msra.mxu0 0.0
    %4226 = vmatpush.msra.mxu0 0.0
    %4227 = vmatpush.msra.mxu0 0.0
    %4228 = vmatpush.msra.mxu0 0.0
    %4229 = vmatpush.msra.mxu0 0.0
    %4230 = vmatpush.msra.mxu0 0.0
    %4231 = vmatpush.msra.mxu0 %v4189
    %4232 = vmatmul.f32.gmra.mxu0 %v4214
    %v4233 = vpop.f32.mrf.mxu0
    %v4234 = vadd.f32 %v4210, %v4233
    %4235 = vdwg.mxu0
    %4236 = vmatpush.msra.mxu0 0.0
    %4237 = vmatpush.msra.mxu0 0.0
    %4238 = vmatpush.msra.mxu0 0.0
    %4239 = vmatpush.msra.mxu0 0.0
    %4240 = vmatpush.msra.mxu0 0.0
    %4241 = vmatpush.msra.mxu0 0.0
    %4242 = vmatpush.msra.mxu0 0.0
    %4243 = vmatpush.msra.mxu0 0.0
    %4244 = vmatpush.msra.mxu0 0.0
    %4245 = vmatpush.msra.mxu0 0.0
    %4246 = vmatpush.msra.mxu0 0.0
    %4247 = vmatpush.msra.mxu0 0.0
    %4248 = vmatpush.msra.mxu0 0.0
    %4249 = vmatpush.msra.mxu0 0.0
    %4250 = vmatpush.msra.mxu0 0.0
    %4251 = vmatpush.msra.mxu0 %v4190
    %4252 = vmatmul.f32.gmra.mxu0 %v4214
    %v4253 = vpop.f32.mrf.mxu0
    %v4254 = vadd.f32 %v4210, %v4253
    %4255 = vdwg.mxu0
    %4256 = vmatpush.msra.mxu0 0.0
    %4257 = vmatpush.msra.mxu0 0.0
    %4258 = vmatpush.msra.mxu0 0.0
    %4259 = vmatpush.msra.mxu0 0.0
    %4260 = vmatpush.msra.mxu0 0.0
    %4261 = vmatpush.msra.mxu0 0.0
    %4262 = vmatpush.msra.mxu0 0.0
    %4263 = vmatpush.msra.mxu0 0.0
    %4264 = vmatpush.msra.mxu0 0.0
    %4265 = vmatpush.msra.mxu0 0.0
    %4266 = vmatpush.msra.mxu0 0.0
    %4267 = vmatpush.msra.mxu0 0.0
    %4268 = vmatpush.msra.mxu0 0.0
    %4269 = vmatpush.msra.mxu0 0.0
    %4270 = vmatpush.msra.mxu0 0.0
    %4271 = vmatpush.msra.mxu0 %v4191
    %4272 = vmatmul.f32.gmra.mxu0 %v4214
    %v4273 = vpop.f32.mrf.mxu0
    %v4274 = vadd.f32 %v4210, %v4273
    %4275 = vdwg.mxu0
    %4276 = vmatpush.msra.mxu0 0.0
    %4277 = vmatpush.msra.mxu0 0.0
    %4278 = vmatpush.msra.mxu0 0.0
    %4279 = vmatpush.msra.mxu0 0.0
    %4280 = vmatpush.msra.mxu0 0.0
    %4281 = vmatpush.msra.mxu0 0.0
    %4282 = vmatpush.msra.mxu0 0.0
    %4283 = vmatpush.msra.mxu0 0.0
    %4284 = vmatpush.msra.mxu0 0.0
    %4285 = vmatpush.msra.mxu0 0.0
    %4286 = vmatpush.msra.mxu0 0.0
    %4287 = vmatpush.msra.mxu0 0.0
    %4288 = vmatpush.msra.mxu0 0.0
    %4289 = vmatpush.msra.mxu0 0.0
    %4290 = vmatpush.msra.mxu0 0.0
    %4291 = vmatpush.msra.mxu0 %v4192
    %4292 = vmatmul.f32.gmra.mxu0 %v4214
    %v4293 = vpop.f32.mrf.mxu0
    %v4294 = vadd.f32 %v4210, %v4293
    %4295 = vdwg.mxu0
    %4296 = vmatpush.msra.mxu0 0.0
    %4297 = vmatpush.msra.mxu0 0.0
    %4298 = vmatpush.msra.mxu0 0.0
    %4299 = vmatpush.msra.mxu0 0.0
    %4300 = vmatpush.msra.mxu0 0.0
    %4301 = vmatpush.msra.mxu0 0.0
    %4302 = vmatpush.msra.mxu0 0.0
    %4303 = vmatpush.msra.mxu0 0.0
    %4304 = vmatpush.msra.mxu0 0.0
    %4305 = vmatpush.msra.mxu0 0.0
    %4306 = vmatpush.msra.mxu0 0.0
    %4307 = vmatpush.msra.mxu0 0.0
    %4308 = vmatpush.msra.mxu0 0.0
    %4309 = vmatpush.msra.mxu0 0.0
    %4310 = vmatpush.msra.mxu0 0.0
    %4311 = vmatpush.msra.mxu0 %v4193
    %4312 = vmatmul.f32.gmra.mxu0 %v4214
    %v4313 = vpop.f32.mrf.mxu0
    %v4314 = vadd.f32 %v4210, %v4313
    %4315 = vdwg.mxu0
    %4316 = vmatpush.msra.mxu0 0.0
    %4317 = vmatpush.msra.mxu0 0.0
    %4318 = vmatpush.msra.mxu0 0.0
    %4319 = vmatpush.msra.mxu0 0.0
    %4320 = vmatpush.msra.mxu0 0.0
    %4321 = vmatpush.msra.mxu0 0.0
    %4322 = vmatpush.msra.mxu0 0.0
    %4323 = vmatpush.msra.mxu0 0.0
    %4324 = vmatpush.msra.mxu0 0.0
    %4325 = vmatpush.msra.mxu0 0.0
    %4326 = vmatpush.msra.mxu0 0.0
    %4327 = vmatpush.msra.mxu0 0.0
    %4328 = vmatpush.msra.mxu0 0.0
    %4329 = vmatpush.msra.mxu0 0.0
    %4330 = vmatpush.msra.mxu0 0.0
    %4331 = vmatpush.msra.mxu0 %v4194
    %4332 = vmatmul.f32.gmra.mxu0 %v4214
    %v4333 = vpop.f32.mrf.mxu0
    %v4334 = vadd.f32 %v4210, %v4333
    %4335 = vdwg.mxu0
    %4336 = vmatpush.msra.mxu0 0.0
    %4337 = vmatpush.msra.mxu0 0.0
    %4338 = vmatpush.msra.mxu0 0.0
    %4339 = vmatpush.msra.mxu0 0.0
    %4340 = vmatpush.msra.mxu0 0.0
    %4341 = vmatpush.msra.mxu0 0.0
    %4342 = vmatpush.msra.mxu0 0.0
    %4343 = vmatpush.msra.mxu0 0.0
    %4344 = vmatpush.msra.mxu0 0.0
    %4345 = vmatpush.msra.mxu0 0.0
    %4346 = vmatpush.msra.mxu0 0.0
    %4347 = vmatpush.msra.mxu0 0.0
    %4348 = vmatpush.msra.mxu0 0.0
    %4349 = vmatpush.msra.mxu0 0.0
    %4350 = vmatpush.msra.mxu0 0.0
    %4351 = vmatpush.msra.mxu0 %v4195
    %4352 = vmatmul.f32.gmra.mxu0 %v4214
    %v4353 = vpop.f32.mrf.mxu0
    %v4354 = vadd.f32 %v4210, %v4353
    %4355 = vdwg.mxu0
    %4356 = vmatpush.msra.mxu0 0.0
    %4357 = vmatpush.msra.mxu0 0.0
    %4358 = vmatpush.msra.mxu0 0.0
    %4359 = vmatpush.msra.mxu0 0.0
    %4360 = vmatpush.msra.mxu0 0.0
    %4361 = vmatpush.msra.mxu0 0.0
    %4362 = vmatpush.msra.mxu0 0.0
    %4363 = vmatpush.msra.mxu0 0.0
    %4364 = vmatpush.msra.mxu0 0.0
    %4365 = vmatpush.msra.mxu0 0.0
    %4366 = vmatpush.msra.mxu0 0.0
    %4367 = vmatpush.msra.mxu0 0.0
    %4368 = vmatpush.msra.mxu0 0.0
    %4369 = vmatpush.msra.mxu0 0.0
    %4370 = vmatpush.msra.mxu0 0.0
    %4371 = vmatpush.msra.mxu0 %v4196
    %4372 = vmatmul.f32.gmra.mxu0 %v4214
    %v4373 = vpop.f32.mrf.mxu0
    %v4374 = vadd.f32 %v4210, %v4373
    %4375 = vdwg.mxu0
    %4376 = vmatpush.msra.mxu0 0.0
    %4377 = vmatpush.msra.mxu0 0.0
    %4378 = vmatpush.msra.mxu0 0.0
    %4379 = vmatpush.msra.mxu0 0.0
    %4380 = vmatpush.msra.mxu0 0.0
    %4381 = vmatpush.msra.mxu0 0.0
    %4382 = vmatpush.msra.mxu0 0.0
    %4383 = vmatpush.msra.mxu0 0.0
    %4384 = vmatpush.msra.mxu0 0.0
    %4385 = vmatpush.msra.mxu0 0.0
    %4386 = vmatpush.msra.mxu0 0.0
    %4387 = vmatpush.msra.mxu0 0.0
    %4388 = vmatpush.msra.mxu0 0.0
    %4389 = vmatpush.msra.mxu0 0.0
    %4390 = vmatpush.msra.mxu0 0.0
    %4391 = vmatpush.msra.mxu0 %v4197
    %4392 = vmatmul.f32.gmra.mxu0 %v4214
    %v4393 = vpop.f32.mrf.mxu0
    %v4394 = vadd.f32 %v4210, %v4393
    %4395 = vdwg.mxu0
    %4396 = vmatpush.msra.mxu0 0.0
    %4397 = vmatpush.msra.mxu0 0.0
    %4398 = vmatpush.msra.mxu0 0.0
    %4399 = vmatpush.msra.mxu0 0.0
    %4400 = vmatpush.msra.mxu0 0.0
    %4401 = vmatpush.msra.mxu0 0.0
    %4402 = vmatpush.msra.mxu0 0.0
    %4403 = vmatpush.msra.mxu0 0.0
    %4404 = vmatpush.msra.mxu0 0.0
    %4405 = vmatpush.msra.mxu0 0.0
    %4406 = vmatpush.msra.mxu0 0.0
    %4407 = vmatpush.msra.mxu0 0.0
    %4408 = vmatpush.msra.mxu0 0.0
    %4409 = vmatpush.msra.mxu0 0.0
    %4410 = vmatpush.msra.mxu0 0.0
    %4411 = vmatpush.msra.mxu0 %v4198
    %4412 = vmatmul.f32.gmra.mxu0 %v4214
    %v4413 = vpop.f32.mrf.mxu0
    %v4414 = vadd.f32 %v4210, %v4413
    %4415 = vdwg.mxu0
    %4416 = vmatpush.msra.mxu0 0.0
    %4417 = vmatpush.msra.mxu0 0.0
    %4418 = vmatpush.msra.mxu0 0.0
    %4419 = vmatpush.msra.mxu0 0.0
    %4420 = vmatpush.msra.mxu0 0.0
    %4421 = vmatpush.msra.mxu0 0.0
    %4422 = vmatpush.msra.mxu0 0.0
    %4423 = vmatpush.msra.mxu0 0.0
    %4424 = vmatpush.msra.mxu0 0.0
    %4425 = vmatpush.msra.mxu0 0.0
    %4426 = vmatpush.msra.mxu0 0.0
    %4427 = vmatpush.msra.mxu0 0.0
    %4428 = vmatpush.msra.mxu0 0.0
    %4429 = vmatpush.msra.mxu0 0.0
    %4430 = vmatpush.msra.mxu0 0.0
    %4431 = vmatpush.msra.mxu0 %v4199
    %4432 = vmatmul.f32.gmra.mxu0 %v4214
    %v4433 = vpop.f32.mrf.mxu0
    %v4434 = vadd.f32 %v4210, %v4433
    %4435 = vdwg.mxu0
    %4436 = vmatpush.msra.mxu0 0.0
    %4437 = vmatpush.msra.mxu0 0.0
    %4438 = vmatpush.msra.mxu0 0.0
    %4439 = vmatpush.msra.mxu0 0.0
    %4440 = vmatpush.msra.mxu0 0.0
    %4441 = vmatpush.msra.mxu0 0.0
    %4442 = vmatpush.msra.mxu0 0.0
    %4443 = vmatpush.msra.mxu0 0.0
    %4444 = vmatpush.msra.mxu0 0.0
    %4445 = vmatpush.msra.mxu0 0.0
    %4446 = vmatpush.msra.mxu0 0.0
    %4447 = vmatpush.msra.mxu0 0.0
    %4448 = vmatpush.msra.mxu0 0.0
    %4449 = vmatpush.msra.mxu0 0.0
    %4450 = vmatpush.msra.mxu0 0.0
    %4451 = vmatpush.msra.mxu0 %v4200
    %4452 = vmatmul.f32.gmra.mxu0 %v4214
    %v4453 = vpop.f32.mrf.mxu0
    %v4454 = vadd.f32 %v4210, %v4453
    %4455 = vdwg.mxu0
    %4456 = vmatpush.msra.mxu0 0.0
    %4457 = vmatpush.msra.mxu0 0.0
    %4458 = vmatpush.msra.mxu0 0.0
    %4459 = vmatpush.msra.mxu0 0.0
    %4460 = vmatpush.msra.mxu0 0.0
    %4461 = vmatpush.msra.mxu0 0.0
    %4462 = vmatpush.msra.mxu0 0.0
    %4463 = vmatpush.msra.mxu0 0.0
    %4464 = vmatpush.msra.mxu0 0.0
    %4465 = vmatpush.msra.mxu0 0.0
    %4466 = vmatpush.msra.mxu0 0.0
    %4467 = vmatpush.msra.mxu0 0.0
    %4468 = vmatpush.msra.mxu0 0.0
    %4469 = vmatpush.msra.mxu0 0.0
    %4470 = vmatpush.msra.mxu0 0.0
    %4471 = vmatpush.msra.mxu0 %v4201
    %4472 = vmatmul.f32.gmra.mxu0 %v4214
    %v4473 = vpop.f32.mrf.mxu0
    %v4474 = vadd.f32 %v4210, %v4473
    %4475 = vdwg.mxu0
    %4476 = vmatpush.msra.mxu0 0.0
    %4477 = vmatpush.msra.mxu0 0.0
    %4478 = vmatpush.msra.mxu0 0.0
    %4479 = vmatpush.msra.mxu0 0.0
    %4480 = vmatpush.msra.mxu0 0.0
    %4481 = vmatpush.msra.mxu0 0.0
    %4482 = vmatpush.msra.mxu0 0.0
    %4483 = vmatpush.msra.mxu0 0.0
    %4484 = vmatpush.msra.mxu0 0.0
    %4485 = vmatpush.msra.mxu0 0.0
    %4486 = vmatpush.msra.mxu0 0.0
    %4487 = vmatpush.msra.mxu0 0.0
    %4488 = vmatpush.msra.mxu0 0.0
    %4489 = vmatpush.msra.mxu0 0.0
    %4490 = vmatpush.msra.mxu0 0.0
    %4491 = vmatpush.msra.mxu0 %v4202
    %4492 = vmatmul.f32.gmra.mxu0 %v4214
    %v4493 = vpop.f32.mrf.mxu0
    %v4494 = vadd.f32 %v4210, %v4493
    %4495 = vdwg.mxu0
    %4496 = vmatpush.msra.mxu0 0.0
    %4497 = vmatpush.msra.mxu0 0.0
    %4498 = vmatpush.msra.mxu0 0.0
    %4499 = vmatpush.msra.mxu0 0.0
    %4500 = vmatpush.msra.mxu0 0.0
    %4501 = vmatpush.msra.mxu0 0.0
    %4502 = vmatpush.msra.mxu0 0.0
    %4503 = vmatpush.msra.mxu0 0.0
    %4504 = vmatpush.msra.mxu0 0.0
    %4505 = vmatpush.msra.mxu0 0.0
    %4506 = vmatpush.msra.mxu0 0.0
    %4507 = vmatpush.msra.mxu0 0.0
    %4508 = vmatpush.msra.mxu0 0.0
    %4509 = vmatpush.msra.mxu0 0.0
    %4510 = vmatpush.msra.mxu0 0.0
    %4511 = vmatpush.msra.mxu0 %v4203
    %4512 = vmatmul.f32.gmra.mxu0 %v4214
    %v4513 = vpop.f32.mrf.mxu0
    %v4514 = vadd.f32 %v4210, %v4513
    %4515 = vdwg.mxu0
    %4516 = vmatpush.msra.mxu0 0.0
    %4517 = vmatpush.msra.mxu0 0.0
    %4518 = vmatpush.msra.mxu0 0.0
    %4519 = vmatpush.msra.mxu0 0.0
    %4520 = vmatpush.msra.mxu0 0.0
    %4521 = vmatpush.msra.mxu0 0.0
    %4522 = vmatpush.msra.mxu0 0.0
    %4523 = vmatpush.msra.mxu0 0.0
    %4524 = vmatpush.msra.mxu0 0.0
    %4525 = vmatpush.msra.mxu0 0.0
    %4526 = vmatpush.msra.mxu0 0.0
    %4527 = vmatpush.msra.mxu0 0.0
    %4528 = vmatpush.msra.mxu0 0.0
    %4529 = vmatpush.msra.mxu0 0.0
    %4530 = vmatpush.msra.mxu0 0.0
    %4531 = vmatpush.msra.mxu0 %v4204
    %4532 = vmatmul.f32.gmra.mxu0 %v4214
    %v4533 = vpop.f32.mrf.mxu0
    %v4534 = vadd.f32 %v4210, %v4533
    %4535 = vdwg.mxu0
    %v4536 = vmax.f32 %v4234, 0.0
    %v4537 = vmax.f32 %v4254, 0.0
    %v4538 = vmax.f32 %v4274, 0.0
    %v4539 = vmax.f32 %v4294, 0.0
    %v4540 = vmax.f32 %v4314, 0.0
    %v4541 = vmax.f32 %v4334, 0.0
    %v4542 = vmax.f32 %v4354, 0.0
    %v4543 = vmax.f32 %v4374, 0.0
    %v4544 = vmax.f32 %v4394, 0.0
    %v4545 = vmax.f32 %v4414, 0.0
    %v4546 = vmax.f32 %v4434, 0.0
    %v4547 = vmax.f32 %v4454, 0.0
    %v4548 = vmax.f32 %v4474, 0.0
    %v4549 = vmax.f32 %v4494, 0.0
    %v4550 = vmax.f32 %v4514, 0.0
    %v4551 = vmax.f32 %v4534, 0.0
    %4552 = vst [vmem:[#allocation8] sm:$0xff] %v4536
    %4553 = vst [vmem:[#allocation8 + $0x8] sm:$0xff] %v4537
    %4554 = vst [vmem:[#allocation8 + $0x10] sm:$0xff] %v4538
    %4555 = vst [vmem:[#allocation8 + $0x18] sm:$0xff] %v4539
    %4556 = vst [vmem:[#allocation8 + $0x20] sm:$0xff] %v4540
    %4557 = vst [vmem:[#allocation8 + $0x28] sm:$0xff] %v4541
    %4558 = vst [vmem:[#allocation8 + $0x30] sm:$0xff] %v4542
    %4559 = vst [vmem:[#allocation8 + $0x38] sm:$0xff] %v4543
    %4560 = vst [vmem:[#allocation8 + $0x40] sm:$0xff] %v4544
    %4561 = vst [vmem:[#allocation8 + $0x48] sm:$0xff] %v4545
    %4562 = vst [vmem:[#allocation8 + $0x50] sm:$0xff] %v4546
    %4563 = vst [vmem:[#allocation8 + $0x58] sm:$0xff] %v4547
    %4564 = vst [vmem:[#allocation8 + $0x60] sm:$0xff] %v4548
    %4565 = vst [vmem:[#allocation8 + $0x68] sm:$0xff] %v4549
    %4566 = vst [vmem:[#allocation8 + $0x70] sm:$0xff] %v4550
    %4567 = vst [vmem:[#allocation8 + $0x78] sm:$0xff] %v4551
    // Predicated region
    $region42: #{tpu_custom_call.1} parent=1 // pred_check
      _
    $region43: #{tpu_custom_call.1} parent=1 // pred_check_branch
      %4569 = sbr.rel (0) target = $region45
    $region44: #{tpu_custom_call.1} parent=1 // pred_region
      %4571 = vsyncadd [#allocation5], 0
      %s4573 = sshll.u32 [#allocation8], 4
      %s4574 = int_to_ptr.vmem [resolvable:$true] %s4573
      %s4575 = sshll.u32 %s8, 4
      %s4576 = int_to_ptr.hbm [resolvable:$true] %s4575
      %4578 = dma.vmem_to_hbm [thread:$0]  %s4574, 2048, %s4576, [#allocation5]
    $region45: #{tpu_custom_call.1} parent=1 // pred_fallthru
      _
    // Predicated region
    $region46: #{tpu_custom_call.1} parent=1 // pred_check
      _
    $region47: #{tpu_custom_call.1} parent=1 // pred_check_branch
      %4580 = sbr.rel (0) target = $region49
    $region48: #{tpu_custom_call.1} parent=1 // pred_region
      %4582 = dma.done [#allocation5], 2048
    $region49: #{tpu_custom_call.1} parent=1 // pred_fallthru
      _
    %4583 = vsyncpa [#allocation4], 1
    %4584 = vsyncpa [#allocation7], 1
    %4585 = vsyncpa [#allocation5], 1

</llo_original>
